<compile_context>
chip_gen: v5e
topology: v5e:2x2
jax: 0.10.0
libtpu: 0.0.40
codegen_flags: <defaults>
</compile_context>

<pallas_src>
import functools

import numpy as np
import jax
import jax.numpy as jnp
from jax import lax
from jax.experimental import pallas as pl
from jax.experimental.pallas import tpu as pltpu  # noqa: F401  (TPU backend assumed)

BN_EPS = 1e-5
BN_SCALE = float(1.0 / np.sqrt(1.0 + BN_EPS))   # eval BatchNorm with default running stats

# torch.cat((out1, out2, out0, out4, out3), dim=1): cat position j holds band PERM[j]
PERM = (1, 2, 0, 4, 3)
# band s sits at cat position INV_PERM[s]
INV_PERM = (2, 0, 1, 4, 3)


# ------------------------------------------------------------------
# Kernel 1: latent_correlation_layer for all bands -> symmetric adjacency
# ------------------------------------------------------------------
def _adjacency_kernel(x_ref, m_ref, adj_ref, *, S, B, C, F):
    # x_ref: [S,B,C,F]; m_ref: [S,F,F] = 0.5*BN^2*Wq Wk^T; adj_ref: [S,C,C]
    for s in range(S):                               # single launch; S=5 unrolled
        xs = x_ref[s]                                                   # [B,C,F]
        xm = jnp.dot(xs.reshape(B * C, F), m_ref[s],
                     preferred_element_type=jnp.float32)                # [B*C,F]
        # scores[b] = (x_b Wq)(x_b Wk)^T / sqrt(4)  ==  x_b (0.5*Wq Wk^T) x_b^T
        scores = lax.dot_general(xm.reshape(B, C, F), xs,
                                 (((2,), (2,)), ((0,), (0,))),
                                 preferred_element_type=jnp.float32)    # [B,C,C]
        scores = jnp.where(scores > 0, scores, 0.2 * scores)            # LeakyReLU(0.2)
        scores = scores - jnp.max(scores, axis=-1, keepdims=True)
        p = jnp.exp(scores)
        p = p / jnp.sum(p, axis=-1, keepdims=True)                      # softmax(dim=2); dropout=id
        A = jnp.mean(p, axis=0)                                         # mean over batch
        adj_ref[s] = 0.5 * (A + A.T)                                    # symmetrize


def compute_adjacencies(x_sb, M):
    S, B, C, F = x_sb.shape
    return pl.pallas_call(
        functools.partial(_adjacency_kernel, S=S, B=B, C=C, F=F),
        out_shape=jax.ShapeDtypeStruct((S, C, C), jnp.float32),
    )(x_sb, M)


# ------------------------------------------------------------------
# Host step: one batched eigendecomposition of the 5 (non-symmetric) Laplacians
# ------------------------------------------------------------------
def _host_eig_vets(adjs):
    # L[s,i,j] = D[s,j] - A[s,i,j], D = column sums (matches the torch broadcast `D - adjacency`);
    # L is NOT symmetric -> general eig.  One batched LAPACK call, no float64 upcast, no Python loop.
    adjs = np.asarray(adjs, dtype=np.float32)
    deg = adjs.sum(axis=1)
    lap = deg[:, None, :] - adjs
    _, vecs = np.linalg.eig(lap)
    return np.ascontiguousarray(np.real(vecs)).astype(np.float32)


def spectral_eigvecs(adjs):
    # TODO(synk): non-symmetric eig (torch.linalg.eig) has no TPU/Pallas lowering; done as a single
    # batched host callback (eigvector order/sign is LAPACK-dependent, as in the torch reference).
    return jax.pure_callback(
        _host_eig_vets, jax.ShapeDtypeStruct(adjs.shape, jnp.float32), adjs)


# ------------------------------------------------------------------
# Kernel 2: fused spectral graph conv (all 5 bands) + MyChannelAttention(5) + fc head
# ------------------------------------------------------------------
def _gconv_head_kernel(x_ref, vets_ref, gk_ref, wa1t_ref, ba1_ref, wa2t_ref, ba2_ref,
                       w1_ref, b1_ref, w2t_ref, b2_ref, out_ref, *, S, B, C, F, K):
    # x_ref: [S, B*F, C]; vets: [S,C,C]; gk: [S,K,C] (BN1 pre-folded);
    # wa1t: [S,4]; ba1: [1,4]; wa2t: [4,S]; ba2: [1,S];
    # w1: [S*K*C,8]; b1: [1,8]; w2t: [8,2]; b2: [1,2]; out: [B,2]
    KC = K * C
    bn2_mean = BN_SCALE / F                          # BN2 (eval) folded into the feature mean
    ys, means = [], []
    for s in range(S):                               # S=5, unrolled: all bands in one launch
        V = vets_ref[s]                                                  # [C,C]
        g = gk_ref[s]                                                    # [K,C]
        w_stack = (V[None, :, :] * g[:, None, :]).reshape(KC, C)         # rows (k,c): V[c,:]*g[k,:]
        # Wt[i, k*C+c] = (V diag(g_k) V^T)[i,c] -- adjacency operator, built once per band
        wt = lax.dot_general(V, w_stack, (((1,), (1,)), ((), ())),
                             preferred_element_type=jnp.float32)         # [C, K*C]
        # one matmul per band contracting channels over ALL batch elements at once
        z = jnp.dot(x_ref[s], wt, preferred_element_type=jnp.float32)    # [B*F, K*C]
        z = jnp.maximum(z, 0.0)                                          # ReLU
        y = jnp.concatenate(
            [jnp.sum(z[b * F:(b + 1) * F, :], axis=0, keepdims=True) for b in range(B)],
            axis=0) * bn2_mean                                           # BN2 + mean over F: [B,K*C]
        ys.append(y)
        means.append(jnp.mean(y, axis=1, keepdims=True))                 # [B,1] (mean over K,C)

    # channel attention over the 5 bands; cat order folded into the permuted weights
    ca_in = jnp.concatenate(means, axis=1)                               # [B,S] (natural band order)
    h = jnp.dot(ca_in, wa1t_ref[...], preferred_element_type=jnp.float32) + ba1_ref[...]
    h = jnp.maximum(jnp.tanh(h), 0.0)                                    # Tanh -> ReLU
    a = jnp.dot(h, wa2t_ref[...], preferred_element_type=jnp.float32) + ba2_ref[...]   # [B,S]
    att = jnp.mean(a, axis=0, keepdims=True)                             # [1,S] mean over batch

    # attention-scaled, lane-dense [B, S*K*C] slab -> single fc1 matmul
    y_all = jnp.concatenate([ys[s] * att[:, s:s + 1] for s in range(S)], axis=1)       # [B,400]
    acc = jnp.dot(y_all, w1_ref[...], preferred_element_type=jnp.float32) + b1_ref[...]  # [B,8]
    h2 = jnp.tanh(acc)                                                   # dropouts = identity (eval)
    logits = jnp.dot(h2, w2t_ref[...], preferred_element_type=jnp.float32) + b2_ref[...]  # [B,2]
    logits = logits - jnp.max(logits, axis=-1, keepdims=True)
    e = jnp.exp(logits)
    out_ref[...] = e / jnp.sum(e, axis=-1, keepdims=True)                # Softmax


# ------------------------------------------------------------------
# Full forward
# ------------------------------------------------------------------
def multi_graph_forward(x, params):
    B, S, C, F = x.shape
    K = params["gk"].shape[1]
    KC = K * C
    inv_perm = jnp.asarray(INV_PERM, dtype=jnp.int32)

    # --- adjacency: fold BN1 and 1/sqrt(d_k) into a per-band bilinear form ---
    M = (0.5 * BN_SCALE * BN_SCALE) * jnp.einsum("sfa,sga->sfg", params["wq"], params["wk"])
    x_sb = jnp.transpose(x, (1, 0, 2, 3))                                # [S,B,C,F]
    adjs = compute_adjacencies(x_sb, M)                                  # [S,C,C]

    e_vets = spectral_eigvecs(adjs)                                      # [S,C,C] (host, batched)

    # --- fold torch.cat band order + transpose(3,1) + Flatten into the head weights ---
    wa1t = jnp.transpose(params["wa1"])[inv_perm]                        # [S,4], natural-band rows
    ba1 = params["ba1"].reshape(1, 4)
    wa2t = jnp.transpose(params["wa2"][inv_perm])                        # [4,S], natural-band cols
    ba2 = params["ba2"][inv_perm].reshape(1, S)
    w1q = params["w1"].reshape(8, C, K, S)                               # [o, c, k, cat_pos]
    w1q = jnp.transpose(w1q, (3, 2, 1, 0))[inv_perm].reshape(S * KC, 8)  # [(band,k,c), o]
    b1 = params["b1"].reshape(1, 8)
    w2t = jnp.transpose(params["w2"])                                    # [8,2]
    b2 = params["b2"].reshape(1, 2)

    # x arranged so each band is a ready-to-matmul [B*F, C] slab; BN1 folded into the graph kernel
    x_fc = jnp.transpose(x, (1, 0, 3, 2)).reshape(S, B * F, C)
    gks = params["gk"] * BN_SCALE

    probs = pl.pallas_call(
        functools.partial(_gconv_head_kernel, S=S, B=B, C=C, F=F, K=K),
        out_shape=jax.ShapeDtypeStruct((B, 2), jnp.float32),
    )(x_fc, e_vets, gks, wa1t, ba1, wa2t, ba2, w1q, b1, w2t, b2)

    return probs, adjs[S - 1]   # `_` in torch is the adjacency returned by conv5 (band 4)


# ------------------------------------------------------------------
# Deterministic parameter init (torch-natural shapes)
# ------------------------------------------------------------------
def init_params(key, C, F, K, S=5):
    keys = jax.random.split(key, 11)

    def xavier_u(k, shape, fan_in, fan_out, gain=1.0):
        lim = gain * np.sqrt(6.0 / (fan_in + fan_out))
        return jax.random.uniform(k, shape, jnp.float32, -lim, lim)

    N = C * K * S
    return dict(
        wk=xavier_u(keys[0], (S, F, 4), F, 4, 1.414),   # weight_key per band [F,4]
        wq=xavier_u(keys[1], (S, F, 4), F, 4, 1.414),   # weight_query per band [F,4]
        gk=jax.random.normal(keys[2], (S, K, C), jnp.float32) * np.sqrt(2.0 / (1 + C)),  # graph_kernel
        wa1=xavier_u(keys[3], (4, 5), 5, 4),            # Linear(5,4).weight
        ba1=xavier_u(keys[4], (4,), 5, 4),
        wa2=xavier_u(keys[5], (5, 4), 4, 5),            # Linear(4,5).weight
        ba2=xavier_u(keys[6], (5,), 4, 5),
        w1=xavier_u(keys[7], (8, N), N, 8),             # Linear(C*K*5, 8).weight
        b1=xavier_u(keys[8], (8,), N, 8),
        w2=xavier_u(keys[9], (2, 8), 8, 2),             # Linear(8,2).weight
        b2=xavier_u(keys[10], (2,), 8, 2),
    )


if __name__ == "__main__":
    B, S, C, F, K = 2, 5, 16, 128, 5       # batch, bands, channel_num, num_features, kernel
    key = jax.random.PRNGKey(0)
    kx, kp = jax.random.split(key)
    x = jax.random.normal(kx, (B, S, C, F), jnp.float32)
    params = init_params(kp, C, F, K, S)

    fwd = jax.jit(multi_graph_forward)
    out, adj = fwd(x, params)
    jax.block_until_ready(out)
    jax.block_until_ready(adj)

    assert out.shape == (B, 2) and adj.shape == (C, C)
    assert bool(jnp.all(jnp.isfinite(out)))
    print("KERNEL_OK")
</pallas_src>

<mosaic_0001>
module attributes {stable_mosaic.version = 11 : i64} {
  func.func @_adjacency_kernel(%arg0: memref<5x2x16x128xf32, #tpu.memory_space<vmem>>, %arg1: memref<5x128x128xf32, #tpu.memory_space<vmem>>, %arg2: memref<5x16x16xf32, #tpu.memory_space<vmem>>) attributes {dimension_semantics = [], scalar_prefetch = 0 : i64, scratch_operands = 0 : i64, tpu.core_type = #tpu.core_type<tc>} {
    %c0 = arith.constant 0 : index
    %c0_0 = arith.constant 0 : index
    %c0_1 = arith.constant 0 : index
    %c0_2 = arith.constant 0 : index
    %0 = vector.load %arg0[%c0, %c0_0, %c0_1, %c0_2] : memref<5x2x16x128xf32, #tpu.memory_space<vmem>>, vector<1x2x16x128xf32>
    %1 = vector.shape_cast %0 : vector<1x2x16x128xf32> to vector<2x16x128xf32>
    %2 = vector.shape_cast %1 : vector<2x16x128xf32> to vector<32x128xf32>
    %c0_3 = arith.constant 0 : index
    %c0_4 = arith.constant 0 : index
    %c0_5 = arith.constant 0 : index
    %3 = vector.load %arg1[%c0_3, %c0_4, %c0_5] : memref<5x128x128xf32, #tpu.memory_space<vmem>>, vector<1x128x128xf32>
    %4 = vector.shape_cast %3 : vector<1x128x128xf32> to vector<128x128xf32>
    %cst = arith.constant dense<0.000000e+00> : vector<32x128xf32>
    %5 = tpu.matmul %2, %4, %cst {dimension_numbers = #tpu.dot_dimension_numbers<[1], [0], [0], [1], [0, 0, 1, 1], [], []>} : vector<32x128xf32>, vector<128x128xf32>, vector<32x128xf32> -> vector<32x128xf32>
    %6 = vector.shape_cast %5 : vector<32x128xf32> to vector<2x16x128xf32>
    %cst_6 = arith.constant dense<0.000000e+00> : vector<2x16x16xf32>
    %7 = tpu.matmul %6, %1, %cst_6 {dimension_numbers = #tpu.dot_dimension_numbers<[2], [2], [1], [1], [0, 0, 0, 1, 1, 1], [0], [0]>} : vector<2x16x128xf32>, vector<2x16x128xf32>, vector<2x16x16xf32> -> vector<2x16x16xf32>
    %cst_7 = arith.constant 0.000000e+00 : f32
    %8 = vector.broadcast %cst_7 : f32 to vector<2x16x16xf32>
    %9 = arith.cmpf ogt, %7, %8 : vector<2x16x16xf32>
    %cst_8 = arith.constant 2.000000e-01 : f32
    %10 = vector.broadcast %cst_8 : f32 to vector<2x16x16xf32>
    %11 = arith.mulf %10, %7 : vector<2x16x16xf32>
    %12 = arith.select %9, %7, %11 : vector<2x16x16xi1>, vector<2x16x16xf32>
    %cst_9 = arith.constant dense<0xFF800000> : vector<2x16xf32>
    %13 = vector.multi_reduction <maximumf>, %12, %cst_9 [2] : vector<2x16x16xf32> to vector<2x16xf32>
    %14 = vector.shape_cast %13 : vector<2x16xf32> to vector<2x16x1xf32>
    %15 = vector.broadcast %14 : vector<2x16x1xf32> to vector<2x16x16xf32>
    %16 = arith.subf %12, %15 : vector<2x16x16xf32>
    %17 = math.exp %16 : vector<2x16x16xf32>
    %cst_10 = arith.constant dense<0.000000e+00> : vector<2x16xf32>
    %18 = vector.multi_reduction <add>, %17, %cst_10 [2] : vector<2x16x16xf32> to vector<2x16xf32>
    %19 = vector.shape_cast %18 : vector<2x16xf32> to vector<2x16x1xf32>
    %20 = vector.broadcast %19 : vector<2x16x1xf32> to vector<2x16x16xf32>
    %21 = arith.divf %17, %20 : vector<2x16x16xf32>
    %cst_11 = arith.constant dense<0.000000e+00> : vector<16x16xf32>
    %22 = vector.multi_reduction <add>, %21, %cst_11 [0] : vector<2x16x16xf32> to vector<16x16xf32>
    %cst_12 = arith.constant 2.000000e+00 : f32
    %23 = vector.broadcast %cst_12 : f32 to vector<16x16xf32>
    %24 = arith.divf %22, %23 : vector<16x16xf32>
    %25 = tpu.transpose %24, [1, 0] : vector<16x16xf32> -> vector<16x16xf32>
    %26 = arith.addf %24, %25 : vector<16x16xf32>
    %cst_13 = arith.constant 5.000000e-01 : f32
    %27 = vector.broadcast %cst_13 : f32 to vector<16x16xf32>
    %28 = arith.mulf %27, %26 : vector<16x16xf32>
    %c0_14 = arith.constant 0 : index
    %c0_15 = arith.constant 0 : index
    %c0_16 = arith.constant 0 : index
    %29 = vector.load %arg2[%c0_14, %c0_15, %c0_16] : memref<5x16x16xf32, #tpu.memory_space<vmem>>, vector<1x16x16xf32>
    %30 = vector.shape_cast %29 : vector<1x16x16xf32> to vector<16x16xf32>
    %31 = vector.shape_cast %28 : vector<16x16xf32> to vector<1x16x16xf32>
    tpu.vector_store %arg2[%c0_14, %c0_15, %c0_16], %31 {strides = array<i32>} : memref<5x16x16xf32, #tpu.memory_space<vmem>>, vector<1x16x16xf32>,
    %c1 = arith.constant 1 : index
    %c0_17 = arith.constant 0 : index
    %c0_18 = arith.constant 0 : index
    %c0_19 = arith.constant 0 : index
    %32 = vector.load %arg0[%c1, %c0_17, %c0_18, %c0_19] : memref<5x2x16x128xf32, #tpu.memory_space<vmem>>, vector<1x2x16x128xf32>
    %33 = vector.shape_cast %32 : vector<1x2x16x128xf32> to vector<2x16x128xf32>
    %34 = vector.shape_cast %33 : vector<2x16x128xf32> to vector<32x128xf32>
    %c1_20 = arith.constant 1 : index
    %c0_21 = arith.constant 0 : index
    %c0_22 = arith.constant 0 : index
    %35 = vector.load %arg1[%c1_20, %c0_21, %c0_22] : memref<5x128x128xf32, #tpu.memory_space<vmem>>, vector<1x128x128xf32>
    %36 = vector.shape_cast %35 : vector<1x128x128xf32> to vector<128x128xf32>
    %cst_23 = arith.constant dense<0.000000e+00> : vector<32x128xf32>
    %37 = tpu.matmul %34, %36, %cst_23 {dimension_numbers = #tpu.dot_dimension_numbers<[1], [0], [0], [1], [0, 0, 1, 1], [], []>} : vector<32x128xf32>, vector<128x128xf32>, vector<32x128xf32> -> vector<32x128xf32>
    %38 = vector.shape_cast %37 : vector<32x128xf32> to vector<2x16x128xf32>
    %cst_24 = arith.constant dense<0.000000e+00> : vector<2x16x16xf32>
    %39 = tpu.matmul %38, %33, %cst_24 {dimension_numbers = #tpu.dot_dimension_numbers<[2], [2], [1], [1], [0, 0, 0, 1, 1, 1], [0], [0]>} : vector<2x16x128xf32>, vector<2x16x128xf32>, vector<2x16x16xf32> -> vector<2x16x16xf32>
    %cst_25 = arith.constant 0.000000e+00 : f32
    %40 = vector.broadcast %cst_25 : f32 to vector<2x16x16xf32>
    %41 = arith.cmpf ogt, %39, %40 : vector<2x16x16xf32>
    %cst_26 = arith.constant 2.000000e-01 : f32
    %42 = vector.broadcast %cst_26 : f32 to vector<2x16x16xf32>
    %43 = arith.mulf %42, %39 : vector<2x16x16xf32>
    %44 = arith.select %41, %39, %43 : vector<2x16x16xi1>, vector<2x16x16xf32>
    %cst_27 = arith.constant dense<0xFF800000> : vector<2x16xf32>
    %45 = vector.multi_reduction <maximumf>, %44, %cst_27 [2] : vector<2x16x16xf32> to vector<2x16xf32>
    %46 = vector.shape_cast %45 : vector<2x16xf32> to vector<2x16x1xf32>
    %47 = vector.broadcast %46 : vector<2x16x1xf32> to vector<2x16x16xf32>
    %48 = arith.subf %44, %47 : vector<2x16x16xf32>
    %49 = math.exp %48 : vector<2x16x16xf32>
    %cst_28 = arith.constant dense<0.000000e+00> : vector<2x16xf32>
    %50 = vector.multi_reduction <add>, %49, %cst_28 [2] : vector<2x16x16xf32> to vector<2x16xf32>
    %51 = vector.shape_cast %50 : vector<2x16xf32> to vector<2x16x1xf32>
    %52 = vector.broadcast %51 : vector<2x16x1xf32> to vector<2x16x16xf32>
    %53 = arith.divf %49, %52 : vector<2x16x16xf32>
    %cst_29 = arith.constant dense<0.000000e+00> : vector<16x16xf32>
    %54 = vector.multi_reduction <add>, %53, %cst_29 [0] : vector<2x16x16xf32> to vector<16x16xf32>
    %cst_30 = arith.constant 2.000000e+00 : f32
    %55 = vector.broadcast %cst_30 : f32 to vector<16x16xf32>
    %56 = arith.divf %54, %55 : vector<16x16xf32>
    %57 = tpu.transpose %56, [1, 0] : vector<16x16xf32> -> vector<16x16xf32>
    %58 = arith.addf %56, %57 : vector<16x16xf32>
    %cst_31 = arith.constant 5.000000e-01 : f32
    %59 = vector.broadcast %cst_31 : f32 to vector<16x16xf32>
    %60 = arith.mulf %59, %58 : vector<16x16xf32>
    %c1_32 = arith.constant 1 : index
    %c0_33 = arith.constant 0 : index
    %c0_34 = arith.constant 0 : index
    %61 = vector.load %arg2[%c1_32, %c0_33, %c0_34] : memref<5x16x16xf32, #tpu.memory_space<vmem>>, vector<1x16x16xf32>
    %62 = vector.shape_cast %61 : vector<1x16x16xf32> to vector<16x16xf32>
    %63 = vector.shape_cast %60 : vector<16x16xf32> to vector<1x16x16xf32>
    tpu.vector_store %arg2[%c1_32, %c0_33, %c0_34], %63 {strides = array<i32>} : memref<5x16x16xf32, #tpu.memory_space<vmem>>, vector<1x16x16xf32>,
    %c2 = arith.constant 2 : index
    %c0_35 = arith.constant 0 : index
    %c0_36 = arith.constant 0 : index
    %c0_37 = arith.constant 0 : index
    %64 = vector.load %arg0[%c2, %c0_35, %c0_36, %c0_37] : memref<5x2x16x128xf32, #tpu.memory_space<vmem>>, vector<1x2x16x128xf32>
    %65 = vector.shape_cast %64 : vector<1x2x16x128xf32> to vector<2x16x128xf32>
    %66 = vector.shape_cast %65 : vector<2x16x128xf32> to vector<32x128xf32>
    %c2_38 = arith.constant 2 : index
    %c0_39 = arith.constant 0 : index
    %c0_40 = arith.constant 0 : index
    %67 = vector.load %arg1[%c2_38, %c0_39, %c0_40] : memref<5x128x128xf32, #tpu.memory_space<vmem>>, vector<1x128x128xf32>
    %68 = vector.shape_cast %67 : vector<1x128x128xf32> to vector<128x128xf32>
    %cst_41 = arith.constant dense<0.000000e+00> : vector<32x128xf32>
    %69 = tpu.matmul %66, %68, %cst_41 {dimension_numbers = #tpu.dot_dimension_numbers<[1], [0], [0], [1], [0, 0, 1, 1], [], []>} : vector<32x128xf32>, vector<128x128xf32>, vector<32x128xf32> -> vector<32x128xf32>
    %70 = vector.shape_cast %69 : vector<32x128xf32> to vector<2x16x128xf32>
    %cst_42 = arith.constant dense<0.000000e+00> : vector<2x16x16xf32>
    %71 = tpu.matmul %70, %65, %cst_42 {dimension_numbers = #tpu.dot_dimension_numbers<[2], [2], [1], [1], [0, 0, 0, 1, 1, 1], [0], [0]>} : vector<2x16x128xf32>, vector<2x16x128xf32>, vector<2x16x16xf32> -> vector<2x16x16xf32>
    %cst_43 = arith.constant 0.000000e+00 : f32
    %72 = vector.broadcast %cst_43 : f32 to vector<2x16x16xf32>
    %73 = arith.cmpf ogt, %71, %72 : vector<2x16x16xf32>
    %cst_44 = arith.constant 2.000000e-01 : f32
    %74 = vector.broadcast %cst_44 : f32 to vector<2x16x16xf32>
    %75 = arith.mulf %74, %71 : vector<2x16x16xf32>
    %76 = arith.select %73, %71, %75 : vector<2x16x16xi1>, vector<2x16x16xf32>
    %cst_45 = arith.constant dense<0xFF800000> : vector<2x16xf32>
    %77 = vector.multi_reduction <maximumf>, %76, %cst_45 [2] : vector<2x16x16xf32> to vector<2x16xf32>
    %78 = vector.shape_cast %77 : vector<2x16xf32> to vector<2x16x1xf32>
    %79 = vector.broadcast %78 : vector<2x16x1xf32> to vector<2x16x16xf32>
    %80 = arith.subf %76, %79 : vector<2x16x16xf32>
    %81 = math.exp %80 : vector<2x16x16xf32>
    %cst_46 = arith.constant dense<0.000000e+00> : vector<2x16xf32>
    %82 = vector.multi_reduction <add>, %81, %cst_46 [2] : vector<2x16x16xf32> to vector<2x16xf32>
    %83 = vector.shape_cast %82 : vector<2x16xf32> to vector<2x16x1xf32>
    %84 = vector.broadcast %83 : vector<2x16x1xf32> to vector<2x16x16xf32>
    %85 = arith.divf %81, %84 : vector<2x16x16xf32>
    %cst_47 = arith.constant dense<0.000000e+00> : vector<16x16xf32>
    %86 = vector.multi_reduction <add>, %85, %cst_47 [0] : vector<2x16x16xf32> to vector<16x16xf32>
    %cst_48 = arith.constant 2.000000e+00 : f32
    %87 = vector.broadcast %cst_48 : f32 to vector<16x16xf32>
    %88 = arith.divf %86, %87 : vector<16x16xf32>
    %89 = tpu.transpose %88, [1, 0] : vector<16x16xf32> -> vector<16x16xf32>
    %90 = arith.addf %88, %89 : vector<16x16xf32>
    %cst_49 = arith.constant 5.000000e-01 : f32
    %91 = vector.broadcast %cst_49 : f32 to vector<16x16xf32>
    %92 = arith.mulf %91, %90 : vector<16x16xf32>
    %c2_50 = arith.constant 2 : index
    %c0_51 = arith.constant 0 : index
    %c0_52 = arith.constant 0 : index
    %93 = vector.load %arg2[%c2_50, %c0_51, %c0_52] : memref<5x16x16xf32, #tpu.memory_space<vmem>>, vector<1x16x16xf32>
    %94 = vector.shape_cast %93 : vector<1x16x16xf32> to vector<16x16xf32>
    %95 = vector.shape_cast %92 : vector<16x16xf32> to vector<1x16x16xf32>
    tpu.vector_store %arg2[%c2_50, %c0_51, %c0_52], %95 {strides = array<i32>} : memref<5x16x16xf32, #tpu.memory_space<vmem>>, vector<1x16x16xf32>,
    %c3 = arith.constant 3 : index
    %c0_53 = arith.constant 0 : index
    %c0_54 = arith.constant 0 : index
    %c0_55 = arith.constant 0 : index
    %96 = vector.load %arg0[%c3, %c0_53, %c0_54, %c0_55] : memref<5x2x16x128xf32, #tpu.memory_space<vmem>>, vector<1x2x16x128xf32>
    %97 = vector.shape_cast %96 : vector<1x2x16x128xf32> to vector<2x16x128xf32>
    %98 = vector.shape_cast %97 : vector<2x16x128xf32> to vector<32x128xf32>
    %c3_56 = arith.constant 3 : index
    %c0_57 = arith.constant 0 : index
    %c0_58 = arith.constant 0 : index
    %99 = vector.load %arg1[%c3_56, %c0_57, %c0_58] : memref<5x128x128xf32, #tpu.memory_space<vmem>>, vector<1x128x128xf32>
    %100 = vector.shape_cast %99 : vector<1x128x128xf32> to vector<128x128xf32>
    %cst_59 = arith.constant dense<0.000000e+00> : vector<32x128xf32>
    %101 = tpu.matmul %98, %100, %cst_59 {dimension_numbers = #tpu.dot_dimension_numbers<[1], [0], [0], [1], [0, 0, 1, 1], [], []>} : vector<32x128xf32>, vector<128x128xf32>, vector<32x128xf32> -> vector<32x128xf32>
    %102 = vector.shape_cast %101 : vector<32x128xf32> to vector<2x16x128xf32>
    %cst_60 = arith.constant dense<0.000000e+00> : vector<2x16x16xf32>
    %103 = tpu.matmul %102, %97, %cst_60 {dimension_numbers = #tpu.dot_dimension_numbers<[2], [2], [1], [1], [0, 0, 0, 1, 1, 1], [0], [0]>} : vector<2x16x128xf32>, vector<2x16x128xf32>, vector<2x16x16xf32> -> vector<2x16x16xf32>
    %cst_61 = arith.constant 0.000000e+00 : f32
    %104 = vector.broadcast %cst_61 : f32 to vector<2x16x16xf32>
    %105 = arith.cmpf ogt, %103, %104 : vector<2x16x16xf32>
    %cst_62 = arith.constant 2.000000e-01 : f32
    %106 = vector.broadcast %cst_62 : f32 to vector<2x16x16xf32>
    %107 = arith.mulf %106, %103 : vector<2x16x16xf32>
    %108 = arith.select %105, %103, %107 : vector<2x16x16xi1>, vector<2x16x16xf32>
    %cst_63 = arith.constant dense<0xFF800000> : vector<2x16xf32>
    %109 = vector.multi_reduction <maximumf>, %108, %cst_63 [2] : vector<2x16x16xf32> to vector<2x16xf32>
    %110 = vector.shape_cast %109 : vector<2x16xf32> to vector<2x16x1xf32>
    %111 = vector.broadcast %110 : vector<2x16x1xf32> to vector<2x16x16xf32>
    %112 = arith.subf %108, %111 : vector<2x16x16xf32>
    %113 = math.exp %112 : vector<2x16x16xf32>
    %cst_64 = arith.constant dense<0.000000e+00> : vector<2x16xf32>
    %114 = vector.multi_reduction <add>, %113, %cst_64 [2] : vector<2x16x16xf32> to vector<2x16xf32>
    %115 = vector.shape_cast %114 : vector<2x16xf32> to vector<2x16x1xf32>
    %116 = vector.broadcast %115 : vector<2x16x1xf32> to vector<2x16x16xf32>
    %117 = arith.divf %113, %116 : vector<2x16x16xf32>
    %cst_65 = arith.constant dense<0.000000e+00> : vector<16x16xf32>
    %118 = vector.multi_reduction <add>, %117, %cst_65 [0] : vector<2x16x16xf32> to vector<16x16xf32>
    %cst_66 = arith.constant 2.000000e+00 : f32
    %119 = vector.broadcast %cst_66 : f32 to vector<16x16xf32>
    %120 = arith.divf %118, %119 : vector<16x16xf32>
    %121 = tpu.transpose %120, [1, 0] : vector<16x16xf32> -> vector<16x16xf32>
    %122 = arith.addf %120, %121 : vector<16x16xf32>
    %cst_67 = arith.constant 5.000000e-01 : f32
    %123 = vector.broadcast %cst_67 : f32 to vector<16x16xf32>
    %124 = arith.mulf %123, %122 : vector<16x16xf32>
    %c3_68 = arith.constant 3 : index
    %c0_69 = arith.constant 0 : index
    %c0_70 = arith.constant 0 : index
    %125 = vector.load %arg2[%c3_68, %c0_69, %c0_70] : memref<5x16x16xf32, #tpu.memory_space<vmem>>, vector<1x16x16xf32>
    %126 = vector.shape_cast %125 : vector<1x16x16xf32> to vector<16x16xf32>
    %127 = vector.shape_cast %124 : vector<16x16xf32> to vector<1x16x16xf32>
    tpu.vector_store %arg2[%c3_68, %c0_69, %c0_70], %127 {strides = array<i32>} : memref<5x16x16xf32, #tpu.memory_space<vmem>>, vector<1x16x16xf32>,
    %c4 = arith.constant 4 : index
    %c0_71 = arith.constant 0 : index
    %c0_72 = arith.constant 0 : index
    %c0_73 = arith.constant 0 : index
    %128 = vector.load %arg0[%c4, %c0_71, %c0_72, %c0_73] : memref<5x2x16x128xf32, #tpu.memory_space<vmem>>, vector<1x2x16x128xf32>
    %129 = vector.shape_cast %128 : vector<1x2x16x128xf32> to vector<2x16x128xf32>
    %130 = vector.shape_cast %129 : vector<2x16x128xf32> to vector<32x128xf32>
    %c4_74 = arith.constant 4 : index
    %c0_75 = arith.constant 0 : index
    %c0_76 = arith.constant 0 : index
    %131 = vector.load %arg1[%c4_74, %c0_75, %c0_76] : memref<5x128x128xf32, #tpu.memory_space<vmem>>, vector<1x128x128xf32>
    %132 = vector.shape_cast %131 : vector<1x128x128xf32> to vector<128x128xf32>
    %cst_77 = arith.constant dense<0.000000e+00> : vector<32x128xf32>
    %133 = tpu.matmul %130, %132, %cst_77 {dimension_numbers = #tpu.dot_dimension_numbers<[1], [0], [0], [1], [0, 0, 1, 1], [], []>} : vector<32x128xf32>, vector<128x128xf32>, vector<32x128xf32> -> vector<32x128xf32>
    %134 = vector.shape_cast %133 : vector<32x128xf32> to vector<2x16x128xf32>
    %cst_78 = arith.constant dense<0.000000e+00> : vector<2x16x16xf32>
    %135 = tpu.matmul %134, %129, %cst_78 {dimension_numbers = #tpu.dot_dimension_numbers<[2], [2], [1], [1], [0, 0, 0, 1, 1, 1], [0], [0]>} : vector<2x16x128xf32>, vector<2x16x128xf32>, vector<2x16x16xf32> -> vector<2x16x16xf32>
    %cst_79 = arith.constant 0.000000e+00 : f32
    %136 = vector.broadcast %cst_79 : f32 to vector<2x16x16xf32>
    %137 = arith.cmpf ogt, %135, %136 : vector<2x16x16xf32>
    %cst_80 = arith.constant 2.000000e-01 : f32
    %138 = vector.broadcast %cst_80 : f32 to vector<2x16x16xf32>
    %139 = arith.mulf %138, %135 : vector<2x16x16xf32>
    %140 = arith.select %137, %135, %139 : vector<2x16x16xi1>, vector<2x16x16xf32>
    %cst_81 = arith.constant dense<0xFF800000> : vector<2x16xf32>
    %141 = vector.multi_reduction <maximumf>, %140, %cst_81 [2] : vector<2x16x16xf32> to vector<2x16xf32>
    %142 = vector.shape_cast %141 : vector<2x16xf32> to vector<2x16x1xf32>
    %143 = vector.broadcast %142 : vector<2x16x1xf32> to vector<2x16x16xf32>
    %144 = arith.subf %140, %143 : vector<2x16x16xf32>
    %145 = math.exp %144 : vector<2x16x16xf32>
    %cst_82 = arith.constant dense<0.000000e+00> : vector<2x16xf32>
    %146 = vector.multi_reduction <add>, %145, %cst_82 [2] : vector<2x16x16xf32> to vector<2x16xf32>
    %147 = vector.shape_cast %146 : vector<2x16xf32> to vector<2x16x1xf32>
    %148 = vector.broadcast %147 : vector<2x16x1xf32> to vector<2x16x16xf32>
    %149 = arith.divf %145, %148 : vector<2x16x16xf32>
    %cst_83 = arith.constant dense<0.000000e+00> : vector<16x16xf32>
    %150 = vector.multi_reduction <add>, %149, %cst_83 [0] : vector<2x16x16xf32> to vector<16x16xf32>
    %cst_84 = arith.constant 2.000000e+00 : f32
    %151 = vector.broadcast %cst_84 : f32 to vector<16x16xf32>
    %152 = arith.divf %150, %151 : vector<16x16xf32>
    %153 = tpu.transpose %152, [1, 0] : vector<16x16xf32> -> vector<16x16xf32>
    %154 = arith.addf %152, %153 : vector<16x16xf32>
    %cst_85 = arith.constant 5.000000e-01 : f32
    %155 = vector.broadcast %cst_85 : f32 to vector<16x16xf32>
    %156 = arith.mulf %155, %154 : vector<16x16xf32>
    %c4_86 = arith.constant 4 : index
    %c0_87 = arith.constant 0 : index
    %c0_88 = arith.constant 0 : index
    %157 = vector.load %arg2[%c4_86, %c0_87, %c0_88] : memref<5x16x16xf32, #tpu.memory_space<vmem>>, vector<1x16x16xf32>
    %158 = vector.shape_cast %157 : vector<1x16x16xf32> to vector<16x16xf32>
    %159 = vector.shape_cast %156 : vector<16x16xf32> to vector<1x16x16xf32>
    tpu.vector_store %arg2[%c4_86, %c0_87, %c0_88], %159 {strides = array<i32>} : memref<5x16x16xf32, #tpu.memory_space<vmem>>, vector<1x16x16xf32>,
    return
  }
}

module attributes {stable_mosaic.version = 11 : i64} {
  func.func @_gconv_head_kernel(%arg0: memref<5x256x16xf32, #tpu.memory_space<vmem>>, %arg1: memref<5x16x16xf32, #tpu.memory_space<vmem>>, %arg2: memref<5x5x16xf32, #tpu.memory_space<vmem>>, %arg3: memref<5x4xf32, #tpu.memory_space<vmem>>, %arg4: memref<1x4xf32, #tpu.memory_space<vmem>>, %arg5: memref<4x5xf32, #tpu.memory_space<vmem>>, %arg6: memref<1x5xf32, #tpu.memory_space<vmem>>, %arg7: memref<400x8xf32, #tpu.memory_space<vmem>>, %arg8: memref<1x8xf32, #tpu.memory_space<vmem>>, %arg9: memref<8x2xf32, #tpu.memory_space<vmem>>, %arg10: memref<1x2xf32, #tpu.memory_space<vmem>>, %arg11: memref<2x2xf32, #tpu.memory_space<vmem>>) attributes {dimension_semantics = [], scalar_prefetch = 0 : i64, scratch_operands = 0 : i64, tpu.core_type = #tpu.core_type<tc>} {
    %c0 = arith.constant 0 : index
    %c0_0 = arith.constant 0 : index
    %c0_1 = arith.constant 0 : index
    %0 = vector.load %arg1[%c0, %c0_0, %c0_1] : memref<5x16x16xf32, #tpu.memory_space<vmem>>, vector<1x16x16xf32>
    %1 = vector.shape_cast %0 : vector<1x16x16xf32> to vector<16x16xf32>
    %c0_2 = arith.constant 0 : index
    %c0_3 = arith.constant 0 : index
    %c0_4 = arith.constant 0 : index
    %2 = vector.load %arg2[%c0_2, %c0_3, %c0_4] : memref<5x5x16xf32, #tpu.memory_space<vmem>>, vector<1x5x16xf32>
    %3 = vector.shape_cast %2 : vector<1x5x16xf32> to vector<5x16xf32>
    %4 = vector.shape_cast %1 : vector<16x16xf32> to vector<1x16x16xf32>
    %5 = vector.shape_cast %3 : vector<5x16xf32> to vector<5x1x16xf32>
    %6 = vector.broadcast %4 : vector<1x16x16xf32> to vector<5x16x16xf32>
    %7 = vector.broadcast %5 : vector<5x1x16xf32> to vector<5x16x16xf32>
    %8 = arith.mulf %6, %7 : vector<5x16x16xf32>
    %9 = vector.shape_cast %8 : vector<5x16x16xf32> to vector<80x16xf32>
    %cst = arith.constant dense<0.000000e+00> : vector<16x80xf32>
    %10 = tpu.matmul %1, %9, %cst {dimension_numbers = #tpu.dot_dimension_numbers<[1], [1], [0], [0], [0, 0, 1, 0], [], []>} : vector<16x16xf32>, vector<80x16xf32>, vector<16x80xf32> -> vector<16x80xf32>
    %c0_5 = arith.constant 0 : index
    %c0_6 = arith.constant 0 : index
    %c0_7 = arith.constant 0 : index
    %11 = vector.load %arg0[%c0_5, %c0_6, %c0_7] : memref<5x256x16xf32, #tpu.memory_space<vmem>>, vector<1x256x16xf32>
    %12 = vector.shape_cast %11 : vector<1x256x16xf32> to vector<256x16xf32>
    %cst_8 = arith.constant dense<0.000000e+00> : vector<256x80xf32>
    %13 = tpu.matmul %12, %10, %cst_8 {dimension_numbers = #tpu.dot_dimension_numbers<[1], [0], [0], [1], [0, 0, 1, 1], [], []>} : vector<256x16xf32>, vector<16x80xf32>, vector<256x80xf32> -> vector<256x80xf32>
    %cst_9 = arith.constant 0.000000e+00 : f32
    %14 = vector.broadcast %cst_9 : f32 to vector<256x80xf32>
    %15 = arith.maximumf %13, %14 : vector<256x80xf32>
    %16 = vector.extract_strided_slice %15 {offsets = [0, 0], sizes = [128, 80], strides = [1, 1]} : vector<256x80xf32> to vector<128x80xf32>
    %cst_10 = arith.constant dense<0.000000e+00> : vector<80xf32>
    %17 = vector.multi_reduction <add>, %16, %cst_10 [0] : vector<128x80xf32> to vector<80xf32>
    %18 = vector.shape_cast %17 : vector<80xf32> to vector<1x80xf32>
    %19 = vector.extract_strided_slice %15 {offsets = [128, 0], sizes = [128, 80], strides = [1, 1]} : vector<256x80xf32> to vector<128x80xf32>
    %cst_11 = arith.constant dense<0.000000e+00> : vector<80xf32>
    %20 = vector.multi_reduction <add>, %19, %cst_11 [0] : vector<128x80xf32> to vector<80xf32>
    %21 = vector.shape_cast %20 : vector<80xf32> to vector<1x80xf32>
    %22 = tpu.concatenate %18, %21 in 0 : vector<1x80xf32>, vector<1x80xf32> -> vector<2x80xf32>
    %cst_12 = arith.constant 0.00781246088 : f32
    %23 = vector.broadcast %cst_12 : f32 to vector<2x80xf32>
    %24 = arith.mulf %22, %23 : vector<2x80xf32>
    %cst_13 = arith.constant dense<0.000000e+00> : vector<2xf32>
    %25 = vector.multi_reduction <add>, %24, %cst_13 [1] : vector<2x80xf32> to vector<2xf32>
    %26 = vector.shape_cast %25 : vector<2xf32> to vector<2x1xf32>
    %cst_14 = arith.constant 8.000000e+01 : f32
    %27 = vector.broadcast %cst_14 : f32 to vector<2x1xf32>
    %28 = arith.divf %26, %27 : vector<2x1xf32>
    %c1 = arith.constant 1 : index
    %c0_15 = arith.constant 0 : index
    %c0_16 = arith.constant 0 : index
    %29 = vector.load %arg1[%c1, %c0_15, %c0_16] : memref<5x16x16xf32, #tpu.memory_space<vmem>>, vector<1x16x16xf32>
    %30 = vector.shape_cast %29 : vector<1x16x16xf32> to vector<16x16xf32>
    %c1_17 = arith.constant 1 : index
    %c0_18 = arith.constant 0 : index
    %c0_19 = arith.constant 0 : index
    %31 = vector.load %arg2[%c1_17, %c0_18, %c0_19] : memref<5x5x16xf32, #tpu.memory_space<vmem>>, vector<1x5x16xf32>
    %32 = vector.shape_cast %31 : vector<1x5x16xf32> to vector<5x16xf32>
    %33 = vector.shape_cast %30 : vector<16x16xf32> to vector<1x16x16xf32>
    %34 = vector.shape_cast %32 : vector<5x16xf32> to vector<5x1x16xf32>
    %35 = vector.broadcast %33 : vector<1x16x16xf32> to vector<5x16x16xf32>
    %36 = vector.broadcast %34 : vector<5x1x16xf32> to vector<5x16x16xf32>
    %37 = arith.mulf %35, %36 : vector<5x16x16xf32>
    %38 = vector.shape_cast %37 : vector<5x16x16xf32> to vector<80x16xf32>
    %cst_20 = arith.constant dense<0.000000e+00> : vector<16x80xf32>
    %39 = tpu.matmul %30, %38, %cst_20 {dimension_numbers = #tpu.dot_dimension_numbers<[1], [1], [0], [0], [0, 0, 1, 0], [], []>} : vector<16x16xf32>, vector<80x16xf32>, vector<16x80xf32> -> vector<16x80xf32>
    %c1_21 = arith.constant 1 : index
    %c0_22 = arith.constant 0 : index
    %c0_23 = arith.constant 0 : index
    %40 = vector.load %arg0[%c1_21, %c0_22, %c0_23] : memref<5x256x16xf32, #tpu.memory_space<vmem>>, vector<1x256x16xf32>
    %41 = vector.shape_cast %40 : vector<1x256x16xf32> to vector<256x16xf32>
    %cst_24 = arith.constant dense<0.000000e+00> : vector<256x80xf32>
    %42 = tpu.matmul %41, %39, %cst_24 {dimension_numbers = #tpu.dot_dimension_numbers<[1], [0], [0], [1], [0, 0, 1, 1], [], []>} : vector<256x16xf32>, vector<16x80xf32>, vector<256x80xf32> -> vector<256x80xf32>
    %cst_25 = arith.constant 0.000000e+00 : f32
    %43 = vector.broadcast %cst_25 : f32 to vector<256x80xf32>
    %44 = arith.maximumf %42, %43 : vector<256x80xf32>
    %45 = vector.extract_strided_slice %44 {offsets = [0, 0], sizes = [128, 80], strides = [1, 1]} : vector<256x80xf32> to vector<128x80xf32>
    %cst_26 = arith.constant dense<0.000000e+00> : vector<80xf32>
    %46 = vector.multi_reduction <add>, %45, %cst_26 [0] : vector<128x80xf32> to vector<80xf32>
    %47 = vector.shape_cast %46 : vector<80xf32> to vector<1x80xf32>
    %48 = vector.extract_strided_slice %44 {offsets = [128, 0], sizes = [128, 80], strides = [1, 1]} : vector<256x80xf32> to vector<128x80xf32>
    %cst_27 = arith.constant dense<0.000000e+00> : vector<80xf32>
    %49 = vector.multi_reduction <add>, %48, %cst_27 [0] : vector<128x80xf32> to vector<80xf32>
    %50 = vector.shape_cast %49 : vector<80xf32> to vector<1x80xf32>
    %51 = tpu.concatenate %47, %50 in 0 : vector<1x80xf32>, vector<1x80xf32> -> vector<2x80xf32>
    %cst_28 = arith.constant 0.00781246088 : f32
    %52 = vector.broadcast %cst_28 : f32 to vector<2x80xf32>
    %53 = arith.mulf %51, %52 : vector<2x80xf32>
    %cst_29 = arith.constant dense<0.000000e+00> : vector<2xf32>
    %54 = vector.multi_reduction <add>, %53, %cst_29 [1] : vector<2x80xf32> to vector<2xf32>
    %55 = vector.shape_cast %54 : vector<2xf32> to vector<2x1xf32>
    %cst_30 = arith.constant 8.000000e+01 : f32
    %56 = vector.broadcast %cst_30 : f32 to vector<2x1xf32>
    %57 = arith.divf %55, %56 : vector<2x1xf32>
    %c2 = arith.constant 2 : index
    %c0_31 = arith.constant 0 : index
    %c0_32 = arith.constant 0 : index
    %58 = vector.load %arg1[%c2, %c0_31, %c0_32] : memref<5x16x16xf32, #tpu.memory_space<vmem>>, vector<1x16x16xf32>
    %59 = vector.shape_cast %58 : vector<1x16x16xf32> to vector<16x16xf32>
    %c2_33 = arith.constant 2 : index
    %c0_34 = arith.constant 0 : index
    %c0_35 = arith.constant 0 : index
    %60 = vector.load %arg2[%c2_33, %c0_34, %c0_35] : memref<5x5x16xf32, #tpu.memory_space<vmem>>, vector<1x5x16xf32>
    %61 = vector.shape_cast %60 : vector<1x5x16xf32> to vector<5x16xf32>
    %62 = vector.shape_cast %59 : vector<16x16xf32> to vector<1x16x16xf32>
    %63 = vector.shape_cast %61 : vector<5x16xf32> to vector<5x1x16xf32>
    %64 = vector.broadcast %62 : vector<1x16x16xf32> to vector<5x16x16xf32>
    %65 = vector.broadcast %63 : vector<5x1x16xf32> to vector<5x16x16xf32>
    %66 = arith.mulf %64, %65 : vector<5x16x16xf32>
    %67 = vector.shape_cast %66 : vector<5x16x16xf32> to vector<80x16xf32>
    %cst_36 = arith.constant dense<0.000000e+00> : vector<16x80xf32>
    %68 = tpu.matmul %59, %67, %cst_36 {dimension_numbers = #tpu.dot_dimension_numbers<[1], [1], [0], [0], [0, 0, 1, 0], [], []>} : vector<16x16xf32>, vector<80x16xf32>, vector<16x80xf32> -> vector<16x80xf32>
    %c2_37 = arith.constant 2 : index
    %c0_38 = arith.constant 0 : index
    %c0_39 = arith.constant 0 : index
    %69 = vector.load %arg0[%c2_37, %c0_38, %c0_39] : memref<5x256x16xf32, #tpu.memory_space<vmem>>, vector<1x256x16xf32>
    %70 = vector.shape_cast %69 : vector<1x256x16xf32> to vector<256x16xf32>
    %cst_40 = arith.constant dense<0.000000e+00> : vector<256x80xf32>
    %71 = tpu.matmul %70, %68, %cst_40 {dimension_numbers = #tpu.dot_dimension_numbers<[1], [0], [0], [1], [0, 0, 1, 1], [], []>} : vector<256x16xf32>, vector<16x80xf32>, vector<256x80xf32> -> vector<256x80xf32>
    %cst_41 = arith.constant 0.000000e+00 : f32
    %72 = vector.broadcast %cst_41 : f32 to vector<256x80xf32>
    %73 = arith.maximumf %71, %72 : vector<256x80xf32>
    %74 = vector.extract_strided_slice %73 {offsets = [0, 0], sizes = [128, 80], strides = [1, 1]} : vector<256x80xf32> to vector<128x80xf32>
    %cst_42 = arith.constant dense<0.000000e+00> : vector<80xf32>
    %75 = vector.multi_reduction <add>, %74, %cst_42 [0] : vector<128x80xf32> to vector<80xf32>
    %76 = vector.shape_cast %75 : vector<80xf32> to vector<1x80xf32>
    %77 = vector.extract_strided_slice %73 {offsets = [128, 0], sizes = [128, 80], strides = [1, 1]} : vector<256x80xf32> to vector<128x80xf32>
    %cst_43 = arith.constant dense<0.000000e+00> : vector<80xf32>
    %78 = vector.multi_reduction <add>, %77, %cst_43 [0] : vector<128x80xf32> to vector<80xf32>
    %79 = vector.shape_cast %78 : vector<80xf32> to vector<1x80xf32>
    %80 = tpu.concatenate %76, %79 in 0 : vector<1x80xf32>, vector<1x80xf32> -> vector<2x80xf32>
    %cst_44 = arith.constant 0.00781246088 : f32
    %81 = vector.broadcast %cst_44 : f32 to vector<2x80xf32>
    %82 = arith.mulf %80, %81 : vector<2x80xf32>
    %cst_45 = arith.constant dense<0.000000e+00> : vector<2xf32>
    %83 = vector.multi_reduction <add>, %82, %cst_45 [1] : vector<2x80xf32> to vector<2xf32>
    %84 = vector.shape_cast %83 : vector<2xf32> to vector<2x1xf32>
    %cst_46 = arith.constant 8.000000e+01 : f32
    %85 = vector.broadcast %cst_46 : f32 to vector<2x1xf32>
    %86 = arith.divf %84, %85 : vector<2x1xf32>
    %c3 = arith.constant 3 : index
    %c0_47 = arith.constant 0 : index
    %c0_48 = arith.constant 0 : index
    %87 = vector.load %arg1[%c3, %c0_47, %c0_48] : memref<5x16x16xf32, #tpu.memory_space<vmem>>, vector<1x16x16xf32>
    %88 = vector.shape_cast %87 : vector<1x16x16xf32> to vector<16x16xf32>
    %c3_49 = arith.constant 3 : index
    %c0_50 = arith.constant 0 : index
    %c0_51 = arith.constant 0 : index
    %89 = vector.load %arg2[%c3_49, %c0_50, %c0_51] : memref<5x5x16xf32, #tpu.memory_space<vmem>>, vector<1x5x16xf32>
    %90 = vector.shape_cast %89 : vector<1x5x16xf32> to vector<5x16xf32>
    %91 = vector.shape_cast %88 : vector<16x16xf32> to vector<1x16x16xf32>
    %92 = vector.shape_cast %90 : vector<5x16xf32> to vector<5x1x16xf32>
    %93 = vector.broadcast %91 : vector<1x16x16xf32> to vector<5x16x16xf32>
    %94 = vector.broadcast %92 : vector<5x1x16xf32> to vector<5x16x16xf32>
    %95 = arith.mulf %93, %94 : vector<5x16x16xf32>
    %96 = vector.shape_cast %95 : vector<5x16x16xf32> to vector<80x16xf32>
    %cst_52 = arith.constant dense<0.000000e+00> : vector<16x80xf32>
    %97 = tpu.matmul %88, %96, %cst_52 {dimension_numbers = #tpu.dot_dimension_numbers<[1], [1], [0], [0], [0, 0, 1, 0], [], []>} : vector<16x16xf32>, vector<80x16xf32>, vector<16x80xf32> -> vector<16x80xf32>
    %c3_53 = arith.constant 3 : index
    %c0_54 = arith.constant 0 : index
    %c0_55 = arith.constant 0 : index
    %98 = vector.load %arg0[%c3_53, %c0_54, %c0_55] : memref<5x256x16xf32, #tpu.memory_space<vmem>>, vector<1x256x16xf32>
    %99 = vector.shape_cast %98 : vector<1x256x16xf32> to vector<256x16xf32>
    %cst_56 = arith.constant dense<0.000000e+00> : vector<256x80xf32>
    %100 = tpu.matmul %99, %97, %cst_56 {dimension_numbers = #tpu.dot_dimension_numbers<[1], [0], [0], [1], [0, 0, 1, 1], [], []>} : vector<256x16xf32>, vector<16x80xf32>, vector<256x80xf32> -> vector<256x80xf32>
    %cst_57 = arith.constant 0.000000e+00 : f32
    %101 = vector.broadcast %cst_57 : f32 to vector<256x80xf32>
    %102 = arith.maximumf %100, %101 : vector<256x80xf32>
    %103 = vector.extract_strided_slice %102 {offsets = [0, 0], sizes = [128, 80], strides = [1, 1]} : vector<256x80xf32> to vector<128x80xf32>
    %cst_58 = arith.constant dense<0.000000e+00> : vector<80xf32>
    %104 = vector.multi_reduction <add>, %103, %cst_58 [0] : vector<128x80xf32> to vector<80xf32>
    %105 = vector.shape_cast %104 : vector<80xf32> to vector<1x80xf32>
    %106 = vector.extract_strided_slice %102 {offsets = [128, 0], sizes = [128, 80], strides = [1, 1]} : vector<256x80xf32> to vector<128x80xf32>
    %cst_59 = arith.constant dense<0.000000e+00> : vector<80xf32>
    %107 = vector.multi_reduction <add>, %106, %cst_59 [0] : vector<128x80xf32> to vector<80xf32>
    %108 = vector.shape_cast %107 : vector<80xf32> to vector<1x80xf32>
    %109 = tpu.concatenate %105, %108 in 0 : vector<1x80xf32>, vector<1x80xf32> -> vector<2x80xf32>
    %cst_60 = arith.constant 0.00781246088 : f32
    %110 = vector.broadcast %cst_60 : f32 to vector<2x80xf32>
    %111 = arith.mulf %109, %110 : vector<2x80xf32>
    %cst_61 = arith.constant dense<0.000000e+00> : vector<2xf32>
    %112 = vector.multi_reduction <add>, %111, %cst_61 [1] : vector<2x80xf32> to vector<2xf32>
    %113 = vector.shape_cast %112 : vector<2xf32> to vector<2x1xf32>
    %cst_62 = arith.constant 8.000000e+01 : f32
    %114 = vector.broadcast %cst_62 : f32 to vector<2x1xf32>
    %115 = arith.divf %113, %114 : vector<2x1xf32>
    %c4 = arith.constant 4 : index
    %c0_63 = arith.constant 0 : index
    %c0_64 = arith.constant 0 : index
    %116 = vector.load %arg1[%c4, %c0_63, %c0_64] : memref<5x16x16xf32, #tpu.memory_space<vmem>>, vector<1x16x16xf32>
    %117 = vector.shape_cast %116 : vector<1x16x16xf32> to vector<16x16xf32>
    %c4_65 = arith.constant 4 : index
    %c0_66 = arith.constant 0 : index
    %c0_67 = arith.constant 0 : index
    %118 = vector.load %arg2[%c4_65, %c0_66, %c0_67] : memref<5x5x16xf32, #tpu.memory_space<vmem>>, vector<1x5x16xf32>
    %119 = vector.shape_cast %118 : vector<1x5x16xf32> to vector<5x16xf32>
    %120 = vector.shape_cast %117 : vector<16x16xf32> to vector<1x16x16xf32>
    %121 = vector.shape_cast %119 : vector<5x16xf32> to vector<5x1x16xf32>
    %122 = vector.broadcast %120 : vector<1x16x16xf32> to vector<5x16x16xf32>
    %123 = vector.broadcast %121 : vector<5x1x16xf32> to vector<5x16x16xf32>
    %124 = arith.mulf %122, %123 : vector<5x16x16xf32>
    %125 = vector.shape_cast %124 : vector<5x16x16xf32> to vector<80x16xf32>
    %cst_68 = arith.constant dense<0.000000e+00> : vector<16x80xf32>
    %126 = tpu.matmul %117, %125, %cst_68 {dimension_numbers = #tpu.dot_dimension_numbers<[1], [1], [0], [0], [0, 0, 1, 0], [], []>} : vector<16x16xf32>, vector<80x16xf32>, vector<16x80xf32> -> vector<16x80xf32>
    %c4_69 = arith.constant 4 : index
    %c0_70 = arith.constant 0 : index
    %c0_71 = arith.constant 0 : index
    %127 = vector.load %arg0[%c4_69, %c0_70, %c0_71] : memref<5x256x16xf32, #tpu.memory_space<vmem>>, vector<1x256x16xf32>
    %128 = vector.shape_cast %127 : vector<1x256x16xf32> to vector<256x16xf32>
    %cst_72 = arith.constant dense<0.000000e+00> : vector<256x80xf32>
    %129 = tpu.matmul %128, %126, %cst_72 {dimension_numbers = #tpu.dot_dimension_numbers<[1], [0], [0], [1], [0, 0, 1, 1], [], []>} : vector<256x16xf32>, vector<16x80xf32>, vector<256x80xf32> -> vector<256x80xf32>
    %cst_73 = arith.constant 0.000000e+00 : f32
    %130 = vector.broadcast %cst_73 : f32 to vector<256x80xf32>
    %131 = arith.maximumf %129, %130 : vector<256x80xf32>
    %132 = vector.extract_strided_slice %131 {offsets = [0, 0], sizes = [128, 80], strides = [1, 1]} : vector<256x80xf32> to vector<128x80xf32>
    %cst_74 = arith.constant dense<0.000000e+00> : vector<80xf32>
    %133 = vector.multi_reduction <add>, %132, %cst_74 [0] : vector<128x80xf32> to vector<80xf32>
    %134 = vector.shape_cast %133 : vector<80xf32> to vector<1x80xf32>
    %135 = vector.extract_strided_slice %131 {offsets = [128, 0], sizes = [128, 80], strides = [1, 1]} : vector<256x80xf32> to vector<128x80xf32>
    %cst_75 = arith.constant dense<0.000000e+00> : vector<80xf32>
    %136 = vector.multi_reduction <add>, %135, %cst_75 [0] : vector<128x80xf32> to vector<80xf32>
    %137 = vector.shape_cast %136 : vector<80xf32> to vector<1x80xf32>
    %138 = tpu.concatenate %134, %137 in 0 : vector<1x80xf32>, vector<1x80xf32> -> vector<2x80xf32>
    %cst_76 = arith.constant 0.00781246088 : f32
    %139 = vector.broadcast %cst_76 : f32 to vector<2x80xf32>
    %140 = arith.mulf %138, %139 : vector<2x80xf32>
    %cst_77 = arith.constant dense<0.000000e+00> : vector<2xf32>
    %141 = vector.multi_reduction <add>, %140, %cst_77 [1] : vector<2x80xf32> to vector<2xf32>
    %142 = vector.shape_cast %141 : vector<2xf32> to vector<2x1xf32>
    %cst_78 = arith.constant 8.000000e+01 : f32
    %143 = vector.broadcast %cst_78 : f32 to vector<2x1xf32>
    %144 = arith.divf %142, %143 : vector<2x1xf32>
    %145 = tpu.concatenate %28, %57, %86, %115, %144 in 1 : vector<2x1xf32>, vector<2x1xf32>, vector<2x1xf32>, vector<2x1xf32>, vector<2x1xf32> -> vector<2x5xf32>
    %c0_79 = arith.constant 0 : index
    %c0_80 = arith.constant 0 : index
    %146 = vector.load %arg3[%c0_79, %c0_80] : memref<5x4xf32, #tpu.memory_space<vmem>>, vector<5x4xf32>
    %cst_81 = arith.constant dense<0.000000e+00> : vector<2x4xf32>
    %147 = tpu.matmul %145, %146, %cst_81 {dimension_numbers = #tpu.dot_dimension_numbers<[1], [0], [0], [1], [0, 0, 1, 1], [], []>} : vector<2x5xf32>, vector<5x4xf32>, vector<2x4xf32> -> vector<2x4xf32>
    %c0_82 = arith.constant 0 : index
    %c0_83 = arith.constant 0 : index
    %148 = vector.load %arg4[%c0_82, %c0_83] : memref<1x4xf32, #tpu.memory_space<vmem>>, vector<1x4xf32>
    %149 = vector.broadcast %148 : vector<1x4xf32> to vector<2x4xf32>
    %150 = arith.addf %147, %149 : vector<2x4xf32>
    %151 = math.tanh %150 : vector<2x4xf32>
    %cst_84 = arith.constant 0.000000e+00 : f32
    %152 = vector.broadcast %cst_84 : f32 to vector<2x4xf32>
    %153 = arith.maximumf %151, %152 : vector<2x4xf32>
    %c0_85 = arith.constant 0 : index
    %c0_86 = arith.constant 0 : index
    %154 = vector.load %arg5[%c0_85, %c0_86] : memref<4x5xf32, #tpu.memory_space<vmem>>, vector<4x5xf32>
    %cst_87 = arith.constant dense<0.000000e+00> : vector<2x5xf32>
    %155 = tpu.matmul %153, %154, %cst_87 {dimension_numbers = #tpu.dot_dimension_numbers<[1], [0], [0], [1], [0, 0, 1, 1], [], []>} : vector<2x4xf32>, vector<4x5xf32>, vector<2x5xf32> -> vector<2x5xf32>
    %c0_88 = arith.constant 0 : index
    %c0_89 = arith.constant 0 : index
    %156 = vector.load %arg6[%c0_88, %c0_89] : memref<1x5xf32, #tpu.memory_space<vmem>>, vector<1x5xf32>
    %157 = vector.broadcast %156 : vector<1x5xf32> to vector<2x5xf32>
    %158 = arith.addf %155, %157 : vector<2x5xf32>
    %cst_90 = arith.constant dense<0.000000e+00> : vector<5xf32>
    %159 = vector.multi_reduction <add>, %158, %cst_90 [0] : vector<2x5xf32> to vector<5xf32>
    %160 = vector.shape_cast %159 : vector<5xf32> to vector<1x5xf32>
    %cst_91 = arith.constant 2.000000e+00 : f32
    %161 = vector.broadcast %cst_91 : f32 to vector<1x5xf32>
    %162 = arith.divf %160, %161 : vector<1x5xf32>
    %163 = vector.extract_strided_slice %162 {offsets = [0, 0], sizes = [1, 1], strides = [1, 1]} : vector<1x5xf32> to vector<1x1xf32>
    %164 = vector.broadcast %163 : vector<1x1xf32> to vector<2x80xf32>
    %165 = arith.mulf %24, %164 : vector<2x80xf32>
    %166 = vector.extract_strided_slice %162 {offsets = [0, 1], sizes = [1, 1], strides = [1, 1]} : vector<1x5xf32> to vector<1x1xf32>
    %167 = vector.broadcast %166 : vector<1x1xf32> to vector<2x80xf32>
    %168 = arith.mulf %53, %167 : vector<2x80xf32>
    %169 = vector.extract_strided_slice %162 {offsets = [0, 2], sizes = [1, 1], strides = [1, 1]} : vector<1x5xf32> to vector<1x1xf32>
    %170 = vector.broadcast %169 : vector<1x1xf32> to vector<2x80xf32>
    %171 = arith.mulf %82, %170 : vector<2x80xf32>
    %172 = vector.extract_strided_slice %162 {offsets = [0, 3], sizes = [1, 1], strides = [1, 1]} : vector<1x5xf32> to vector<1x1xf32>
    %173 = vector.broadcast %172 : vector<1x1xf32> to vector<2x80xf32>
    %174 = arith.mulf %111, %173 : vector<2x80xf32>
    %175 = vector.extract_strided_slice %162 {offsets = [0, 4], sizes = [1, 1], strides = [1, 1]} : vector<1x5xf32> to vector<1x1xf32>
    %176 = vector.broadcast %175 : vector<1x1xf32> to vector<2x80xf32>
    %177 = arith.mulf %140, %176 : vector<2x80xf32>
    %178 = tpu.concatenate %165, %168, %171, %174, %177 in 1 : vector<2x80xf32>, vector<2x80xf32>, vector<2x80xf32>, vector<2x80xf32>, vector<2x80xf32> -> vector<2x400xf32>
    %c0_92 = arith.constant 0 : index
    %c0_93 = arith.constant 0 : index
    %179 = vector.load %arg7[%c0_92, %c0_93] : memref<400x8xf32, #tpu.memory_space<vmem>>, vector<400x8xf32>
    %cst_94 = arith.constant dense<0.000000e+00> : vector<2x8xf32>
    %180 = tpu.matmul %178, %179, %cst_94 {dimension_numbers = #tpu.dot_dimension_numbers<[1], [0], [0], [1], [0, 0, 1, 1], [], []>} : vector<2x400xf32>, vector<400x8xf32>, vector<2x8xf32> -> vector<2x8xf32>
    %c0_95 = arith.constant 0 : index
    %c0_96 = arith.constant 0 : index
    %181 = vector.load %arg8[%c0_95, %c0_96] : memref<1x8xf32, #tpu.memory_space<vmem>>, vector<1x8xf32>
    %182 = vector.broadcast %181 : vector<1x8xf32> to vector<2x8xf32>
    %183 = arith.addf %180, %182 : vector<2x8xf32>
    %184 = math.tanh %183 : vector<2x8xf32>
    %c0_97 = arith.constant 0 : index
    %c0_98 = arith.constant 0 : index
    %185 = vector.load %arg9[%c0_97, %c0_98] : memref<8x2xf32, #tpu.memory_space<vmem>>, vector<8x2xf32>
    %cst_99 = arith.constant dense<0.000000e+00> : vector<2x2xf32>
    %186 = tpu.matmul %184, %185, %cst_99 {dimension_numbers = #tpu.dot_dimension_numbers<[1], [0], [0], [1], [0, 0, 1, 1], [], []>} : vector<2x8xf32>, vector<8x2xf32>, vector<2x2xf32> -> vector<2x2xf32>
    %c0_100 = arith.constant 0 : index
    %c0_101 = arith.constant 0 : index
    %187 = vector.load %arg10[%c0_100, %c0_101] : memref<1x2xf32, #tpu.memory_space<vmem>>, vector<1x2xf32>
    %188 = vector.broadcast %187 : vector<1x2xf32> to vector<2x2xf32>
    %189 = arith.addf %186, %188 : vector<2x2xf32>
    %cst_102 = arith.constant dense<0xFF800000> : vector<2xf32>
    %190 = vector.multi_reduction <maximumf>, %189, %cst_102 [1] : vector<2x2xf32> to vector<2xf32>
    %191 = vector.shape_cast %190 : vector<2xf32> to vector<2x1xf32>
    %192 = vector.broadcast %191 : vector<2x1xf32> to vector<2x2xf32>
    %193 = arith.subf %189, %192 : vector<2x2xf32>
    %194 = math.exp %193 : vector<2x2xf32>
    %cst_103 = arith.constant dense<0.000000e+00> : vector<2xf32>
    %195 = vector.multi_reduction <add>, %194, %cst_103 [1] : vector<2x2xf32> to vector<2xf32>
    %196 = vector.shape_cast %195 : vector<2xf32> to vector<2x1xf32>
    %197 = vector.broadcast %196 : vector<2x1xf32> to vector<2x2xf32>
    %198 = arith.divf %194, %197 : vector<2x2xf32>
    %c0_104 = arith.constant 0 : index
    %c0_105 = arith.constant 0 : index
    %199 = vector.load %arg11[%c0_104, %c0_105] : memref<2x2xf32, #tpu.memory_space<vmem>>, vector<2x2xf32>
    tpu.vector_store %arg11[%c0_104, %c0_105], %198 {strides = array<i32>} : memref<2x2xf32, #tpu.memory_space<vmem>>, vector<2x2xf32>,
    return
  }
}

</mosaic_0001>

<llo_original>
// kernel: multi_graph_forward.2
$region0: #{multi_graph_forward.2}
  #allocation0 [shape = 'u32[]', space=smem, size = 0x4, offset = 0x4, fixed_abs, tag = 'smem constant byte address 0x4 - core index']
  #allocation1 [shape = 'u32[72,128]{1,0:T(1,128)}', space=vmem, size = 0x9000, scoped, tag = 'internal scratch']
  %s0 = inlined_call_operand.vmem [shape: f32[5,2,16,128], index: 0, kind: input, shape index: {}]
  %s1 = inlined_call_operand.vmem [shape: f32[5,128,128], index: 1, kind: input, shape index: {}]
  %s2 = inlined_call_operand.hbm [shape: f32[5,16,16], index: 2, kind: output, shape index: {}]
  %s3 = sld [smem:[#allocation0]]
  $region18: #{multi_graph_forward.2} parent=0
    _
  %s5 = ssub.s32 1, %s3
  %s6 = scalar_select 0, %s5, %s3
  $region1: #{multi_graph_forward.2} parent=0
    #allocation2 [shape = 'u8[40960]{0}', space=vmem, size = 0xa000, scoped, tag = 'output window, operand 0, single buffered']
    #allocation3 [shape = 's32[1]{0}', space=sflag, size = 0x4, scoped, tag = 'scoped memory for multi_graph_forward.2']
    %7 = vsyncpa [#allocation3], 0
    // Predicated region
    $region2: #{multi_graph_forward.2} parent=1 // pred_check
      _
    $region3: #{multi_graph_forward.2} parent=1 // pred_check_branch
      %9 = sbr.rel (0) target = $region5
    $region4: #{multi_graph_forward.2} parent=1 // pred_region
      _
    $region5: #{multi_graph_forward.2} parent=1 // pred_fallthru
      _
    // Predicated region
    $region6: #{multi_graph_forward.2} parent=1 // pred_check
      _
    $region7: #{multi_graph_forward.2} parent=1 // pred_check_branch
      %11 = sbr.rel (0) target = $region9
    $region8: #{multi_graph_forward.2} parent=1 // pred_region
      _
    $region9: #{multi_graph_forward.2} parent=1 // pred_fallthru
      _
    %v12 = vld [vmem:[%s0] sm:$0xff]
    %v13 = vld [vmem:[%s0 + $0x8] sm:$0xff]
    %v14 = vld [vmem:[%s0 + $0x10] sm:$0xff]
    %v15 = vld [vmem:[%s0 + $0x18] sm:$0xff]
    %v16 = vld [vmem:[%s1] sm:$0xff]
    %v17 = vld [vmem:[%s1 + $0x8] sm:$0xff]
    %v18 = vld [vmem:[%s1 + $0x10] sm:$0xff]
    %v19 = vld [vmem:[%s1 + $0x18] sm:$0xff]
    %v20 = vld [vmem:[%s1 + $0x20] sm:$0xff]
    %v21 = vld [vmem:[%s1 + $0x28] sm:$0xff]
    %v22 = vld [vmem:[%s1 + $0x30] sm:$0xff]
    %v23 = vld [vmem:[%s1 + $0x38] sm:$0xff]
    %v24 = vld [vmem:[%s1 + $0x40] sm:$0xff]
    %v25 = vld [vmem:[%s1 + $0x48] sm:$0xff]
    %v26 = vld [vmem:[%s1 + $0x50] sm:$0xff]
    %v27 = vld [vmem:[%s1 + $0x58] sm:$0xff]
    %v28 = vld [vmem:[%s1 + $0x60] sm:$0xff]
    %v29 = vld [vmem:[%s1 + $0x68] sm:$0xff]
    %v30 = vld [vmem:[%s1 + $0x70] sm:$0xff]
    %v31 = vld [vmem:[%s1 + $0x78] sm:$0xff]
    %32 = vmatpush.msra.mxu0 %v31
    %33 = vmatpush.msra.mxu0 %v30
    %34 = vmatpush.msra.mxu0 %v29
    %35 = vmatpush.msra.mxu0 %v28
    %36 = vmatpush.msra.mxu0 %v27
    %37 = vmatpush.msra.mxu0 %v26
    %38 = vmatpush.msra.mxu0 %v25
    %39 = vmatpush.msra.mxu0 %v24
    %40 = vmatpush.msra.mxu0 %v23
    %41 = vmatpush.msra.mxu0 %v22
    %42 = vmatpush.msra.mxu0 %v21
    %43 = vmatpush.msra.mxu0 %v20
    %44 = vmatpush.msra.mxu0 %v19
    %45 = vmatpush.msra.mxu0 %v18
    %46 = vmatpush.msra.mxu0 %v17
    %47 = vmatpush.msra.mxu0 %v16
    %48 = vmatmul.f32.gmra.mxu0 %v12
    %v49 = vpop.f32.mrf.mxu0
    %v50 = vadd.f32 0.0, %v49
    %51 = vmatmul.f32.gmra.mxu0 %v13
    %v52 = vpop.f32.mrf.mxu0
    %v53 = vadd.f32 0.0, %v52
    %54 = vmatmul.f32.gmra.mxu0 %v14
    %v55 = vpop.f32.mrf.mxu0
    %v56 = vadd.f32 0.0, %v55
    %57 = vmatmul.f32.gmra.mxu0 %v15
    %v58 = vpop.f32.mrf.mxu0
    %v59 = vadd.f32 0.0, %v58
    %60 = vdwg.mxu0
    %61 = vmatpush.xpose.msra.mxu0 0.0
    %62 = vmatpush.xpose.msra.mxu0 0.0
    %63 = vmatpush.xpose.msra.mxu0 0.0
    %64 = vmatpush.xpose.msra.mxu0 0.0
    %65 = vmatpush.xpose.msra.mxu0 0.0
    %66 = vmatpush.xpose.msra.mxu0 0.0
    %67 = vmatpush.xpose.msra.mxu0 0.0
    %68 = vmatpush.xpose.msra.mxu0 0.0
    %69 = vmatpush.xpose.msra.mxu0 0.0
    %70 = vmatpush.xpose.msra.mxu0 0.0
    %71 = vmatpush.xpose.msra.mxu0 0.0
    %72 = vmatpush.xpose.msra.mxu0 0.0
    %73 = vmatpush.xpose.msra.mxu0 0.0
    %74 = vmatpush.xpose.msra.mxu0 0.0
    %75 = vmatpush.xpose.msra.mxu0 %v13
    %76 = vmatpush.xpose.msra.mxu0 %v12
    %77 = vmatmul.f32.gmra.mxu0 %v50
    %v78 = vpop.f32.mrf.mxu0
    %v79 = vadd.f32 0.0, %v78
    %80 = vmatmul.f32.gmra.mxu0 %v53
    %v81 = vpop.f32.mrf.mxu0
    %v82 = vadd.f32 0.0, %v81
    %83 = vdwg.mxu0
    %84 = vmatpush.xpose.msra.mxu0 0.0
    %85 = vmatpush.xpose.msra.mxu0 0.0
    %86 = vmatpush.xpose.msra.mxu0 0.0
    %87 = vmatpush.xpose.msra.mxu0 0.0
    %88 = vmatpush.xpose.msra.mxu0 0.0
    %89 = vmatpush.xpose.msra.mxu0 0.0
    %90 = vmatpush.xpose.msra.mxu0 0.0
    %91 = vmatpush.xpose.msra.mxu0 0.0
    %92 = vmatpush.xpose.msra.mxu0 0.0
    %93 = vmatpush.xpose.msra.mxu0 0.0
    %94 = vmatpush.xpose.msra.mxu0 0.0
    %95 = vmatpush.xpose.msra.mxu0 0.0
    %96 = vmatpush.xpose.msra.mxu0 0.0
    %97 = vmatpush.xpose.msra.mxu0 0.0
    %98 = vmatpush.xpose.msra.mxu0 %v15
    %99 = vmatpush.xpose.msra.mxu0 %v14
    %100 = vmatmul.f32.gmra.mxu0 %v56
    %v101 = vpop.f32.mrf.mxu0
    %v102 = vadd.f32 0.0, %v101
    %103 = vmatmul.f32.gmra.mxu0 %v59
    %v104 = vpop.f32.mrf.mxu0
    %v105 = vadd.f32 0.0, %v104
    %106 = vdwg.mxu0
    %vm107 = vcmp.gt.f32.partialorder %v79, 0.0
    %vm108 = vcmp.gt.f32.partialorder %v82, 0.0
    %vm109 = vcmp.gt.f32.partialorder %v102, 0.0
    %vm110 = vcmp.gt.f32.partialorder %v105, 0.0
    %v111 = vmul.f32 %v79, 0.2
    %v112 = vmul.f32 %v82, 0.2
    %v113 = vmul.f32 %v102, 0.2
    %v114 = vmul.f32 %v105, 0.2
    %v115 = vsel %vm107, %v79, %v111
    %v116 = vsel %vm108, %v82, %v112
    %v117 = vsel %vm109, %v102, %v113
    %v118 = vsel %vm110, %v105, %v114
    %vm119 = vcmask 130048
    %v120 = vsel %vm119, %v115, -inf
    %121 = vmax.xlane.f32.xlu0 %v120
    %v122 = vpop.xlane.xlu0 %121
    %v123 = vsel %vm119, %v116, -inf
    %124 = vmax.xlane.f32.xlu0 %v123
    %v125 = vpop.xlane.xlu0 %124
    %v126 = vsel %vm119, %v117, -inf
    %127 = vmax.xlane.f32.xlu0 %v126
    %v128 = vpop.xlane.xlu0 %127
    %v129 = vsel %vm119, %v118, -inf
    %130 = vmax.xlane.f32.xlu0 %v129
    %v131 = vpop.xlane.xlu0 %130
    %v132 = vsub.f32 %v115, %v122
    %v133 = vsub.f32 %v116, %v125
    %v134 = vsub.f32 %v117, %v128
    %v135 = vsub.f32 %v118, %v131
    %v136 = vmul.f32 %v132, 1.442695
    %v137 = vpow.pop %v136
    %v138 = vmul.f32 %v133, 1.442695
    %v139 = vpow.pop %v138
    %v140 = vmul.f32 %v134, 1.442695
    %v141 = vpow.pop %v140
    %v142 = vmul.f32 %v135, 1.442695
    %v143 = vpow.pop %v142
    %v144 = vsel %vm119, %v137, 0.0
    %145 = vadd.xlane.f32.xlu0 %v144
    %v146 = vpop.xlane.xlu0 %145
    %v147 = vsel %vm119, %v139, 0.0
    %148 = vadd.xlane.f32.xlu0 %v147
    %v149 = vpop.xlane.xlu0 %148
    %v150 = vsel %vm119, %v141, 0.0
    %151 = vadd.xlane.f32.xlu0 %v150
    %v152 = vpop.xlane.xlu0 %151
    %v153 = vsel %vm119, %v143, 0.0
    %154 = vadd.xlane.f32.xlu0 %v153
    %v155 = vpop.xlane.xlu0 %154
    %v156 = vrcp.pop %v146
    %v157 = vmul.f32 %v146, %v156
    %v158 = vsub.f32 1.0, %v157
    %v159 = vmul.f32 %v156, %v158
    %v160 = vadd.f32 %v156, %v159
    %vm161 = vweird.f32 %v146
    %vm162 = vweird.f32 %v156
    %vm163 = vmor %vm161, %vm162
    %v164 = vsel %vm163, %v156, %v160
    %v165 = vand.u32 2147483647, %v146
    %vm166 = vcmp.eq.f32.partialorder %v165, 8.507059e+37
    %v167 = vand.u32 %v146, 2147483648
    %v168 = vor.u32 1.1754944e-38, %v167
    %v169 = vsel %vm166, %v168, %v164
    %v170 = vmul.f32 %v137, %v169
    %v171 = vrcp.pop %v149
    %v172 = vmul.f32 %v149, %v171
    %v173 = vsub.f32 1.0, %v172
    %v174 = vmul.f32 %v171, %v173
    %v175 = vadd.f32 %v171, %v174
    %vm176 = vweird.f32 %v149
    %vm177 = vweird.f32 %v171
    %vm178 = vmor %vm176, %vm177
    %v179 = vsel %vm178, %v171, %v175
    %v180 = vand.u32 2147483647, %v149
    %vm181 = vcmp.eq.f32.partialorder %v180, 8.507059e+37
    %v182 = vand.u32 %v149, 2147483648
    %v183 = vor.u32 1.1754944e-38, %v182
    %v184 = vsel %vm181, %v183, %v179
    %v185 = vmul.f32 %v139, %v184
    %v186 = vrcp.pop %v152
    %v187 = vmul.f32 %v152, %v186
    %v188 = vsub.f32 1.0, %v187
    %v189 = vmul.f32 %v186, %v188
    %v190 = vadd.f32 %v186, %v189
    %vm191 = vweird.f32 %v152
    %vm192 = vweird.f32 %v186
    %vm193 = vmor %vm191, %vm192
    %v194 = vsel %vm193, %v186, %v190
    %v195 = vand.u32 2147483647, %v152
    %vm196 = vcmp.eq.f32.partialorder %v195, 8.507059e+37
    %v197 = vand.u32 %v152, 2147483648
    %v198 = vor.u32 1.1754944e-38, %v197
    %v199 = vsel %vm196, %v198, %v194
    %v200 = vmul.f32 %v141, %v199
    %v201 = vrcp.pop %v155
    %v202 = vmul.f32 %v155, %v201
    %v203 = vsub.f32 1.0, %v202
    %v204 = vmul.f32 %v201, %v203
    %v205 = vadd.f32 %v201, %v204
    %vm206 = vweird.f32 %v155
    %vm207 = vweird.f32 %v201
    %vm208 = vmor %vm206, %vm207
    %v209 = vsel %vm208, %v201, %v205
    %v210 = vand.u32 2147483647, %v155
    %vm211 = vcmp.eq.f32.partialorder %v210, 8.507059e+37
    %v212 = vand.u32 %v155, 2147483648
    %v213 = vor.u32 1.1754944e-38, %v212
    %v214 = vsel %vm211, %v213, %v209
    %v215 = vmul.f32 %v143, %v214
    %v216 = vsel %vm119, %v170, 0.0
    %v217 = vsel %vm119, %v200, 0.0
    %v218 = vadd.f32 %v216, %v217
    %v219 = vsel %vm119, %v185, 0.0
    %v220 = vsel %vm119, %v215, 0.0
    %v221 = vadd.f32 %v219, %v220
    %v222 = vrcp.pop 2.0
    %v223 = vmul.f32 2.0, %v222
    %v224 = vsub.f32 1.0, %v223
    %v225 = vmul.f32 %v222, %v224
    %v226 = vadd.f32 %v222, %v225
    %vm227 = vweird.f32 %v222
    %v228 = vsel %vm227, %v222, %v226
    %v229 = vmul.f32 %v218, %v228
    %v230 = vmul.f32 %v221, %v228
    %231 = vxpose.xlu0.b32.start [1/16] %v229, 128
    %232 = vxpose.xlu0.b32.cont [2/16] %v230, 128
    %233 = vxpose.xlu0.b32.cont [3/16] 0.0, 128
    %234 = vxpose.xlu0.b32.cont [4/16] 0.0, 128
    %235 = vxpose.xlu0.b32.cont [5/16] 0.0, 128
    %236 = vxpose.xlu0.b32.cont [6/16] 0.0, 128
    %237 = vxpose.xlu0.b32.cont [7/16] 0.0, 128
    %238 = vxpose.xlu0.b32.cont [8/16] 0.0, 128
    %239 = vxpose.xlu0.b32.cont [9/16] 0.0, 128
    %240 = vxpose.xlu0.b32.cont [10/16] 0.0, 128
    %241 = vxpose.xlu0.b32.cont [11/16] 0.0, 128
    %242 = vxpose.xlu0.b32.cont [12/16] 0.0, 128
    %243 = vxpose.xlu0.b32.cont [13/16] 0.0, 128
    %244 = vxpose.xlu0.b32.cont [14/16] 0.0, 128
    %245 = vxpose.xlu0.b32.cont [15/16] 0.0, 128
    %246 = vxpose.xlu0.b32.end [16/16] 0.0, 128
    %v247 = vpop.trf.xlu0
    %v248 = vpop.trf.xlu0
    %v249 = vpop.trf.xlu0
    %v250 = vpop.trf.xlu0
    %v251 = vpop.trf.xlu0
    %v252 = vpop.trf.xlu0
    %v253 = vpop.trf.xlu0
    %v254 = vpop.trf.xlu0
    %v255 = vpop.trf.xlu0
    %v256 = vpop.trf.xlu0
    %v257 = vpop.trf.xlu0
    %v258 = vpop.trf.xlu0
    %v259 = vpop.trf.xlu0
    %v260 = vpop.trf.xlu0
    %v261 = vpop.trf.xlu0
    %v262 = vpop.trf.xlu0
    %v263 = vadd.f32 %v229, %v247
    %v264 = vadd.f32 %v230, %v248
    %v265 = vmul.f32 %v263, 0.5
    %v266 = vmul.f32 %v264, 0.5
    %267 = vst.msk [vmem:[#allocation2] sm:$0xff] %vm119, %v265
    %268 = vst.msk [vmem:[#allocation2 + $0x8] sm:$0xff] %vm119, %v266
    %s269 = scalar_lea.vmem %s0, 32
    %v270 = vld [vmem:[%s269] sm:$0xff]
    %v271 = vld [vmem:[%s269 + $0x8] sm:$0xff]
    %v272 = vld [vmem:[%s269 + $0x10] sm:$0xff]
    %v273 = vld [vmem:[%s269 + $0x18] sm:$0xff]
    %s274 = scalar_lea.vmem %s1, 128
    %v275 = vld [vmem:[%s274] sm:$0xff]
    %v276 = vld [vmem:[%s274 + $0x8] sm:$0xff]
    %v277 = vld [vmem:[%s274 + $0x10] sm:$0xff]
    %v278 = vld [vmem:[%s274 + $0x18] sm:$0xff]
    %v279 = vld [vmem:[%s274 + $0x20] sm:$0xff]
    %v280 = vld [vmem:[%s274 + $0x28] sm:$0xff]
    %v281 = vld [vmem:[%s274 + $0x30] sm:$0xff]
    %v282 = vld [vmem:[%s274 + $0x38] sm:$0xff]
    %v283 = vld [vmem:[%s274 + $0x40] sm:$0xff]
    %v284 = vld [vmem:[%s274 + $0x48] sm:$0xff]
    %v285 = vld [vmem:[%s274 + $0x50] sm:$0xff]
    %v286 = vld [vmem:[%s274 + $0x58] sm:$0xff]
    %v287 = vld [vmem:[%s274 + $0x60] sm:$0xff]
    %v288 = vld [vmem:[%s274 + $0x68] sm:$0xff]
    %v289 = vld [vmem:[%s274 + $0x70] sm:$0xff]
    %v290 = vld [vmem:[%s274 + $0x78] sm:$0xff]
    %291 = vmatpush.msra.mxu0 %v290
    %292 = vmatpush.msra.mxu0 %v289
    %293 = vmatpush.msra.mxu0 %v288
    %294 = vmatpush.msra.mxu0 %v287
    %295 = vmatpush.msra.mxu0 %v286
    %296 = vmatpush.msra.mxu0 %v285
    %297 = vmatpush.msra.mxu0 %v284
    %298 = vmatpush.msra.mxu0 %v283
    %299 = vmatpush.msra.mxu0 %v282
    %300 = vmatpush.msra.mxu0 %v281
    %301 = vmatpush.msra.mxu0 %v280
    %302 = vmatpush.msra.mxu0 %v279
    %303 = vmatpush.msra.mxu0 %v278
    %304 = vmatpush.msra.mxu0 %v277
    %305 = vmatpush.msra.mxu0 %v276
    %306 = vmatpush.msra.mxu0 %v275
    %307 = vmatmul.f32.gmra.mxu0 %v270
    %v308 = vpop.f32.mrf.mxu0
    %v309 = vadd.f32 0.0, %v308
    %310 = vmatmul.f32.gmra.mxu0 %v271
    %v311 = vpop.f32.mrf.mxu0
    %v312 = vadd.f32 0.0, %v311
    %313 = vmatmul.f32.gmra.mxu0 %v272
    %v314 = vpop.f32.mrf.mxu0
    %v315 = vadd.f32 0.0, %v314
    %316 = vmatmul.f32.gmra.mxu0 %v273
    %v317 = vpop.f32.mrf.mxu0
    %v318 = vadd.f32 0.0, %v317
    %319 = vdwg.mxu0
    %320 = vmatpush.xpose.msra.mxu0 0.0
    %321 = vmatpush.xpose.msra.mxu0 0.0
    %322 = vmatpush.xpose.msra.mxu0 0.0
    %323 = vmatpush.xpose.msra.mxu0 0.0
    %324 = vmatpush.xpose.msra.mxu0 0.0
    %325 = vmatpush.xpose.msra.mxu0 0.0
    %326 = vmatpush.xpose.msra.mxu0 0.0
    %327 = vmatpush.xpose.msra.mxu0 0.0
    %328 = vmatpush.xpose.msra.mxu0 0.0
    %329 = vmatpush.xpose.msra.mxu0 0.0
    %330 = vmatpush.xpose.msra.mxu0 0.0
    %331 = vmatpush.xpose.msra.mxu0 0.0
    %332 = vmatpush.xpose.msra.mxu0 0.0
    %333 = vmatpush.xpose.msra.mxu0 0.0
    %334 = vmatpush.xpose.msra.mxu0 %v271
    %335 = vmatpush.xpose.msra.mxu0 %v270
    %336 = vmatmul.f32.gmra.mxu0 %v309
    %v337 = vpop.f32.mrf.mxu0
    %v338 = vadd.f32 0.0, %v337
    %339 = vmatmul.f32.gmra.mxu0 %v312
    %v340 = vpop.f32.mrf.mxu0
    %v341 = vadd.f32 0.0, %v340
    %342 = vdwg.mxu0
    %343 = vmatpush.xpose.msra.mxu0 0.0
    %344 = vmatpush.xpose.msra.mxu0 0.0
    %345 = vmatpush.xpose.msra.mxu0 0.0
    %346 = vmatpush.xpose.msra.mxu0 0.0
    %347 = vmatpush.xpose.msra.mxu0 0.0
    %348 = vmatpush.xpose.msra.mxu0 0.0
    %349 = vmatpush.xpose.msra.mxu0 0.0
    %350 = vmatpush.xpose.msra.mxu0 0.0
    %351 = vmatpush.xpose.msra.mxu0 0.0
    %352 = vmatpush.xpose.msra.mxu0 0.0
    %353 = vmatpush.xpose.msra.mxu0 0.0
    %354 = vmatpush.xpose.msra.mxu0 0.0
    %355 = vmatpush.xpose.msra.mxu0 0.0
    %356 = vmatpush.xpose.msra.mxu0 0.0
    %357 = vmatpush.xpose.msra.mxu0 %v273
    %358 = vmatpush.xpose.msra.mxu0 %v272
    %359 = vmatmul.f32.gmra.mxu0 %v315
    %v360 = vpop.f32.mrf.mxu0
    %v361 = vadd.f32 0.0, %v360
    %362 = vmatmul.f32.gmra.mxu0 %v318
    %v363 = vpop.f32.mrf.mxu0
    %v364 = vadd.f32 0.0, %v363
    %365 = vdwg.mxu0
    %vm366 = vcmp.gt.f32.partialorder %v338, 0.0
    %vm367 = vcmp.gt.f32.partialorder %v341, 0.0
    %vm368 = vcmp.gt.f32.partialorder %v361, 0.0
    %vm369 = vcmp.gt.f32.partialorder %v364, 0.0
    %v370 = vmul.f32 %v338, 0.2
    %v371 = vmul.f32 %v341, 0.2
    %v372 = vmul.f32 %v361, 0.2
    %v373 = vmul.f32 %v364, 0.2
    %v374 = vsel %vm366, %v338, %v370
    %v375 = vsel %vm367, %v341, %v371
    %v376 = vsel %vm368, %v361, %v372
    %v377 = vsel %vm369, %v364, %v373
    %v378 = vsel %vm119, %v374, -inf
    %379 = vmax.xlane.f32.xlu0 %v378
    %v380 = vpop.xlane.xlu0 %379
    %v381 = vsel %vm119, %v375, -inf
    %382 = vmax.xlane.f32.xlu0 %v381
    %v383 = vpop.xlane.xlu0 %382
    %v384 = vsel %vm119, %v376, -inf
    %385 = vmax.xlane.f32.xlu0 %v384
    %v386 = vpop.xlane.xlu0 %385
    %v387 = vsel %vm119, %v377, -inf
    %388 = vmax.xlane.f32.xlu0 %v387
    %v389 = vpop.xlane.xlu0 %388
    %v390 = vsub.f32 %v374, %v380
    %v391 = vsub.f32 %v375, %v383
    %v392 = vsub.f32 %v376, %v386
    %v393 = vsub.f32 %v377, %v389
    %v394 = vmul.f32 %v390, 1.442695
    %v395 = vpow.pop %v394
    %v396 = vmul.f32 %v391, 1.442695
    %v397 = vpow.pop %v396
    %v398 = vmul.f32 %v392, 1.442695
    %v399 = vpow.pop %v398
    %v400 = vmul.f32 %v393, 1.442695
    %v401 = vpow.pop %v400
    %v402 = vsel %vm119, %v395, 0.0
    %403 = vadd.xlane.f32.xlu0 %v402
    %v404 = vpop.xlane.xlu0 %403
    %v405 = vsel %vm119, %v397, 0.0
    %406 = vadd.xlane.f32.xlu0 %v405
    %v407 = vpop.xlane.xlu0 %406
    %v408 = vsel %vm119, %v399, 0.0
    %409 = vadd.xlane.f32.xlu0 %v408
    %v410 = vpop.xlane.xlu0 %409
    %v411 = vsel %vm119, %v401, 0.0
    %412 = vadd.xlane.f32.xlu0 %v411
    %v413 = vpop.xlane.xlu0 %412
    %v414 = vrcp.pop %v404
    %v415 = vmul.f32 %v404, %v414
    %v416 = vsub.f32 1.0, %v415
    %v417 = vmul.f32 %v414, %v416
    %v418 = vadd.f32 %v414, %v417
    %vm419 = vweird.f32 %v404
    %vm420 = vweird.f32 %v414
    %vm421 = vmor %vm419, %vm420
    %v422 = vsel %vm421, %v414, %v418
    %v423 = vand.u32 2147483647, %v404
    %vm424 = vcmp.eq.f32.partialorder %v423, 8.507059e+37
    %v425 = vand.u32 %v404, 2147483648
    %v426 = vor.u32 1.1754944e-38, %v425
    %v427 = vsel %vm424, %v426, %v422
    %v428 = vmul.f32 %v395, %v427
    %v429 = vrcp.pop %v407
    %v430 = vmul.f32 %v407, %v429
    %v431 = vsub.f32 1.0, %v430
    %v432 = vmul.f32 %v429, %v431
    %v433 = vadd.f32 %v429, %v432
    %vm434 = vweird.f32 %v407
    %vm435 = vweird.f32 %v429
    %vm436 = vmor %vm434, %vm435
    %v437 = vsel %vm436, %v429, %v433
    %v438 = vand.u32 2147483647, %v407
    %vm439 = vcmp.eq.f32.partialorder %v438, 8.507059e+37
    %v440 = vand.u32 %v407, 2147483648
    %v441 = vor.u32 1.1754944e-38, %v440
    %v442 = vsel %vm439, %v441, %v437
    %v443 = vmul.f32 %v397, %v442
    %v444 = vrcp.pop %v410
    %v445 = vmul.f32 %v410, %v444
    %v446 = vsub.f32 1.0, %v445
    %v447 = vmul.f32 %v444, %v446
    %v448 = vadd.f32 %v444, %v447
    %vm449 = vweird.f32 %v410
    %vm450 = vweird.f32 %v444
    %vm451 = vmor %vm449, %vm450
    %v452 = vsel %vm451, %v444, %v448
    %v453 = vand.u32 2147483647, %v410
    %vm454 = vcmp.eq.f32.partialorder %v453, 8.507059e+37
    %v455 = vand.u32 %v410, 2147483648
    %v456 = vor.u32 1.1754944e-38, %v455
    %v457 = vsel %vm454, %v456, %v452
    %v458 = vmul.f32 %v399, %v457
    %v459 = vrcp.pop %v413
    %v460 = vmul.f32 %v413, %v459
    %v461 = vsub.f32 1.0, %v460
    %v462 = vmul.f32 %v459, %v461
    %v463 = vadd.f32 %v459, %v462
    %vm464 = vweird.f32 %v413
    %vm465 = vweird.f32 %v459
    %vm466 = vmor %vm464, %vm465
    %v467 = vsel %vm466, %v459, %v463
    %v468 = vand.u32 2147483647, %v413
    %vm469 = vcmp.eq.f32.partialorder %v468, 8.507059e+37
    %v470 = vand.u32 %v413, 2147483648
    %v471 = vor.u32 1.1754944e-38, %v470
    %v472 = vsel %vm469, %v471, %v467
    %v473 = vmul.f32 %v401, %v472
    %v474 = vsel %vm119, %v428, 0.0
    %v475 = vsel %vm119, %v458, 0.0
    %v476 = vadd.f32 %v474, %v475
    %v477 = vsel %vm119, %v443, 0.0
    %v478 = vsel %vm119, %v473, 0.0
    %v479 = vadd.f32 %v477, %v478
    %v480 = vmul.f32 %v476, %v228
    %v481 = vmul.f32 %v479, %v228
    %482 = vxpose.xlu0.b32.start [1/16] %v480, 128
    %483 = vxpose.xlu0.b32.cont [2/16] %v481, 128
    %484 = vxpose.xlu0.b32.cont [3/16] 0.0, 128
    %485 = vxpose.xlu0.b32.cont [4/16] 0.0, 128
    %486 = vxpose.xlu0.b32.cont [5/16] 0.0, 128
    %487 = vxpose.xlu0.b32.cont [6/16] 0.0, 128
    %488 = vxpose.xlu0.b32.cont [7/16] 0.0, 128
    %489 = vxpose.xlu0.b32.cont [8/16] 0.0, 128
    %490 = vxpose.xlu0.b32.cont [9/16] 0.0, 128
    %491 = vxpose.xlu0.b32.cont [10/16] 0.0, 128
    %492 = vxpose.xlu0.b32.cont [11/16] 0.0, 128
    %493 = vxpose.xlu0.b32.cont [12/16] 0.0, 128
    %494 = vxpose.xlu0.b32.cont [13/16] 0.0, 128
    %495 = vxpose.xlu0.b32.cont [14/16] 0.0, 128
    %496 = vxpose.xlu0.b32.cont [15/16] 0.0, 128
    %497 = vxpose.xlu0.b32.end [16/16] 0.0, 128
    %v498 = vpop.trf.xlu0
    %v499 = vpop.trf.xlu0
    %v500 = vpop.trf.xlu0
    %v501 = vpop.trf.xlu0
    %v502 = vpop.trf.xlu0
    %v503 = vpop.trf.xlu0
    %v504 = vpop.trf.xlu0
    %v505 = vpop.trf.xlu0
    %v506 = vpop.trf.xlu0
    %v507 = vpop.trf.xlu0
    %v508 = vpop.trf.xlu0
    %v509 = vpop.trf.xlu0
    %v510 = vpop.trf.xlu0
    %v511 = vpop.trf.xlu0
    %v512 = vpop.trf.xlu0
    %v513 = vpop.trf.xlu0
    %v514 = vadd.f32 %v480, %v498
    %v515 = vadd.f32 %v481, %v499
    %v516 = vmul.f32 %v514, 0.5
    %v517 = vmul.f32 %v515, 0.5
    %s518 = scalar_lea.vmem [#allocation2], 16
    %519 = vst.msk [vmem:[%s518] sm:$0xff] %vm119, %v516
    %520 = vst.msk [vmem:[%s518 + $0x8] sm:$0xff] %vm119, %v517
    %s521 = scalar_lea.vmem %s0, 64
    %v522 = vld [vmem:[%s521] sm:$0xff]
    %v523 = vld [vmem:[%s521 + $0x8] sm:$0xff]
    %v524 = vld [vmem:[%s521 + $0x10] sm:$0xff]
    %v525 = vld [vmem:[%s521 + $0x18] sm:$0xff]
    %s526 = scalar_lea.vmem %s1, 256
    %v527 = vld [vmem:[%s526] sm:$0xff]
    %v528 = vld [vmem:[%s526 + $0x8] sm:$0xff]
    %v529 = vld [vmem:[%s526 + $0x10] sm:$0xff]
    %v530 = vld [vmem:[%s526 + $0x18] sm:$0xff]
    %v531 = vld [vmem:[%s526 + $0x20] sm:$0xff]
    %v532 = vld [vmem:[%s526 + $0x28] sm:$0xff]
    %v533 = vld [vmem:[%s526 + $0x30] sm:$0xff]
    %v534 = vld [vmem:[%s526 + $0x38] sm:$0xff]
    %v535 = vld [vmem:[%s526 + $0x40] sm:$0xff]
    %v536 = vld [vmem:[%s526 + $0x48] sm:$0xff]
    %v537 = vld [vmem:[%s526 + $0x50] sm:$0xff]
    %v538 = vld [vmem:[%s526 + $0x58] sm:$0xff]
    %v539 = vld [vmem:[%s526 + $0x60] sm:$0xff]
    %v540 = vld [vmem:[%s526 + $0x68] sm:$0xff]
    %v541 = vld [vmem:[%s526 + $0x70] sm:$0xff]
    %v542 = vld [vmem:[%s526 + $0x78] sm:$0xff]
    %543 = vmatpush.msra.mxu0 %v542
    %544 = vmatpush.msra.mxu0 %v541
    %545 = vmatpush.msra.mxu0 %v540
    %546 = vmatpush.msra.mxu0 %v539
    %547 = vmatpush.msra.mxu0 %v538
    %548 = vmatpush.msra.mxu0 %v537
    %549 = vmatpush.msra.mxu0 %v536
    %550 = vmatpush.msra.mxu0 %v535
    %551 = vmatpush.msra.mxu0 %v534
    %552 = vmatpush.msra.mxu0 %v533
    %553 = vmatpush.msra.mxu0 %v532
    %554 = vmatpush.msra.mxu0 %v531
    %555 = vmatpush.msra.mxu0 %v530
    %556 = vmatpush.msra.mxu0 %v529
    %557 = vmatpush.msra.mxu0 %v528
    %558 = vmatpush.msra.mxu0 %v527
    %559 = vmatmul.f32.gmra.mxu0 %v522
    %v560 = vpop.f32.mrf.mxu0
    %v561 = vadd.f32 0.0, %v560
    %562 = vmatmul.f32.gmra.mxu0 %v523
    %v563 = vpop.f32.mrf.mxu0
    %v564 = vadd.f32 0.0, %v563
    %565 = vmatmul.f32.gmra.mxu0 %v524
    %v566 = vpop.f32.mrf.mxu0
    %v567 = vadd.f32 0.0, %v566
    %568 = vmatmul.f32.gmra.mxu0 %v525
    %v569 = vpop.f32.mrf.mxu0
    %v570 = vadd.f32 0.0, %v569
    %571 = vdwg.mxu0
    %572 = vmatpush.xpose.msra.mxu0 0.0
    %573 = vmatpush.xpose.msra.mxu0 0.0
    %574 = vmatpush.xpose.msra.mxu0 0.0
    %575 = vmatpush.xpose.msra.mxu0 0.0
    %576 = vmatpush.xpose.msra.mxu0 0.0
    %577 = vmatpush.xpose.msra.mxu0 0.0
    %578 = vmatpush.xpose.msra.mxu0 0.0
    %579 = vmatpush.xpose.msra.mxu0 0.0
    %580 = vmatpush.xpose.msra.mxu0 0.0
    %581 = vmatpush.xpose.msra.mxu0 0.0
    %582 = vmatpush.xpose.msra.mxu0 0.0
    %583 = vmatpush.xpose.msra.mxu0 0.0
    %584 = vmatpush.xpose.msra.mxu0 0.0
    %585 = vmatpush.xpose.msra.mxu0 0.0
    %586 = vmatpush.xpose.msra.mxu0 %v523
    %587 = vmatpush.xpose.msra.mxu0 %v522
    %588 = vmatmul.f32.gmra.mxu0 %v561
    %v589 = vpop.f32.mrf.mxu0
    %v590 = vadd.f32 0.0, %v589
    %591 = vmatmul.f32.gmra.mxu0 %v564
    %v592 = vpop.f32.mrf.mxu0
    %v593 = vadd.f32 0.0, %v592
    %594 = vdwg.mxu0
    %595 = vmatpush.xpose.msra.mxu0 0.0
    %596 = vmatpush.xpose.msra.mxu0 0.0
    %597 = vmatpush.xpose.msra.mxu0 0.0
    %598 = vmatpush.xpose.msra.mxu0 0.0
    %599 = vmatpush.xpose.msra.mxu0 0.0
    %600 = vmatpush.xpose.msra.mxu0 0.0
    %601 = vmatpush.xpose.msra.mxu0 0.0
    %602 = vmatpush.xpose.msra.mxu0 0.0
    %603 = vmatpush.xpose.msra.mxu0 0.0
    %604 = vmatpush.xpose.msra.mxu0 0.0
    %605 = vmatpush.xpose.msra.mxu0 0.0
    %606 = vmatpush.xpose.msra.mxu0 0.0
    %607 = vmatpush.xpose.msra.mxu0 0.0
    %608 = vmatpush.xpose.msra.mxu0 0.0
    %609 = vmatpush.xpose.msra.mxu0 %v525
    %610 = vmatpush.xpose.msra.mxu0 %v524
    %611 = vmatmul.f32.gmra.mxu0 %v567
    %v612 = vpop.f32.mrf.mxu0
    %v613 = vadd.f32 0.0, %v612
    %614 = vmatmul.f32.gmra.mxu0 %v570
    %v615 = vpop.f32.mrf.mxu0
    %v616 = vadd.f32 0.0, %v615
    %617 = vdwg.mxu0
    %vm618 = vcmp.gt.f32.partialorder %v590, 0.0
    %vm619 = vcmp.gt.f32.partialorder %v593, 0.0
    %vm620 = vcmp.gt.f32.partialorder %v613, 0.0
    %vm621 = vcmp.gt.f32.partialorder %v616, 0.0
    %v622 = vmul.f32 %v590, 0.2
    %v623 = vmul.f32 %v593, 0.2
    %v624 = vmul.f32 %v613, 0.2
    %v625 = vmul.f32 %v616, 0.2
    %v626 = vsel %vm618, %v590, %v622
    %v627 = vsel %vm619, %v593, %v623
    %v628 = vsel %vm620, %v613, %v624
    %v629 = vsel %vm621, %v616, %v625
    %v630 = vsel %vm119, %v626, -inf
    %631 = vmax.xlane.f32.xlu0 %v630
    %v632 = vpop.xlane.xlu0 %631
    %v633 = vsel %vm119, %v627, -inf
    %634 = vmax.xlane.f32.xlu0 %v633
    %v635 = vpop.xlane.xlu0 %634
    %v636 = vsel %vm119, %v628, -inf
    %637 = vmax.xlane.f32.xlu0 %v636
    %v638 = vpop.xlane.xlu0 %637
    %v639 = vsel %vm119, %v629, -inf
    %640 = vmax.xlane.f32.xlu0 %v639
    %v641 = vpop.xlane.xlu0 %640
    %v642 = vsub.f32 %v626, %v632
    %v643 = vsub.f32 %v627, %v635
    %v644 = vsub.f32 %v628, %v638
    %v645 = vsub.f32 %v629, %v641
    %v646 = vmul.f32 %v642, 1.442695
    %v647 = vpow.pop %v646
    %v648 = vmul.f32 %v643, 1.442695
    %v649 = vpow.pop %v648
    %v650 = vmul.f32 %v644, 1.442695
    %v651 = vpow.pop %v650
    %v652 = vmul.f32 %v645, 1.442695
    %v653 = vpow.pop %v652
    %v654 = vsel %vm119, %v647, 0.0
    %655 = vadd.xlane.f32.xlu0 %v654
    %v656 = vpop.xlane.xlu0 %655
    %v657 = vsel %vm119, %v649, 0.0
    %658 = vadd.xlane.f32.xlu0 %v657
    %v659 = vpop.xlane.xlu0 %658
    %v660 = vsel %vm119, %v651, 0.0
    %661 = vadd.xlane.f32.xlu0 %v660
    %v662 = vpop.xlane.xlu0 %661
    %v663 = vsel %vm119, %v653, 0.0
    %664 = vadd.xlane.f32.xlu0 %v663
    %v665 = vpop.xlane.xlu0 %664
    %v666 = vrcp.pop %v656
    %v667 = vmul.f32 %v656, %v666
    %v668 = vsub.f32 1.0, %v667
    %v669 = vmul.f32 %v666, %v668
    %v670 = vadd.f32 %v666, %v669
    %vm671 = vweird.f32 %v656
    %vm672 = vweird.f32 %v666
    %vm673 = vmor %vm671, %vm672
    %v674 = vsel %vm673, %v666, %v670
    %v675 = vand.u32 2147483647, %v656
    %vm676 = vcmp.eq.f32.partialorder %v675, 8.507059e+37
    %v677 = vand.u32 %v656, 2147483648
    %v678 = vor.u32 1.1754944e-38, %v677
    %v679 = vsel %vm676, %v678, %v674
    %v680 = vmul.f32 %v647, %v679
    %v681 = vrcp.pop %v659
    %v682 = vmul.f32 %v659, %v681
    %v683 = vsub.f32 1.0, %v682
    %v684 = vmul.f32 %v681, %v683
    %v685 = vadd.f32 %v681, %v684
    %vm686 = vweird.f32 %v659
    %vm687 = vweird.f32 %v681
    %vm688 = vmor %vm686, %vm687
    %v689 = vsel %vm688, %v681, %v685
    %v690 = vand.u32 2147483647, %v659
    %vm691 = vcmp.eq.f32.partialorder %v690, 8.507059e+37
    %v692 = vand.u32 %v659, 2147483648
    %v693 = vor.u32 1.1754944e-38, %v692
    %v694 = vsel %vm691, %v693, %v689
    %v695 = vmul.f32 %v649, %v694
    %v696 = vrcp.pop %v662
    %v697 = vmul.f32 %v662, %v696
    %v698 = vsub.f32 1.0, %v697
    %v699 = vmul.f32 %v696, %v698
    %v700 = vadd.f32 %v696, %v699
    %vm701 = vweird.f32 %v662
    %vm702 = vweird.f32 %v696
    %vm703 = vmor %vm701, %vm702
    %v704 = vsel %vm703, %v696, %v700
    %v705 = vand.u32 2147483647, %v662
    %vm706 = vcmp.eq.f32.partialorder %v705, 8.507059e+37
    %v707 = vand.u32 %v662, 2147483648
    %v708 = vor.u32 1.1754944e-38, %v707
    %v709 = vsel %vm706, %v708, %v704
    %v710 = vmul.f32 %v651, %v709
    %v711 = vrcp.pop %v665
    %v712 = vmul.f32 %v665, %v711
    %v713 = vsub.f32 1.0, %v712
    %v714 = vmul.f32 %v711, %v713
    %v715 = vadd.f32 %v711, %v714
    %vm716 = vweird.f32 %v665
    %vm717 = vweird.f32 %v711
    %vm718 = vmor %vm716, %vm717
    %v719 = vsel %vm718, %v711, %v715
    %v720 = vand.u32 2147483647, %v665
    %vm721 = vcmp.eq.f32.partialorder %v720, 8.507059e+37
    %v722 = vand.u32 %v665, 2147483648
    %v723 = vor.u32 1.1754944e-38, %v722
    %v724 = vsel %vm721, %v723, %v719
    %v725 = vmul.f32 %v653, %v724
    %v726 = vsel %vm119, %v680, 0.0
    %v727 = vsel %vm119, %v710, 0.0
    %v728 = vadd.f32 %v726, %v727
    %v729 = vsel %vm119, %v695, 0.0
    %v730 = vsel %vm119, %v725, 0.0
    %v731 = vadd.f32 %v729, %v730
    %v732 = vmul.f32 %v728, %v228
    %v733 = vmul.f32 %v731, %v228
    %734 = vxpose.xlu0.b32.start [1/16] %v732, 128
    %735 = vxpose.xlu0.b32.cont [2/16] %v733, 128
    %736 = vxpose.xlu0.b32.cont [3/16] 0.0, 128
    %737 = vxpose.xlu0.b32.cont [4/16] 0.0, 128
    %738 = vxpose.xlu0.b32.cont [5/16] 0.0, 128
    %739 = vxpose.xlu0.b32.cont [6/16] 0.0, 128
    %740 = vxpose.xlu0.b32.cont [7/16] 0.0, 128
    %741 = vxpose.xlu0.b32.cont [8/16] 0.0, 128
    %742 = vxpose.xlu0.b32.cont [9/16] 0.0, 128
    %743 = vxpose.xlu0.b32.cont [10/16] 0.0, 128
    %744 = vxpose.xlu0.b32.cont [11/16] 0.0, 128
    %745 = vxpose.xlu0.b32.cont [12/16] 0.0, 128
    %746 = vxpose.xlu0.b32.cont [13/16] 0.0, 128
    %747 = vxpose.xlu0.b32.cont [14/16] 0.0, 128
    %748 = vxpose.xlu0.b32.cont [15/16] 0.0, 128
    %749 = vxpose.xlu0.b32.end [16/16] 0.0, 128
    %v750 = vpop.trf.xlu0
    %v751 = vpop.trf.xlu0
    %v752 = vpop.trf.xlu0
    %v753 = vpop.trf.xlu0
    %v754 = vpop.trf.xlu0
    %v755 = vpop.trf.xlu0
    %v756 = vpop.trf.xlu0
    %v757 = vpop.trf.xlu0
    %v758 = vpop.trf.xlu0
    %v759 = vpop.trf.xlu0
    %v760 = vpop.trf.xlu0
    %v761 = vpop.trf.xlu0
    %v762 = vpop.trf.xlu0
    %v763 = vpop.trf.xlu0
    %v764 = vpop.trf.xlu0
    %v765 = vpop.trf.xlu0
    %v766 = vadd.f32 %v732, %v750
    %v767 = vadd.f32 %v733, %v751
    %v768 = vmul.f32 %v766, 0.5
    %v769 = vmul.f32 %v767, 0.5
    %s770 = scalar_lea.vmem [#allocation2], 32
    %771 = vst.msk [vmem:[%s770] sm:$0xff] %vm119, %v768
    %772 = vst.msk [vmem:[%s770 + $0x8] sm:$0xff] %vm119, %v769
    %s773 = scalar_lea.vmem %s0, 96
    %v774 = vld [vmem:[%s773] sm:$0xff]
    %v775 = vld [vmem:[%s773 + $0x8] sm:$0xff]
    %v776 = vld [vmem:[%s773 + $0x10] sm:$0xff]
    %v777 = vld [vmem:[%s773 + $0x18] sm:$0xff]
    %s778 = scalar_lea.vmem %s1, 384
    %v779 = vld [vmem:[%s778] sm:$0xff]
    %v780 = vld [vmem:[%s778 + $0x8] sm:$0xff]
    %v781 = vld [vmem:[%s778 + $0x10] sm:$0xff]
    %v782 = vld [vmem:[%s778 + $0x18] sm:$0xff]
    %v783 = vld [vmem:[%s778 + $0x20] sm:$0xff]
    %v784 = vld [vmem:[%s778 + $0x28] sm:$0xff]
    %v785 = vld [vmem:[%s778 + $0x30] sm:$0xff]
    %v786 = vld [vmem:[%s778 + $0x38] sm:$0xff]
    %v787 = vld [vmem:[%s778 + $0x40] sm:$0xff]
    %v788 = vld [vmem:[%s778 + $0x48] sm:$0xff]
    %v789 = vld [vmem:[%s778 + $0x50] sm:$0xff]
    %v790 = vld [vmem:[%s778 + $0x58] sm:$0xff]
    %v791 = vld [vmem:[%s778 + $0x60] sm:$0xff]
    %v792 = vld [vmem:[%s778 + $0x68] sm:$0xff]
    %v793 = vld [vmem:[%s778 + $0x70] sm:$0xff]
    %v794 = vld [vmem:[%s778 + $0x78] sm:$0xff]
    %795 = vmatpush.msra.mxu0 %v794
    %796 = vmatpush.msra.mxu0 %v793
    %797 = vmatpush.msra.mxu0 %v792
    %798 = vmatpush.msra.mxu0 %v791
    %799 = vmatpush.msra.mxu0 %v790
    %800 = vmatpush.msra.mxu0 %v789
    %801 = vmatpush.msra.mxu0 %v788
    %802 = vmatpush.msra.mxu0 %v787
    %803 = vmatpush.msra.mxu0 %v786
    %804 = vmatpush.msra.mxu0 %v785
    %805 = vmatpush.msra.mxu0 %v784
    %806 = vmatpush.msra.mxu0 %v783
    %807 = vmatpush.msra.mxu0 %v782
    %808 = vmatpush.msra.mxu0 %v781
    %809 = vmatpush.msra.mxu0 %v780
    %810 = vmatpush.msra.mxu0 %v779
    %811 = vmatmul.f32.gmra.mxu0 %v774
    %v812 = vpop.f32.mrf.mxu0
    %v813 = vadd.f32 0.0, %v812
    %814 = vmatmul.f32.gmra.mxu0 %v775
    %v815 = vpop.f32.mrf.mxu0
    %v816 = vadd.f32 0.0, %v815
    %817 = vmatmul.f32.gmra.mxu0 %v776
    %v818 = vpop.f32.mrf.mxu0
    %v819 = vadd.f32 0.0, %v818
    %820 = vmatmul.f32.gmra.mxu0 %v777
    %v821 = vpop.f32.mrf.mxu0
    %v822 = vadd.f32 0.0, %v821
    %823 = vdwg.mxu0
    %824 = vmatpush.xpose.msra.mxu0 0.0
    %825 = vmatpush.xpose.msra.mxu0 0.0
    %826 = vmatpush.xpose.msra.mxu0 0.0
    %827 = vmatpush.xpose.msra.mxu0 0.0
    %828 = vmatpush.xpose.msra.mxu0 0.0
    %829 = vmatpush.xpose.msra.mxu0 0.0
    %830 = vmatpush.xpose.msra.mxu0 0.0
    %831 = vmatpush.xpose.msra.mxu0 0.0
    %832 = vmatpush.xpose.msra.mxu0 0.0
    %833 = vmatpush.xpose.msra.mxu0 0.0
    %834 = vmatpush.xpose.msra.mxu0 0.0
    %835 = vmatpush.xpose.msra.mxu0 0.0
    %836 = vmatpush.xpose.msra.mxu0 0.0
    %837 = vmatpush.xpose.msra.mxu0 0.0
    %838 = vmatpush.xpose.msra.mxu0 %v775
    %839 = vmatpush.xpose.msra.mxu0 %v774
    %840 = vmatmul.f32.gmra.mxu0 %v813
    %v841 = vpop.f32.mrf.mxu0
    %v842 = vadd.f32 0.0, %v841
    %843 = vmatmul.f32.gmra.mxu0 %v816
    %v844 = vpop.f32.mrf.mxu0
    %v845 = vadd.f32 0.0, %v844
    %846 = vdwg.mxu0
    %847 = vmatpush.xpose.msra.mxu0 0.0
    %848 = vmatpush.xpose.msra.mxu0 0.0
    %849 = vmatpush.xpose.msra.mxu0 0.0
    %850 = vmatpush.xpose.msra.mxu0 0.0
    %851 = vmatpush.xpose.msra.mxu0 0.0
    %852 = vmatpush.xpose.msra.mxu0 0.0
    %853 = vmatpush.xpose.msra.mxu0 0.0
    %854 = vmatpush.xpose.msra.mxu0 0.0
    %855 = vmatpush.xpose.msra.mxu0 0.0
    %856 = vmatpush.xpose.msra.mxu0 0.0
    %857 = vmatpush.xpose.msra.mxu0 0.0
    %858 = vmatpush.xpose.msra.mxu0 0.0
    %859 = vmatpush.xpose.msra.mxu0 0.0
    %860 = vmatpush.xpose.msra.mxu0 0.0
    %861 = vmatpush.xpose.msra.mxu0 %v777
    %862 = vmatpush.xpose.msra.mxu0 %v776
    %863 = vmatmul.f32.gmra.mxu0 %v819
    %v864 = vpop.f32.mrf.mxu0
    %v865 = vadd.f32 0.0, %v864
    %866 = vmatmul.f32.gmra.mxu0 %v822
    %v867 = vpop.f32.mrf.mxu0
    %v868 = vadd.f32 0.0, %v867
    %869 = vdwg.mxu0
    %vm870 = vcmp.gt.f32.partialorder %v842, 0.0
    %vm871 = vcmp.gt.f32.partialorder %v845, 0.0
    %vm872 = vcmp.gt.f32.partialorder %v865, 0.0
    %vm873 = vcmp.gt.f32.partialorder %v868, 0.0
    %v874 = vmul.f32 %v842, 0.2
    %v875 = vmul.f32 %v845, 0.2
    %v876 = vmul.f32 %v865, 0.2
    %v877 = vmul.f32 %v868, 0.2
    %v878 = vsel %vm870, %v842, %v874
    %v879 = vsel %vm871, %v845, %v875
    %v880 = vsel %vm872, %v865, %v876
    %v881 = vsel %vm873, %v868, %v877
    %v882 = vsel %vm119, %v878, -inf
    %883 = vmax.xlane.f32.xlu0 %v882
    %v884 = vpop.xlane.xlu0 %883
    %v885 = vsel %vm119, %v879, -inf
    %886 = vmax.xlane.f32.xlu0 %v885
    %v887 = vpop.xlane.xlu0 %886
    %v888 = vsel %vm119, %v880, -inf
    %889 = vmax.xlane.f32.xlu0 %v888
    %v890 = vpop.xlane.xlu0 %889
    %v891 = vsel %vm119, %v881, -inf
    %892 = vmax.xlane.f32.xlu0 %v891
    %v893 = vpop.xlane.xlu0 %892
    %v894 = vsub.f32 %v878, %v884
    %v895 = vsub.f32 %v879, %v887
    %v896 = vsub.f32 %v880, %v890
    %v897 = vsub.f32 %v881, %v893
    %v898 = vmul.f32 %v894, 1.442695
    %v899 = vpow.pop %v898
    %v900 = vmul.f32 %v895, 1.442695
    %v901 = vpow.pop %v900
    %v902 = vmul.f32 %v896, 1.442695
    %v903 = vpow.pop %v902
    %v904 = vmul.f32 %v897, 1.442695
    %v905 = vpow.pop %v904
    %v906 = vsel %vm119, %v899, 0.0
    %907 = vadd.xlane.f32.xlu0 %v906
    %v908 = vpop.xlane.xlu0 %907
    %v909 = vsel %vm119, %v901, 0.0
    %910 = vadd.xlane.f32.xlu0 %v909
    %v911 = vpop.xlane.xlu0 %910
    %v912 = vsel %vm119, %v903, 0.0
    %913 = vadd.xlane.f32.xlu0 %v912
    %v914 = vpop.xlane.xlu0 %913
    %v915 = vsel %vm119, %v905, 0.0
    %916 = vadd.xlane.f32.xlu0 %v915
    %v917 = vpop.xlane.xlu0 %916
    %v918 = vrcp.pop %v908
    %v919 = vmul.f32 %v908, %v918
    %v920 = vsub.f32 1.0, %v919
    %v921 = vmul.f32 %v918, %v920
    %v922 = vadd.f32 %v918, %v921
    %vm923 = vweird.f32 %v908
    %vm924 = vweird.f32 %v918
    %vm925 = vmor %vm923, %vm924
    %v926 = vsel %vm925, %v918, %v922
    %v927 = vand.u32 2147483647, %v908
    %vm928 = vcmp.eq.f32.partialorder %v927, 8.507059e+37
    %v929 = vand.u32 %v908, 2147483648
    %v930 = vor.u32 1.1754944e-38, %v929
    %v931 = vsel %vm928, %v930, %v926
    %v932 = vmul.f32 %v899, %v931
    %v933 = vrcp.pop %v911
    %v934 = vmul.f32 %v911, %v933
    %v935 = vsub.f32 1.0, %v934
    %v936 = vmul.f32 %v933, %v935
    %v937 = vadd.f32 %v933, %v936
    %vm938 = vweird.f32 %v911
    %vm939 = vweird.f32 %v933
    %vm940 = vmor %vm938, %vm939
    %v941 = vsel %vm940, %v933, %v937
    %v942 = vand.u32 2147483647, %v911
    %vm943 = vcmp.eq.f32.partialorder %v942, 8.507059e+37
    %v944 = vand.u32 %v911, 2147483648
    %v945 = vor.u32 1.1754944e-38, %v944
    %v946 = vsel %vm943, %v945, %v941
    %v947 = vmul.f32 %v901, %v946
    %v948 = vrcp.pop %v914
    %v949 = vmul.f32 %v914, %v948
    %v950 = vsub.f32 1.0, %v949
    %v951 = vmul.f32 %v948, %v950
    %v952 = vadd.f32 %v948, %v951
    %vm953 = vweird.f32 %v914
    %vm954 = vweird.f32 %v948
    %vm955 = vmor %vm953, %vm954
    %v956 = vsel %vm955, %v948, %v952
    %v957 = vand.u32 2147483647, %v914
    %vm958 = vcmp.eq.f32.partialorder %v957, 8.507059e+37
    %v959 = vand.u32 %v914, 2147483648
    %v960 = vor.u32 1.1754944e-38, %v959
    %v961 = vsel %vm958, %v960, %v956
    %v962 = vmul.f32 %v903, %v961
    %v963 = vrcp.pop %v917
    %v964 = vmul.f32 %v917, %v963
    %v965 = vsub.f32 1.0, %v964
    %v966 = vmul.f32 %v963, %v965
    %v967 = vadd.f32 %v963, %v966
    %vm968 = vweird.f32 %v917
    %vm969 = vweird.f32 %v963
    %vm970 = vmor %vm968, %vm969
    %v971 = vsel %vm970, %v963, %v967
    %v972 = vand.u32 2147483647, %v917
    %vm973 = vcmp.eq.f32.partialorder %v972, 8.507059e+37
    %v974 = vand.u32 %v917, 2147483648
    %v975 = vor.u32 1.1754944e-38, %v974
    %v976 = vsel %vm973, %v975, %v971
    %v977 = vmul.f32 %v905, %v976
    %v978 = vsel %vm119, %v932, 0.0
    %v979 = vsel %vm119, %v962, 0.0
    %v980 = vadd.f32 %v978, %v979
    %v981 = vsel %vm119, %v947, 0.0
    %v982 = vsel %vm119, %v977, 0.0
    %v983 = vadd.f32 %v981, %v982
    %v984 = vmul.f32 %v980, %v228
    %v985 = vmul.f32 %v983, %v228
    %986 = vxpose.xlu0.b32.start [1/16] %v984, 128
    %987 = vxpose.xlu0.b32.cont [2/16] %v985, 128
    %988 = vxpose.xlu0.b32.cont [3/16] 0.0, 128
    %989 = vxpose.xlu0.b32.cont [4/16] 0.0, 128
    %990 = vxpose.xlu0.b32.cont [5/16] 0.0, 128
    %991 = vxpose.xlu0.b32.cont [6/16] 0.0, 128
    %992 = vxpose.xlu0.b32.cont [7/16] 0.0, 128
    %993 = vxpose.xlu0.b32.cont [8/16] 0.0, 128
    %994 = vxpose.xlu0.b32.cont [9/16] 0.0, 128
    %995 = vxpose.xlu0.b32.cont [10/16] 0.0, 128
    %996 = vxpose.xlu0.b32.cont [11/16] 0.0, 128
    %997 = vxpose.xlu0.b32.cont [12/16] 0.0, 128
    %998 = vxpose.xlu0.b32.cont [13/16] 0.0, 128
    %999 = vxpose.xlu0.b32.cont [14/16] 0.0, 128
    %1000 = vxpose.xlu0.b32.cont [15/16] 0.0, 128
    %1001 = vxpose.xlu0.b32.end [16/16] 0.0, 128
    %v1002 = vpop.trf.xlu0
    %v1003 = vpop.trf.xlu0
    %v1004 = vpop.trf.xlu0
    %v1005 = vpop.trf.xlu0
    %v1006 = vpop.trf.xlu0
    %v1007 = vpop.trf.xlu0
    %v1008 = vpop.trf.xlu0
    %v1009 = vpop.trf.xlu0
    %v1010 = vpop.trf.xlu0
    %v1011 = vpop.trf.xlu0
    %v1012 = vpop.trf.xlu0
    %v1013 = vpop.trf.xlu0
    %v1014 = vpop.trf.xlu0
    %v1015 = vpop.trf.xlu0
    %v1016 = vpop.trf.xlu0
    %v1017 = vpop.trf.xlu0
    %v1018 = vadd.f32 %v984, %v1002
    %v1019 = vadd.f32 %v985, %v1003
    %v1020 = vmul.f32 %v1018, 0.5
    %v1021 = vmul.f32 %v1019, 0.5
    %s1022 = scalar_lea.vmem [#allocation2], 48
    %1023 = vst.msk [vmem:[%s1022] sm:$0xff] %vm119, %v1020
    %1024 = vst.msk [vmem:[%s1022 + $0x8] sm:$0xff] %vm119, %v1021
    %s1025 = scalar_lea.vmem %s0, 128
    %v1026 = vld [vmem:[%s1025] sm:$0xff]
    %v1027 = vld [vmem:[%s1025 + $0x8] sm:$0xff]
    %v1028 = vld [vmem:[%s1025 + $0x10] sm:$0xff]
    %v1029 = vld [vmem:[%s1025 + $0x18] sm:$0xff]
    %s1030 = scalar_lea.vmem %s1, 512
    %v1031 = vld [vmem:[%s1030] sm:$0xff]
    %v1032 = vld [vmem:[%s1030 + $0x8] sm:$0xff]
    %v1033 = vld [vmem:[%s1030 + $0x10] sm:$0xff]
    %v1034 = vld [vmem:[%s1030 + $0x18] sm:$0xff]
    %v1035 = vld [vmem:[%s1030 + $0x20] sm:$0xff]
    %v1036 = vld [vmem:[%s1030 + $0x28] sm:$0xff]
    %v1037 = vld [vmem:[%s1030 + $0x30] sm:$0xff]
    %v1038 = vld [vmem:[%s1030 + $0x38] sm:$0xff]
    %v1039 = vld [vmem:[%s1030 + $0x40] sm:$0xff]
    %v1040 = vld [vmem:[%s1030 + $0x48] sm:$0xff]
    %v1041 = vld [vmem:[%s1030 + $0x50] sm:$0xff]
    %v1042 = vld [vmem:[%s1030 + $0x58] sm:$0xff]
    %v1043 = vld [vmem:[%s1030 + $0x60] sm:$0xff]
    %v1044 = vld [vmem:[%s1030 + $0x68] sm:$0xff]
    %v1045 = vld [vmem:[%s1030 + $0x70] sm:$0xff]
    %v1046 = vld [vmem:[%s1030 + $0x78] sm:$0xff]
    %1047 = vmatpush.msra.mxu0 %v1046
    %1048 = vmatpush.msra.mxu0 %v1045
    %1049 = vmatpush.msra.mxu0 %v1044
    %1050 = vmatpush.msra.mxu0 %v1043
    %1051 = vmatpush.msra.mxu0 %v1042
    %1052 = vmatpush.msra.mxu0 %v1041
    %1053 = vmatpush.msra.mxu0 %v1040
    %1054 = vmatpush.msra.mxu0 %v1039
    %1055 = vmatpush.msra.mxu0 %v1038
    %1056 = vmatpush.msra.mxu0 %v1037
    %1057 = vmatpush.msra.mxu0 %v1036
    %1058 = vmatpush.msra.mxu0 %v1035
    %1059 = vmatpush.msra.mxu0 %v1034
    %1060 = vmatpush.msra.mxu0 %v1033
    %1061 = vmatpush.msra.mxu0 %v1032
    %1062 = vmatpush.msra.mxu0 %v1031
    %1063 = vmatmul.f32.gmra.mxu0 %v1026
    %v1064 = vpop.f32.mrf.mxu0
    %v1065 = vadd.f32 0.0, %v1064
    %1066 = vmatmul.f32.gmra.mxu0 %v1027
    %v1067 = vpop.f32.mrf.mxu0
    %v1068 = vadd.f32 0.0, %v1067
    %1069 = vmatmul.f32.gmra.mxu0 %v1028
    %v1070 = vpop.f32.mrf.mxu0
    %v1071 = vadd.f32 0.0, %v1070
    %1072 = vmatmul.f32.gmra.mxu0 %v1029
    %v1073 = vpop.f32.mrf.mxu0
    %v1074 = vadd.f32 0.0, %v1073
    %1075 = vdwg.mxu0
    %1076 = vmatpush.xpose.msra.mxu0 0.0
    %1077 = vmatpush.xpose.msra.mxu0 0.0
    %1078 = vmatpush.xpose.msra.mxu0 0.0
    %1079 = vmatpush.xpose.msra.mxu0 0.0
    %1080 = vmatpush.xpose.msra.mxu0 0.0
    %1081 = vmatpush.xpose.msra.mxu0 0.0
    %1082 = vmatpush.xpose.msra.mxu0 0.0
    %1083 = vmatpush.xpose.msra.mxu0 0.0
    %1084 = vmatpush.xpose.msra.mxu0 0.0
    %1085 = vmatpush.xpose.msra.mxu0 0.0
    %1086 = vmatpush.xpose.msra.mxu0 0.0
    %1087 = vmatpush.xpose.msra.mxu0 0.0
    %1088 = vmatpush.xpose.msra.mxu0 0.0
    %1089 = vmatpush.xpose.msra.mxu0 0.0
    %1090 = vmatpush.xpose.msra.mxu0 %v1027
    %1091 = vmatpush.xpose.msra.mxu0 %v1026
    %1092 = vmatmul.f32.gmra.mxu0 %v1065
    %v1093 = vpop.f32.mrf.mxu0
    %v1094 = vadd.f32 0.0, %v1093
    %1095 = vmatmul.f32.gmra.mxu0 %v1068
    %v1096 = vpop.f32.mrf.mxu0
    %v1097 = vadd.f32 0.0, %v1096
    %1098 = vdwg.mxu0
    %1099 = vmatpush.xpose.msra.mxu0 0.0
    %1100 = vmatpush.xpose.msra.mxu0 0.0
    %1101 = vmatpush.xpose.msra.mxu0 0.0
    %1102 = vmatpush.xpose.msra.mxu0 0.0
    %1103 = vmatpush.xpose.msra.mxu0 0.0
    %1104 = vmatpush.xpose.msra.mxu0 0.0
    %1105 = vmatpush.xpose.msra.mxu0 0.0
    %1106 = vmatpush.xpose.msra.mxu0 0.0
    %1107 = vmatpush.xpose.msra.mxu0 0.0
    %1108 = vmatpush.xpose.msra.mxu0 0.0
    %1109 = vmatpush.xpose.msra.mxu0 0.0
    %1110 = vmatpush.xpose.msra.mxu0 0.0
    %1111 = vmatpush.xpose.msra.mxu0 0.0
    %1112 = vmatpush.xpose.msra.mxu0 0.0
    %1113 = vmatpush.xpose.msra.mxu0 %v1029
    %1114 = vmatpush.xpose.msra.mxu0 %v1028
    %1115 = vmatmul.f32.gmra.mxu0 %v1071
    %v1116 = vpop.f32.mrf.mxu0
    %v1117 = vadd.f32 0.0, %v1116
    %1118 = vmatmul.f32.gmra.mxu0 %v1074
    %v1119 = vpop.f32.mrf.mxu0
    %v1120 = vadd.f32 0.0, %v1119
    %1121 = vdwg.mxu0
    %vm1122 = vcmp.gt.f32.partialorder %v1094, 0.0
    %vm1123 = vcmp.gt.f32.partialorder %v1097, 0.0
    %vm1124 = vcmp.gt.f32.partialorder %v1117, 0.0
    %vm1125 = vcmp.gt.f32.partialorder %v1120, 0.0
    %v1126 = vmul.f32 %v1094, 0.2
    %v1127 = vmul.f32 %v1097, 0.2
    %v1128 = vmul.f32 %v1117, 0.2
    %v1129 = vmul.f32 %v1120, 0.2
    %v1130 = vsel %vm1122, %v1094, %v1126
    %v1131 = vsel %vm1123, %v1097, %v1127
    %v1132 = vsel %vm1124, %v1117, %v1128
    %v1133 = vsel %vm1125, %v1120, %v1129
    %v1134 = vsel %vm119, %v1130, -inf
    %1135 = vmax.xlane.f32.xlu0 %v1134
    %v1136 = vpop.xlane.xlu0 %1135
    %v1137 = vsel %vm119, %v1131, -inf
    %1138 = vmax.xlane.f32.xlu0 %v1137
    %v1139 = vpop.xlane.xlu0 %1138
    %v1140 = vsel %vm119, %v1132, -inf
    %1141 = vmax.xlane.f32.xlu0 %v1140
    %v1142 = vpop.xlane.xlu0 %1141
    %v1143 = vsel %vm119, %v1133, -inf
    %1144 = vmax.xlane.f32.xlu0 %v1143
    %v1145 = vpop.xlane.xlu0 %1144
    %v1146 = vsub.f32 %v1130, %v1136
    %v1147 = vsub.f32 %v1131, %v1139
    %v1148 = vsub.f32 %v1132, %v1142
    %v1149 = vsub.f32 %v1133, %v1145
    %v1150 = vmul.f32 %v1146, 1.442695
    %v1151 = vpow.pop %v1150
    %v1152 = vmul.f32 %v1147, 1.442695
    %v1153 = vpow.pop %v1152
    %v1154 = vmul.f32 %v1148, 1.442695
    %v1155 = vpow.pop %v1154
    %v1156 = vmul.f32 %v1149, 1.442695
    %v1157 = vpow.pop %v1156
    %v1158 = vsel %vm119, %v1151, 0.0
    %1159 = vadd.xlane.f32.xlu0 %v1158
    %v1160 = vpop.xlane.xlu0 %1159
    %v1161 = vsel %vm119, %v1153, 0.0
    %1162 = vadd.xlane.f32.xlu0 %v1161
    %v1163 = vpop.xlane.xlu0 %1162
    %v1164 = vsel %vm119, %v1155, 0.0
    %1165 = vadd.xlane.f32.xlu0 %v1164
    %v1166 = vpop.xlane.xlu0 %1165
    %v1167 = vsel %vm119, %v1157, 0.0
    %1168 = vadd.xlane.f32.xlu0 %v1167
    %v1169 = vpop.xlane.xlu0 %1168
    %v1170 = vrcp.pop %v1160
    %v1171 = vmul.f32 %v1160, %v1170
    %v1172 = vsub.f32 1.0, %v1171
    %v1173 = vmul.f32 %v1170, %v1172
    %v1174 = vadd.f32 %v1170, %v1173
    %vm1175 = vweird.f32 %v1160
    %vm1176 = vweird.f32 %v1170
    %vm1177 = vmor %vm1175, %vm1176
    %v1178 = vsel %vm1177, %v1170, %v1174
    %v1179 = vand.u32 2147483647, %v1160
    %vm1180 = vcmp.eq.f32.partialorder %v1179, 8.507059e+37
    %v1181 = vand.u32 %v1160, 2147483648
    %v1182 = vor.u32 1.1754944e-38, %v1181
    %v1183 = vsel %vm1180, %v1182, %v1178
    %v1184 = vmul.f32 %v1151, %v1183
    %v1185 = vrcp.pop %v1163
    %v1186 = vmul.f32 %v1163, %v1185
    %v1187 = vsub.f32 1.0, %v1186
    %v1188 = vmul.f32 %v1185, %v1187
    %v1189 = vadd.f32 %v1185, %v1188
    %vm1190 = vweird.f32 %v1163
    %vm1191 = vweird.f32 %v1185
    %vm1192 = vmor %vm1190, %vm1191
    %v1193 = vsel %vm1192, %v1185, %v1189
    %v1194 = vand.u32 2147483647, %v1163
    %vm1195 = vcmp.eq.f32.partialorder %v1194, 8.507059e+37
    %v1196 = vand.u32 %v1163, 2147483648
    %v1197 = vor.u32 1.1754944e-38, %v1196
    %v1198 = vsel %vm1195, %v1197, %v1193
    %v1199 = vmul.f32 %v1153, %v1198
    %v1200 = vrcp.pop %v1166
    %v1201 = vmul.f32 %v1166, %v1200
    %v1202 = vsub.f32 1.0, %v1201
    %v1203 = vmul.f32 %v1200, %v1202
    %v1204 = vadd.f32 %v1200, %v1203
    %vm1205 = vweird.f32 %v1166
    %vm1206 = vweird.f32 %v1200
    %vm1207 = vmor %vm1205, %vm1206
    %v1208 = vsel %vm1207, %v1200, %v1204
    %v1209 = vand.u32 2147483647, %v1166
    %vm1210 = vcmp.eq.f32.partialorder %v1209, 8.507059e+37
    %v1211 = vand.u32 %v1166, 2147483648
    %v1212 = vor.u32 1.1754944e-38, %v1211
    %v1213 = vsel %vm1210, %v1212, %v1208
    %v1214 = vmul.f32 %v1155, %v1213
    %v1215 = vrcp.pop %v1169
    %v1216 = vmul.f32 %v1169, %v1215
    %v1217 = vsub.f32 1.0, %v1216
    %v1218 = vmul.f32 %v1215, %v1217
    %v1219 = vadd.f32 %v1215, %v1218
    %vm1220 = vweird.f32 %v1169
    %vm1221 = vweird.f32 %v1215
    %vm1222 = vmor %vm1220, %vm1221
    %v1223 = vsel %vm1222, %v1215, %v1219
    %v1224 = vand.u32 2147483647, %v1169
    %vm1225 = vcmp.eq.f32.partialorder %v1224, 8.507059e+37
    %v1226 = vand.u32 %v1169, 2147483648
    %v1227 = vor.u32 1.1754944e-38, %v1226
    %v1228 = vsel %vm1225, %v1227, %v1223
    %v1229 = vmul.f32 %v1157, %v1228
    %v1230 = vsel %vm119, %v1184, 0.0
    %v1231 = vsel %vm119, %v1214, 0.0
    %v1232 = vadd.f32 %v1230, %v1231
    %v1233 = vsel %vm119, %v1199, 0.0
    %v1234 = vsel %vm119, %v1229, 0.0
    %v1235 = vadd.f32 %v1233, %v1234
    %v1236 = vmul.f32 %v1232, %v228
    %v1237 = vmul.f32 %v1235, %v228
    %1238 = vxpose.xlu0.b32.start [1/16] %v1236, 128
    %1239 = vxpose.xlu0.b32.cont [2/16] %v1237, 128
    %1240 = vxpose.xlu0.b32.cont [3/16] 0.0, 128
    %1241 = vxpose.xlu0.b32.cont [4/16] 0.0, 128
    %1242 = vxpose.xlu0.b32.cont [5/16] 0.0, 128
    %1243 = vxpose.xlu0.b32.cont [6/16] 0.0, 128
    %1244 = vxpose.xlu0.b32.cont [7/16] 0.0, 128
    %1245 = vxpose.xlu0.b32.cont [8/16] 0.0, 128
    %1246 = vxpose.xlu0.b32.cont [9/16] 0.0, 128
    %1247 = vxpose.xlu0.b32.cont [10/16] 0.0, 128
    %1248 = vxpose.xlu0.b32.cont [11/16] 0.0, 128
    %1249 = vxpose.xlu0.b32.cont [12/16] 0.0, 128
    %1250 = vxpose.xlu0.b32.cont [13/16] 0.0, 128
    %1251 = vxpose.xlu0.b32.cont [14/16] 0.0, 128
    %1252 = vxpose.xlu0.b32.cont [15/16] 0.0, 128
    %1253 = vxpose.xlu0.b32.end [16/16] 0.0, 128
    %v1254 = vpop.trf.xlu0
    %v1255 = vpop.trf.xlu0
    %v1256 = vpop.trf.xlu0
    %v1257 = vpop.trf.xlu0
    %v1258 = vpop.trf.xlu0
    %v1259 = vpop.trf.xlu0
    %v1260 = vpop.trf.xlu0
    %v1261 = vpop.trf.xlu0
    %v1262 = vpop.trf.xlu0
    %v1263 = vpop.trf.xlu0
    %v1264 = vpop.trf.xlu0
    %v1265 = vpop.trf.xlu0
    %v1266 = vpop.trf.xlu0
    %v1267 = vpop.trf.xlu0
    %v1268 = vpop.trf.xlu0
    %v1269 = vpop.trf.xlu0
    %v1270 = vadd.f32 %v1236, %v1254
    %v1271 = vadd.f32 %v1237, %v1255
    %v1272 = vmul.f32 %v1270, 0.5
    %v1273 = vmul.f32 %v1271, 0.5
    %s1274 = scalar_lea.vmem [#allocation2], 64
    %1275 = vst.msk [vmem:[%s1274] sm:$0xff] %vm119, %v1272
    %1276 = vst.msk [vmem:[%s1274 + $0x8] sm:$0xff] %vm119, %v1273
    // Predicated region
    $region10: #{multi_graph_forward.2} parent=1 // pred_check
      _
    $region11: #{multi_graph_forward.2} parent=1 // pred_check_branch
      %1278 = sbr.rel (0) target = $region13
    $region12: #{multi_graph_forward.2} parent=1 // pred_region
      %1280 = vsyncadd [#allocation3], 0
      %s1281 = sshll.u32 [#allocation2], 4
      %s1282 = int_to_ptr.vmem [resolvable:$true] %s1281
      %s1283 = sshll.u32 %s2, 4
      %s1284 = int_to_ptr.hbm [resolvable:$true] %s1283
      %1289 = dma.vmem_to_hbm [thread:$0]  %s1282, 1280, %s1284, [#allocation3], 128, 128, 8
    $region13: #{multi_graph_forward.2} parent=1 // pred_fallthru
      _
    // Predicated region
    $region14: #{multi_graph_forward.2} parent=1 // pred_check
      _
    $region15: #{multi_graph_forward.2} parent=1 // pred_check_branch
      %1291 = sbr.rel (0) target = $region17
    $region16: #{multi_graph_forward.2} parent=1 // pred_region
      %1293 = dma.done [#allocation3], 1280
    $region17: #{multi_graph_forward.2} parent=1 // pred_fallthru
      _
    %1294 = vsyncpa [#allocation3], 1

// kernel: multi_graph_forward.3
$region0: #{multi_graph_forward.3}
  #allocation0 [shape = 'u32[]', space=smem, size = 0x4, offset = 0x4, fixed_abs, tag = 'smem constant byte address 0x4 - core index']
  #allocation1 [shape = 'u32[72,128]{1,0:T(1,128)}', space=vmem, size = 0x9000, scoped, tag = 'internal scratch']
  %s0 = inlined_call_operand.vmem [shape: f32[5,256,16], index: 0, kind: input, shape index: {}]
  %s1 = inlined_call_operand.hbm [shape: f32[5,16,16], index: 1, kind: input, shape index: {}]
  %s2 = inlined_call_operand.vmem [shape: f32[5,5,16], index: 2, kind: input, shape index: {}]
  %s3 = inlined_call_operand.vmem [shape: f32[5,4], index: 3, kind: input, shape index: {}]
  %s4 = inlined_call_operand.vmem [shape: f32[1,4], index: 4, kind: input, shape index: {}]
  %s5 = inlined_call_operand.vmem [shape: f32[4,5], index: 5, kind: input, shape index: {}]
  %s6 = inlined_call_operand.vmem [shape: f32[1,5], index: 6, kind: input, shape index: {}]
  %s7 = inlined_call_operand.vmem [shape: f32[400,8], index: 7, kind: input, shape index: {}]
  %s8 = inlined_call_operand.vmem [shape: f32[1,8], index: 8, kind: input, shape index: {}]
  %s9 = inlined_call_operand.vmem [shape: f32[8,2], index: 9, kind: input, shape index: {}]
  %s10 = inlined_call_operand.vmem [shape: f32[1,2], index: 10, kind: input, shape index: {}]
  %s11 = inlined_call_operand.hbm [shape: f32[2,2], index: 11, kind: output, shape index: {}]
  %s12 = sld [smem:[#allocation0]]
  $region58: #{multi_graph_forward.3} parent=0
    _
  %s14 = ssub.s32 1, %s12
  %s15 = scalar_select 0, %s14, %s12
  $region1: #{multi_graph_forward.3} parent=0
    #allocation2 [shape = 'u8[40960]{0}', space=vmem, size = 0xa000, scoped, tag = 'input window, operand 1, single buffered']
    #allocation3 [shape = 's32[1]{0}', space=sflag, size = 0x4, scoped, tag = 'scoped memory for multi_graph_forward.3']
    #allocation4 [shape = 's32[1]{0}', space=sflag, size = 0x4, scoped, tag = 'scoped memory for multi_graph_forward.3']
    #allocation5 [shape = 'u8[1024]{0}', space=vmem, size = 0x400, scoped, tag = 'output window, operand 0, single buffered']
    %16 = vsyncpa [#allocation3], 0
    %17 = vsyncpa [#allocation4], 0
    // Predicated region
    $region2: #{multi_graph_forward.3} parent=1 // pred_check
      _
    $region3: #{multi_graph_forward.3} parent=1 // pred_check_branch
      %19 = sbr.rel (0) target = $region5
    $region4: #{multi_graph_forward.3} parent=1 // pred_region
      _
    $region5: #{multi_graph_forward.3} parent=1 // pred_fallthru
      _
    // Predicated region
    $region6: #{multi_graph_forward.3} parent=1 // pred_check
      _
    $region7: #{multi_graph_forward.3} parent=1 // pred_check_branch
      %21 = sbr.rel (0) target = $region9
    $region8: #{multi_graph_forward.3} parent=1 // pred_region
      %23 = vsyncadd [#allocation3], 0
      %s24 = sshll.u32 %s1, 4
      %s25 = int_to_ptr.hbm [resolvable:$true] %s24
      %s26 = sshll.u32 [#allocation2], 4
      %s27 = int_to_ptr.vmem [resolvable:$true] %s26
      %32 = dma.hbm_to_vmem [thread:$0]  %s25, 1280, %s27, [#allocation3], 128, 128, 8
    $region9: #{multi_graph_forward.3} parent=1 // pred_fallthru
      _
    // Predicated region
    $region10: #{multi_graph_forward.3} parent=1 // pred_check
      _
    $region11: #{multi_graph_forward.3} parent=1 // pred_check_branch
      %34 = sbr.rel (0) target = $region13
    $region12: #{multi_graph_forward.3} parent=1 // pred_region
      _
    $region13: #{multi_graph_forward.3} parent=1 // pred_fallthru
      _
    // Predicated region
    $region14: #{multi_graph_forward.3} parent=1 // pred_check
      _
    $region15: #{multi_graph_forward.3} parent=1 // pred_check_branch
      %36 = sbr.rel (0) target = $region17
    $region16: #{multi_graph_forward.3} parent=1 // pred_region
      _
    $region17: #{multi_graph_forward.3} parent=1 // pred_fallthru
      _
    // Predicated region
    $region18: #{multi_graph_forward.3} parent=1 // pred_check
      _
    $region19: #{multi_graph_forward.3} parent=1 // pred_check_branch
      %38 = sbr.rel (0) target = $region21
    $region20: #{multi_graph_forward.3} parent=1 // pred_region
      _
    $region21: #{multi_graph_forward.3} parent=1 // pred_fallthru
      _
    // Predicated region
    $region22: #{multi_graph_forward.3} parent=1 // pred_check
      _
    $region23: #{multi_graph_forward.3} parent=1 // pred_check_branch
      %40 = sbr.rel (0) target = $region25
    $region24: #{multi_graph_forward.3} parent=1 // pred_region
      _
    $region25: #{multi_graph_forward.3} parent=1 // pred_fallthru
      _
    // Predicated region
    $region26: #{multi_graph_forward.3} parent=1 // pred_check
      _
    $region27: #{multi_graph_forward.3} parent=1 // pred_check_branch
      %42 = sbr.rel (0) target = $region29
    $region28: #{multi_graph_forward.3} parent=1 // pred_region
      _
    $region29: #{multi_graph_forward.3} parent=1 // pred_fallthru
      _
    // Predicated region
    $region30: #{multi_graph_forward.3} parent=1 // pred_check
      _
    $region31: #{multi_graph_forward.3} parent=1 // pred_check_branch
      %44 = sbr.rel (0) target = $region33
    $region32: #{multi_graph_forward.3} parent=1 // pred_region
      _
    $region33: #{multi_graph_forward.3} parent=1 // pred_fallthru
      _
    // Predicated region
    $region34: #{multi_graph_forward.3} parent=1 // pred_check
      _
    $region35: #{multi_graph_forward.3} parent=1 // pred_check_branch
      %46 = sbr.rel (0) target = $region37
    $region36: #{multi_graph_forward.3} parent=1 // pred_region
      _
    $region37: #{multi_graph_forward.3} parent=1 // pred_fallthru
      _
    // Predicated region
    $region38: #{multi_graph_forward.3} parent=1 // pred_check
      _
    $region39: #{multi_graph_forward.3} parent=1 // pred_check_branch
      %48 = sbr.rel (0) target = $region41
    $region40: #{multi_graph_forward.3} parent=1 // pred_region
      _
    $region41: #{multi_graph_forward.3} parent=1 // pred_fallthru
      _
    // Predicated region
    $region42: #{multi_graph_forward.3} parent=1 // pred_check
      _
    $region43: #{multi_graph_forward.3} parent=1 // pred_check_branch
      %50 = sbr.rel (0) target = $region45
    $region44: #{multi_graph_forward.3} parent=1 // pred_region
      _
    $region45: #{multi_graph_forward.3} parent=1 // pred_fallthru
      _
    // Predicated region
    $region46: #{multi_graph_forward.3} parent=1 // pred_check
      _
    $region47: #{multi_graph_forward.3} parent=1 // pred_check_branch
      %52 = sbr.rel (0) target = $region49
    $region48: #{multi_graph_forward.3} parent=1 // pred_region
      %54 = dma.done [#allocation3], 1280
    $region49: #{multi_graph_forward.3} parent=1 // pred_fallthru
      _
    %v55 = vld [vmem:[#allocation2] sm:$0xff]
    %v56 = vld [vmem:[#allocation2 + $0x8] sm:$0xff]
    %v57 = vld [vmem:[%s2] sm:$0x1f]
    %v59 = vrot.slane %v57, 1
    %v60 = vrot.slane %v57, 2
    %v61 = vrot.slane %v57, 3
    %v62 = vrot.slane %v57, 4
    %v63 = vperm.slane %v57, 0
    %v64 = vperm.slane %v59, 0
    %v65 = vperm.slane %v60, 0
    %v66 = vperm.slane %v61, 0
    %v67 = vperm.slane %v62, 0
    %v73 = vmul.f32 %v55, %v63
    %v74 = vmul.f32 %v56, %v63
    %v75 = vmul.f32 %v55, %v64
    %v76 = vmul.f32 %v56, %v64
    %v77 = vmul.f32 %v55, %v65
    %v78 = vmul.f32 %v56, %v65
    %v79 = vmul.f32 %v55, %v66
    %v80 = vmul.f32 %v56, %v66
    %v81 = vmul.f32 %v55, %v67
    %v82 = vmul.f32 %v56, %v67
    %vm83 = vcmask 130048
    %v85 = vsel %vm83, %v55, 0
    %v88 = vsel %vm83, %v56, 0
    %v91 = vsel %vm83, %v73, 0
    %v94 = vsel %vm83, %v74, 0
    %v97 = vsel %vm83, %v75, 0
    %v100 = vsel %vm83, %v76, 0
    %v103 = vsel %vm83, %v77, 0
    %v106 = vsel %vm83, %v78, 0
    %v109 = vsel %vm83, %v79, 0
    %v112 = vsel %vm83, %v80, 0
    %v115 = vsel %vm83, %v81, 0
    %v118 = vsel %vm83, %v82, 0
    %120 = vmatpush.xpose.msra.mxu0 0.0
    %121 = vmatpush.xpose.msra.mxu0 0.0
    %122 = vmatpush.xpose.msra.mxu0 0.0
    %123 = vmatpush.xpose.msra.mxu0 0.0
    %124 = vmatpush.xpose.msra.mxu0 0.0
    %125 = vmatpush.xpose.msra.mxu0 0.0
    %126 = vmatpush.xpose.msra.mxu0 %v118
    %127 = vmatpush.xpose.msra.mxu0 %v115
    %128 = vmatpush.xpose.msra.mxu0 %v112
    %129 = vmatpush.xpose.msra.mxu0 %v109
    %130 = vmatpush.xpose.msra.mxu0 %v106
    %131 = vmatpush.xpose.msra.mxu0 %v103
    %132 = vmatpush.xpose.msra.mxu0 %v100
    %133 = vmatpush.xpose.msra.mxu0 %v97
    %134 = vmatpush.xpose.msra.mxu0 %v94
    %135 = vmatpush.xpose.msra.mxu0 %v91
    %136 = vmatmul.f32.gmra.mxu0 %v85
    %v137 = vpop.f32.mrf.mxu0
    %v138 = vadd.f32 0.0, %v137
    %139 = vmatmul.f32.gmra.mxu0 %v88
    %v140 = vpop.f32.mrf.mxu0
    %v141 = vadd.f32 0.0, %v140
    %142 = vdwg.mxu0
    %v143 = vld [vmem:[%s0] sm:$0xff]
    %v144 = vld [vmem:[%s0 + $0x8] sm:$0xff]
    %v145 = vld [vmem:[%s0 + $0x10] sm:$0xff]
    %v146 = vld [vmem:[%s0 + $0x18] sm:$0xff]
    %v147 = vld [vmem:[%s0 + $0x20] sm:$0xff]
    %v148 = vld [vmem:[%s0 + $0x28] sm:$0xff]
    %v149 = vld [vmem:[%s0 + $0x30] sm:$0xff]
    %v150 = vld [vmem:[%s0 + $0x38] sm:$0xff]
    %v151 = vld [vmem:[%s0 + $0x40] sm:$0xff]
    %v152 = vld [vmem:[%s0 + $0x48] sm:$0xff]
    %v153 = vld [vmem:[%s0 + $0x50] sm:$0xff]
    %v154 = vld [vmem:[%s0 + $0x58] sm:$0xff]
    %v155 = vld [vmem:[%s0 + $0x60] sm:$0xff]
    %v156 = vld [vmem:[%s0 + $0x68] sm:$0xff]
    %v157 = vld [vmem:[%s0 + $0x70] sm:$0xff]
    %v158 = vld [vmem:[%s0 + $0x78] sm:$0xff]
    %v159 = vld [vmem:[%s0 + $0x80] sm:$0xff]
    %v160 = vld [vmem:[%s0 + $0x88] sm:$0xff]
    %v161 = vld [vmem:[%s0 + $0x90] sm:$0xff]
    %v162 = vld [vmem:[%s0 + $0x98] sm:$0xff]
    %v163 = vld [vmem:[%s0 + $0xa0] sm:$0xff]
    %v164 = vld [vmem:[%s0 + $0xa8] sm:$0xff]
    %v165 = vld [vmem:[%s0 + $0xb0] sm:$0xff]
    %v166 = vld [vmem:[%s0 + $0xb8] sm:$0xff]
    %v167 = vld [vmem:[%s0 + $0xc0] sm:$0xff]
    %v168 = vld [vmem:[%s0 + $0xc8] sm:$0xff]
    %v169 = vld [vmem:[%s0 + $0xd0] sm:$0xff]
    %v170 = vld [vmem:[%s0 + $0xd8] sm:$0xff]
    %v171 = vld [vmem:[%s0 + $0xe0] sm:$0xff]
    %v172 = vld [vmem:[%s0 + $0xe8] sm:$0xff]
    %v173 = vld [vmem:[%s0 + $0xf0] sm:$0xff]
    %v174 = vld [vmem:[%s0 + $0xf8] sm:$0xff]
    %v176 = vsel %vm83, %v143, 0
    %v179 = vsel %vm83, %v144, 0
    %v182 = vsel %vm83, %v145, 0
    %v185 = vsel %vm83, %v146, 0
    %v188 = vsel %vm83, %v147, 0
    %v191 = vsel %vm83, %v148, 0
    %v194 = vsel %vm83, %v149, 0
    %v197 = vsel %vm83, %v150, 0
    %v200 = vsel %vm83, %v151, 0
    %v203 = vsel %vm83, %v152, 0
    %v206 = vsel %vm83, %v153, 0
    %v209 = vsel %vm83, %v154, 0
    %v212 = vsel %vm83, %v155, 0
    %v215 = vsel %vm83, %v156, 0
    %v218 = vsel %vm83, %v157, 0
    %v221 = vsel %vm83, %v158, 0
    %v224 = vsel %vm83, %v159, 0
    %v227 = vsel %vm83, %v160, 0
    %v230 = vsel %vm83, %v161, 0
    %v233 = vsel %vm83, %v162, 0
    %v236 = vsel %vm83, %v163, 0
    %v239 = vsel %vm83, %v164, 0
    %v242 = vsel %vm83, %v165, 0
    %v245 = vsel %vm83, %v166, 0
    %v248 = vsel %vm83, %v167, 0
    %v251 = vsel %vm83, %v168, 0
    %v254 = vsel %vm83, %v169, 0
    %v257 = vsel %vm83, %v170, 0
    %v260 = vsel %vm83, %v171, 0
    %v263 = vsel %vm83, %v172, 0
    %v266 = vsel %vm83, %v173, 0
    %v269 = vsel %vm83, %v174, 0
    %271 = vmatpush.msra.mxu0 0.0
    %272 = vmatpush.msra.mxu0 0.0
    %273 = vmatpush.msra.mxu0 0.0
    %274 = vmatpush.msra.mxu0 0.0
    %275 = vmatpush.msra.mxu0 0.0
    %276 = vmatpush.msra.mxu0 0.0
    %277 = vmatpush.msra.mxu0 0.0
    %278 = vmatpush.msra.mxu0 0.0
    %279 = vmatpush.msra.mxu0 0.0
    %280 = vmatpush.msra.mxu0 0.0
    %281 = vmatpush.msra.mxu0 0.0
    %282 = vmatpush.msra.mxu0 0.0
    %283 = vmatpush.msra.mxu0 0.0
    %284 = vmatpush.msra.mxu0 0.0
    %285 = vmatpush.msra.mxu0 %v141
    %286 = vmatpush.msra.mxu0 %v138
    %287 = vmatmul.f32.gmra.mxu0 %v176
    %v288 = vpop.f32.mrf.mxu0
    %v289 = vadd.f32 0.0, %v288
    %290 = vmatmul.f32.gmra.mxu0 %v179
    %v291 = vpop.f32.mrf.mxu0
    %v292 = vadd.f32 0.0, %v291
    %293 = vmatmul.f32.gmra.mxu0 %v182
    %v294 = vpop.f32.mrf.mxu0
    %v295 = vadd.f32 0.0, %v294
    %296 = vmatmul.f32.gmra.mxu0 %v185
    %v297 = vpop.f32.mrf.mxu0
    %v298 = vadd.f32 0.0, %v297
    %299 = vmatmul.f32.gmra.mxu0 %v188
    %v300 = vpop.f32.mrf.mxu0
    %v301 = vadd.f32 0.0, %v300
    %302 = vmatmul.f32.gmra.mxu0 %v191
    %v303 = vpop.f32.mrf.mxu0
    %v304 = vadd.f32 0.0, %v303
    %305 = vmatmul.f32.gmra.mxu0 %v194
    %v306 = vpop.f32.mrf.mxu0
    %v307 = vadd.f32 0.0, %v306
    %308 = vmatmul.f32.gmra.mxu0 %v197
    %v309 = vpop.f32.mrf.mxu0
    %v310 = vadd.f32 0.0, %v309
    %311 = vmatmul.f32.gmra.mxu0 %v200
    %v312 = vpop.f32.mrf.mxu0
    %v313 = vadd.f32 0.0, %v312
    %314 = vmatmul.f32.gmra.mxu0 %v203
    %v315 = vpop.f32.mrf.mxu0
    %v316 = vadd.f32 0.0, %v315
    %317 = vmatmul.f32.gmra.mxu0 %v206
    %v318 = vpop.f32.mrf.mxu0
    %v319 = vadd.f32 0.0, %v318
    %320 = vmatmul.f32.gmra.mxu0 %v209
    %v321 = vpop.f32.mrf.mxu0
    %v322 = vadd.f32 0.0, %v321
    %323 = vmatmul.f32.gmra.mxu0 %v212
    %v324 = vpop.f32.mrf.mxu0
    %v325 = vadd.f32 0.0, %v324
    %326 = vmatmul.f32.gmra.mxu0 %v215
    %v327 = vpop.f32.mrf.mxu0
    %v328 = vadd.f32 0.0, %v327
    %329 = vmatmul.f32.gmra.mxu0 %v218
    %v330 = vpop.f32.mrf.mxu0
    %v331 = vadd.f32 0.0, %v330
    %332 = vmatmul.f32.gmra.mxu0 %v221
    %v333 = vpop.f32.mrf.mxu0
    %v334 = vadd.f32 0.0, %v333
    %335 = vmatmul.f32.gmra.mxu0 %v224
    %v336 = vpop.f32.mrf.mxu0
    %v337 = vadd.f32 0.0, %v336
    %338 = vmatmul.f32.gmra.mxu0 %v227
    %v339 = vpop.f32.mrf.mxu0
    %v340 = vadd.f32 0.0, %v339
    %341 = vmatmul.f32.gmra.mxu0 %v230
    %v342 = vpop.f32.mrf.mxu0
    %v343 = vadd.f32 0.0, %v342
    %344 = vmatmul.f32.gmra.mxu0 %v233
    %v345 = vpop.f32.mrf.mxu0
    %v346 = vadd.f32 0.0, %v345
    %347 = vmatmul.f32.gmra.mxu0 %v236
    %v348 = vpop.f32.mrf.mxu0
    %v349 = vadd.f32 0.0, %v348
    %350 = vmatmul.f32.gmra.mxu0 %v239
    %v351 = vpop.f32.mrf.mxu0
    %v352 = vadd.f32 0.0, %v351
    %353 = vmatmul.f32.gmra.mxu0 %v242
    %v354 = vpop.f32.mrf.mxu0
    %v355 = vadd.f32 0.0, %v354
    %356 = vmatmul.f32.gmra.mxu0 %v245
    %v357 = vpop.f32.mrf.mxu0
    %v358 = vadd.f32 0.0, %v357
    %359 = vmatmul.f32.gmra.mxu0 %v248
    %v360 = vpop.f32.mrf.mxu0
    %v361 = vadd.f32 0.0, %v360
    %362 = vmatmul.f32.gmra.mxu0 %v251
    %v363 = vpop.f32.mrf.mxu0
    %v364 = vadd.f32 0.0, %v363
    %365 = vmatmul.f32.gmra.mxu0 %v254
    %v366 = vpop.f32.mrf.mxu0
    %v367 = vadd.f32 0.0, %v366
    %368 = vmatmul.f32.gmra.mxu0 %v257
    %v369 = vpop.f32.mrf.mxu0
    %v370 = vadd.f32 0.0, %v369
    %371 = vmatmul.f32.gmra.mxu0 %v260
    %v372 = vpop.f32.mrf.mxu0
    %v373 = vadd.f32 0.0, %v372
    %374 = vmatmul.f32.gmra.mxu0 %v263
    %v375 = vpop.f32.mrf.mxu0
    %v376 = vadd.f32 0.0, %v375
    %377 = vmatmul.f32.gmra.mxu0 %v266
    %v378 = vpop.f32.mrf.mxu0
    %v379 = vadd.f32 0.0, %v378
    %380 = vmatmul.f32.gmra.mxu0 %v269
    %v381 = vpop.f32.mrf.mxu0
    %v382 = vadd.f32 0.0, %v381
    %383 = vdwg.mxu0
    %v384 = vmax.f32 %v289, 0.0
    %v385 = vmax.f32 %v292, 0.0
    %v386 = vmax.f32 %v295, 0.0
    %v387 = vmax.f32 %v298, 0.0
    %v388 = vmax.f32 %v301, 0.0
    %v389 = vmax.f32 %v304, 0.0
    %v390 = vmax.f32 %v307, 0.0
    %v391 = vmax.f32 %v310, 0.0
    %v392 = vmax.f32 %v313, 0.0
    %v393 = vmax.f32 %v316, 0.0
    %v394 = vmax.f32 %v319, 0.0
    %v395 = vmax.f32 %v322, 0.0
    %v396 = vmax.f32 %v325, 0.0
    %v397 = vmax.f32 %v328, 0.0
    %v398 = vmax.f32 %v331, 0.0
    %v399 = vmax.f32 %v334, 0.0
    %v400 = vmax.f32 %v337, 0.0
    %v401 = vmax.f32 %v340, 0.0
    %v402 = vmax.f32 %v343, 0.0
    %v403 = vmax.f32 %v346, 0.0
    %v404 = vmax.f32 %v349, 0.0
    %v405 = vmax.f32 %v352, 0.0
    %v406 = vmax.f32 %v355, 0.0
    %v407 = vmax.f32 %v358, 0.0
    %v408 = vmax.f32 %v361, 0.0
    %v409 = vmax.f32 %v364, 0.0
    %v410 = vmax.f32 %v367, 0.0
    %v411 = vmax.f32 %v370, 0.0
    %v412 = vmax.f32 %v373, 0.0
    %v413 = vmax.f32 %v376, 0.0
    %v414 = vmax.f32 %v379, 0.0
    %v415 = vmax.f32 %v382, 0.0
    %vm416 = vcmask 654336
    %v417 = vsel %vm416, %v384, 0.0
    %v418 = vsel %vm416, %v385, 0.0
    %v419 = vadd.f32 %v417, %v418
    %v420 = vsel %vm416, %v386, 0.0
    %v421 = vadd.f32 %v419, %v420
    %v422 = vsel %vm416, %v387, 0.0
    %v423 = vadd.f32 %v421, %v422
    %v424 = vsel %vm416, %v388, 0.0
    %v425 = vadd.f32 %v423, %v424
    %v426 = vsel %vm416, %v389, 0.0
    %v427 = vadd.f32 %v425, %v426
    %v428 = vsel %vm416, %v390, 0.0
    %v429 = vadd.f32 %v427, %v428
    %v430 = vsel %vm416, %v391, 0.0
    %v431 = vadd.f32 %v429, %v430
    %v432 = vsel %vm416, %v392, 0.0
    %v433 = vadd.f32 %v431, %v432
    %v434 = vsel %vm416, %v393, 0.0
    %v435 = vadd.f32 %v433, %v434
    %v436 = vsel %vm416, %v394, 0.0
    %v437 = vadd.f32 %v435, %v436
    %v438 = vsel %vm416, %v395, 0.0
    %v439 = vadd.f32 %v437, %v438
    %v440 = vsel %vm416, %v396, 0.0
    %v441 = vadd.f32 %v439, %v440
    %v442 = vsel %vm416, %v397, 0.0
    %v443 = vadd.f32 %v441, %v442
    %v444 = vsel %vm416, %v398, 0.0
    %v445 = vadd.f32 %v443, %v444
    %v446 = vsel %vm416, %v399, 0.0
    %v447 = vadd.f32 %v445, %v446
    %v448 = vrot.slane %v447, 4
    %v449 = vadd.f32 %v447, %v448
    %v450 = vrot.slane %v449, 2
    %v451 = vadd.f32 %v449, %v450
    %v452 = vrot.slane %v451, 1
    %v453 = vadd.f32 %v451, %v452
    %v454 = vsel %vm416, %v400, 0.0
    %v455 = vsel %vm416, %v401, 0.0
    %v456 = vadd.f32 %v454, %v455
    %v457 = vsel %vm416, %v402, 0.0
    %v458 = vadd.f32 %v456, %v457
    %v459 = vsel %vm416, %v403, 0.0
    %v460 = vadd.f32 %v458, %v459
    %v461 = vsel %vm416, %v404, 0.0
    %v462 = vadd.f32 %v460, %v461
    %v463 = vsel %vm416, %v405, 0.0
    %v464 = vadd.f32 %v462, %v463
    %v465 = vsel %vm416, %v406, 0.0
    %v466 = vadd.f32 %v464, %v465
    %v467 = vsel %vm416, %v407, 0.0
    %v468 = vadd.f32 %v466, %v467
    %v469 = vsel %vm416, %v408, 0.0
    %v470 = vadd.f32 %v468, %v469
    %v471 = vsel %vm416, %v409, 0.0
    %v472 = vadd.f32 %v470, %v471
    %v473 = vsel %vm416, %v410, 0.0
    %v474 = vadd.f32 %v472, %v473
    %v475 = vsel %vm416, %v411, 0.0
    %v476 = vadd.f32 %v474, %v475
    %v477 = vsel %vm416, %v412, 0.0
    %v478 = vadd.f32 %v476, %v477
    %v479 = vsel %vm416, %v413, 0.0
    %v480 = vadd.f32 %v478, %v479
    %v481 = vsel %vm416, %v414, 0.0
    %v482 = vadd.f32 %v480, %v481
    %v483 = vsel %vm416, %v415, 0.0
    %v484 = vadd.f32 %v482, %v483
    %v485 = vrot.slane %v484, 4
    %v486 = vadd.f32 %v484, %v485
    %v487 = vrot.slane %v486, 2
    %v488 = vadd.f32 %v486, %v487
    %v489 = vrot.slane %v488, 1
    %v490 = vadd.f32 %v488, %v489
    %vm491 = vcmask 1040384
    %v492 = vsel %vm491, %v453, %v490
    %v493 = vmul.f32 %v492, 0.007812461
    %vm494 = vcmask 648192
    %v495 = vsel %vm494, %v493, 0.0
    %496 = vadd.xlane.f32.xlu0 %v495
    %v497 = vpop.xlane.xlu0 %496
    %v498 = vrcp.pop 80.0
    %v499 = vmul.f32 80.0, %v498
    %v500 = vsub.f32 1.0, %v499
    %v501 = vmul.f32 %v498, %v500
    %v502 = vadd.f32 %v498, %v501
    %vm503 = vweird.f32 %v498
    %v504 = vsel %vm503, %v498, %v502
    %v505 = vmul.f32 %v497, %v504
    %s506 = scalar_lea.vmem [#allocation2], 16
    %v507 = vld [vmem:[%s506] sm:$0xff]
    %v508 = vld [vmem:[%s506 + $0x8] sm:$0xff]
    %s509 = scalar_lea.vmem %s2, 8
    %v510 = vld [vmem:[%s509] sm:$0x1f]
    %v512 = vrot.slane %v510, 1
    %v513 = vrot.slane %v510, 2
    %v514 = vrot.slane %v510, 3
    %v515 = vrot.slane %v510, 4
    %v516 = vperm.slane %v510, 0
    %v517 = vperm.slane %v512, 0
    %v518 = vperm.slane %v513, 0
    %v519 = vperm.slane %v514, 0
    %v520 = vperm.slane %v515, 0
    %v526 = vmul.f32 %v507, %v516
    %v527 = vmul.f32 %v508, %v516
    %v528 = vmul.f32 %v507, %v517
    %v529 = vmul.f32 %v508, %v517
    %v530 = vmul.f32 %v507, %v518
    %v531 = vmul.f32 %v508, %v518
    %v532 = vmul.f32 %v507, %v519
    %v533 = vmul.f32 %v508, %v519
    %v534 = vmul.f32 %v507, %v520
    %v535 = vmul.f32 %v508, %v520
    %v537 = vsel %vm83, %v507, 0
    %v540 = vsel %vm83, %v508, 0
    %v543 = vsel %vm83, %v526, 0
    %v546 = vsel %vm83, %v527, 0
    %v549 = vsel %vm83, %v528, 0
    %v552 = vsel %vm83, %v529, 0
    %v555 = vsel %vm83, %v530, 0
    %v558 = vsel %vm83, %v531, 0
    %v561 = vsel %vm83, %v532, 0
    %v564 = vsel %vm83, %v533, 0
    %v567 = vsel %vm83, %v534, 0
    %v570 = vsel %vm83, %v535, 0
    %572 = vmatpush.xpose.msra.mxu0 0.0
    %573 = vmatpush.xpose.msra.mxu0 0.0
    %574 = vmatpush.xpose.msra.mxu0 0.0
    %575 = vmatpush.xpose.msra.mxu0 0.0
    %576 = vmatpush.xpose.msra.mxu0 0.0
    %577 = vmatpush.xpose.msra.mxu0 0.0
    %578 = vmatpush.xpose.msra.mxu0 %v570
    %579 = vmatpush.xpose.msra.mxu0 %v567
    %580 = vmatpush.xpose.msra.mxu0 %v564
    %581 = vmatpush.xpose.msra.mxu0 %v561
    %582 = vmatpush.xpose.msra.mxu0 %v558
    %583 = vmatpush.xpose.msra.mxu0 %v555
    %584 = vmatpush.xpose.msra.mxu0 %v552
    %585 = vmatpush.xpose.msra.mxu0 %v549
    %586 = vmatpush.xpose.msra.mxu0 %v546
    %587 = vmatpush.xpose.msra.mxu0 %v543
    %588 = vmatmul.f32.gmra.mxu0 %v537
    %v589 = vpop.f32.mrf.mxu0
    %v590 = vadd.f32 0.0, %v589
    %591 = vmatmul.f32.gmra.mxu0 %v540
    %v592 = vpop.f32.mrf.mxu0
    %v593 = vadd.f32 0.0, %v592
    %594 = vdwg.mxu0
    %s595 = scalar_lea.vmem %s0, 256
    %v596 = vld [vmem:[%s595] sm:$0xff]
    %v597 = vld [vmem:[%s595 + $0x8] sm:$0xff]
    %v598 = vld [vmem:[%s595 + $0x10] sm:$0xff]
    %v599 = vld [vmem:[%s595 + $0x18] sm:$0xff]
    %v600 = vld [vmem:[%s595 + $0x20] sm:$0xff]
    %v601 = vld [vmem:[%s595 + $0x28] sm:$0xff]
    %v602 = vld [vmem:[%s595 + $0x30] sm:$0xff]
    %v603 = vld [vmem:[%s595 + $0x38] sm:$0xff]
    %v604 = vld [vmem:[%s595 + $0x40] sm:$0xff]
    %v605 = vld [vmem:[%s595 + $0x48] sm:$0xff]
    %v606 = vld [vmem:[%s595 + $0x50] sm:$0xff]
    %v607 = vld [vmem:[%s595 + $0x58] sm:$0xff]
    %v608 = vld [vmem:[%s595 + $0x60] sm:$0xff]
    %v609 = vld [vmem:[%s595 + $0x68] sm:$0xff]
    %v610 = vld [vmem:[%s595 + $0x70] sm:$0xff]
    %v611 = vld [vmem:[%s595 + $0x78] sm:$0xff]
    %v612 = vld [vmem:[%s595 + $0x80] sm:$0xff]
    %v613 = vld [vmem:[%s595 + $0x88] sm:$0xff]
    %v614 = vld [vmem:[%s595 + $0x90] sm:$0xff]
    %v615 = vld [vmem:[%s595 + $0x98] sm:$0xff]
    %v616 = vld [vmem:[%s595 + $0xa0] sm:$0xff]
    %v617 = vld [vmem:[%s595 + $0xa8] sm:$0xff]
    %v618 = vld [vmem:[%s595 + $0xb0] sm:$0xff]
    %v619 = vld [vmem:[%s595 + $0xb8] sm:$0xff]
    %v620 = vld [vmem:[%s595 + $0xc0] sm:$0xff]
    %v621 = vld [vmem:[%s595 + $0xc8] sm:$0xff]
    %v622 = vld [vmem:[%s595 + $0xd0] sm:$0xff]
    %v623 = vld [vmem:[%s595 + $0xd8] sm:$0xff]
    %v624 = vld [vmem:[%s595 + $0xe0] sm:$0xff]
    %v625 = vld [vmem:[%s595 + $0xe8] sm:$0xff]
    %v626 = vld [vmem:[%s595 + $0xf0] sm:$0xff]
    %v627 = vld [vmem:[%s595 + $0xf8] sm:$0xff]
    %v629 = vsel %vm83, %v596, 0
    %v632 = vsel %vm83, %v597, 0
    %v635 = vsel %vm83, %v598, 0
    %v638 = vsel %vm83, %v599, 0
    %v641 = vsel %vm83, %v600, 0
    %v644 = vsel %vm83, %v601, 0
    %v647 = vsel %vm83, %v602, 0
    %v650 = vsel %vm83, %v603, 0
    %v653 = vsel %vm83, %v604, 0
    %v656 = vsel %vm83, %v605, 0
    %v659 = vsel %vm83, %v606, 0
    %v662 = vsel %vm83, %v607, 0
    %v665 = vsel %vm83, %v608, 0
    %v668 = vsel %vm83, %v609, 0
    %v671 = vsel %vm83, %v610, 0
    %v674 = vsel %vm83, %v611, 0
    %v677 = vsel %vm83, %v612, 0
    %v680 = vsel %vm83, %v613, 0
    %v683 = vsel %vm83, %v614, 0
    %v686 = vsel %vm83, %v615, 0
    %v689 = vsel %vm83, %v616, 0
    %v692 = vsel %vm83, %v617, 0
    %v695 = vsel %vm83, %v618, 0
    %v698 = vsel %vm83, %v619, 0
    %v701 = vsel %vm83, %v620, 0
    %v704 = vsel %vm83, %v621, 0
    %v707 = vsel %vm83, %v622, 0
    %v710 = vsel %vm83, %v623, 0
    %v713 = vsel %vm83, %v624, 0
    %v716 = vsel %vm83, %v625, 0
    %v719 = vsel %vm83, %v626, 0
    %v722 = vsel %vm83, %v627, 0
    %724 = vmatpush.msra.mxu0 0.0
    %725 = vmatpush.msra.mxu0 0.0
    %726 = vmatpush.msra.mxu0 0.0
    %727 = vmatpush.msra.mxu0 0.0
    %728 = vmatpush.msra.mxu0 0.0
    %729 = vmatpush.msra.mxu0 0.0
    %730 = vmatpush.msra.mxu0 0.0
    %731 = vmatpush.msra.mxu0 0.0
    %732 = vmatpush.msra.mxu0 0.0
    %733 = vmatpush.msra.mxu0 0.0
    %734 = vmatpush.msra.mxu0 0.0
    %735 = vmatpush.msra.mxu0 0.0
    %736 = vmatpush.msra.mxu0 0.0
    %737 = vmatpush.msra.mxu0 0.0
    %738 = vmatpush.msra.mxu0 %v593
    %739 = vmatpush.msra.mxu0 %v590
    %740 = vmatmul.f32.gmra.mxu0 %v629
    %v741 = vpop.f32.mrf.mxu0
    %v742 = vadd.f32 0.0, %v741
    %743 = vmatmul.f32.gmra.mxu0 %v632
    %v744 = vpop.f32.mrf.mxu0
    %v745 = vadd.f32 0.0, %v744
    %746 = vmatmul.f32.gmra.mxu0 %v635
    %v747 = vpop.f32.mrf.mxu0
    %v748 = vadd.f32 0.0, %v747
    %749 = vmatmul.f32.gmra.mxu0 %v638
    %v750 = vpop.f32.mrf.mxu0
    %v751 = vadd.f32 0.0, %v750
    %752 = vmatmul.f32.gmra.mxu0 %v641
    %v753 = vpop.f32.mrf.mxu0
    %v754 = vadd.f32 0.0, %v753
    %755 = vmatmul.f32.gmra.mxu0 %v644
    %v756 = vpop.f32.mrf.mxu0
    %v757 = vadd.f32 0.0, %v756
    %758 = vmatmul.f32.gmra.mxu0 %v647
    %v759 = vpop.f32.mrf.mxu0
    %v760 = vadd.f32 0.0, %v759
    %761 = vmatmul.f32.gmra.mxu0 %v650
    %v762 = vpop.f32.mrf.mxu0
    %v763 = vadd.f32 0.0, %v762
    %764 = vmatmul.f32.gmra.mxu0 %v653
    %v765 = vpop.f32.mrf.mxu0
    %v766 = vadd.f32 0.0, %v765
    %767 = vmatmul.f32.gmra.mxu0 %v656
    %v768 = vpop.f32.mrf.mxu0
    %v769 = vadd.f32 0.0, %v768
    %770 = vmatmul.f32.gmra.mxu0 %v659
    %v771 = vpop.f32.mrf.mxu0
    %v772 = vadd.f32 0.0, %v771
    %773 = vmatmul.f32.gmra.mxu0 %v662
    %v774 = vpop.f32.mrf.mxu0
    %v775 = vadd.f32 0.0, %v774
    %776 = vmatmul.f32.gmra.mxu0 %v665
    %v777 = vpop.f32.mrf.mxu0
    %v778 = vadd.f32 0.0, %v777
    %779 = vmatmul.f32.gmra.mxu0 %v668
    %v780 = vpop.f32.mrf.mxu0
    %v781 = vadd.f32 0.0, %v780
    %782 = vmatmul.f32.gmra.mxu0 %v671
    %v783 = vpop.f32.mrf.mxu0
    %v784 = vadd.f32 0.0, %v783
    %785 = vmatmul.f32.gmra.mxu0 %v674
    %v786 = vpop.f32.mrf.mxu0
    %v787 = vadd.f32 0.0, %v786
    %788 = vmatmul.f32.gmra.mxu0 %v677
    %v789 = vpop.f32.mrf.mxu0
    %v790 = vadd.f32 0.0, %v789
    %791 = vmatmul.f32.gmra.mxu0 %v680
    %v792 = vpop.f32.mrf.mxu0
    %v793 = vadd.f32 0.0, %v792
    %794 = vmatmul.f32.gmra.mxu0 %v683
    %v795 = vpop.f32.mrf.mxu0
    %v796 = vadd.f32 0.0, %v795
    %797 = vmatmul.f32.gmra.mxu0 %v686
    %v798 = vpop.f32.mrf.mxu0
    %v799 = vadd.f32 0.0, %v798
    %800 = vmatmul.f32.gmra.mxu0 %v689
    %v801 = vpop.f32.mrf.mxu0
    %v802 = vadd.f32 0.0, %v801
    %803 = vmatmul.f32.gmra.mxu0 %v692
    %v804 = vpop.f32.mrf.mxu0
    %v805 = vadd.f32 0.0, %v804
    %806 = vmatmul.f32.gmra.mxu0 %v695
    %v807 = vpop.f32.mrf.mxu0
    %v808 = vadd.f32 0.0, %v807
    %809 = vmatmul.f32.gmra.mxu0 %v698
    %v810 = vpop.f32.mrf.mxu0
    %v811 = vadd.f32 0.0, %v810
    %812 = vmatmul.f32.gmra.mxu0 %v701
    %v813 = vpop.f32.mrf.mxu0
    %v814 = vadd.f32 0.0, %v813
    %815 = vmatmul.f32.gmra.mxu0 %v704
    %v816 = vpop.f32.mrf.mxu0
    %v817 = vadd.f32 0.0, %v816
    %818 = vmatmul.f32.gmra.mxu0 %v707
    %v819 = vpop.f32.mrf.mxu0
    %v820 = vadd.f32 0.0, %v819
    %821 = vmatmul.f32.gmra.mxu0 %v710
    %v822 = vpop.f32.mrf.mxu0
    %v823 = vadd.f32 0.0, %v822
    %824 = vmatmul.f32.gmra.mxu0 %v713
    %v825 = vpop.f32.mrf.mxu0
    %v826 = vadd.f32 0.0, %v825
    %827 = vmatmul.f32.gmra.mxu0 %v716
    %v828 = vpop.f32.mrf.mxu0
    %v829 = vadd.f32 0.0, %v828
    %830 = vmatmul.f32.gmra.mxu0 %v719
    %v831 = vpop.f32.mrf.mxu0
    %v832 = vadd.f32 0.0, %v831
    %833 = vmatmul.f32.gmra.mxu0 %v722
    %v834 = vpop.f32.mrf.mxu0
    %v835 = vadd.f32 0.0, %v834
    %836 = vdwg.mxu0
    %v837 = vmax.f32 %v742, 0.0
    %v838 = vmax.f32 %v745, 0.0
    %v839 = vmax.f32 %v748, 0.0
    %v840 = vmax.f32 %v751, 0.0
    %v841 = vmax.f32 %v754, 0.0
    %v842 = vmax.f32 %v757, 0.0
    %v843 = vmax.f32 %v760, 0.0
    %v844 = vmax.f32 %v763, 0.0
    %v845 = vmax.f32 %v766, 0.0
    %v846 = vmax.f32 %v769, 0.0
    %v847 = vmax.f32 %v772, 0.0
    %v848 = vmax.f32 %v775, 0.0
    %v849 = vmax.f32 %v778, 0.0
    %v850 = vmax.f32 %v781, 0.0
    %v851 = vmax.f32 %v784, 0.0
    %v852 = vmax.f32 %v787, 0.0
    %v853 = vmax.f32 %v790, 0.0
    %v854 = vmax.f32 %v793, 0.0
    %v855 = vmax.f32 %v796, 0.0
    %v856 = vmax.f32 %v799, 0.0
    %v857 = vmax.f32 %v802, 0.0
    %v858 = vmax.f32 %v805, 0.0
    %v859 = vmax.f32 %v808, 0.0
    %v860 = vmax.f32 %v811, 0.0
    %v861 = vmax.f32 %v814, 0.0
    %v862 = vmax.f32 %v817, 0.0
    %v863 = vmax.f32 %v820, 0.0
    %v864 = vmax.f32 %v823, 0.0
    %v865 = vmax.f32 %v826, 0.0
    %v866 = vmax.f32 %v829, 0.0
    %v867 = vmax.f32 %v832, 0.0
    %v868 = vmax.f32 %v835, 0.0
    %v869 = vsel %vm416, %v837, 0.0
    %v870 = vsel %vm416, %v838, 0.0
    %v871 = vadd.f32 %v869, %v870
    %v872 = vsel %vm416, %v839, 0.0
    %v873 = vadd.f32 %v871, %v872
    %v874 = vsel %vm416, %v840, 0.0
    %v875 = vadd.f32 %v873, %v874
    %v876 = vsel %vm416, %v841, 0.0
    %v877 = vadd.f32 %v875, %v876
    %v878 = vsel %vm416, %v842, 0.0
    %v879 = vadd.f32 %v877, %v878
    %v880 = vsel %vm416, %v843, 0.0
    %v881 = vadd.f32 %v879, %v880
    %v882 = vsel %vm416, %v844, 0.0
    %v883 = vadd.f32 %v881, %v882
    %v884 = vsel %vm416, %v845, 0.0
    %v885 = vadd.f32 %v883, %v884
    %v886 = vsel %vm416, %v846, 0.0
    %v887 = vadd.f32 %v885, %v886
    %v888 = vsel %vm416, %v847, 0.0
    %v889 = vadd.f32 %v887, %v888
    %v890 = vsel %vm416, %v848, 0.0
    %v891 = vadd.f32 %v889, %v890
    %v892 = vsel %vm416, %v849, 0.0
    %v893 = vadd.f32 %v891, %v892
    %v894 = vsel %vm416, %v850, 0.0
    %v895 = vadd.f32 %v893, %v894
    %v896 = vsel %vm416, %v851, 0.0
    %v897 = vadd.f32 %v895, %v896
    %v898 = vsel %vm416, %v852, 0.0
    %v899 = vadd.f32 %v897, %v898
    %v900 = vrot.slane %v899, 4
    %v901 = vadd.f32 %v899, %v900
    %v902 = vrot.slane %v901, 2
    %v903 = vadd.f32 %v901, %v902
    %v904 = vrot.slane %v903, 1
    %v905 = vadd.f32 %v903, %v904
    %v906 = vsel %vm416, %v853, 0.0
    %v907 = vsel %vm416, %v854, 0.0
    %v908 = vadd.f32 %v906, %v907
    %v909 = vsel %vm416, %v855, 0.0
    %v910 = vadd.f32 %v908, %v909
    %v911 = vsel %vm416, %v856, 0.0
    %v912 = vadd.f32 %v910, %v911
    %v913 = vsel %vm416, %v857, 0.0
    %v914 = vadd.f32 %v912, %v913
    %v915 = vsel %vm416, %v858, 0.0
    %v916 = vadd.f32 %v914, %v915
    %v917 = vsel %vm416, %v859, 0.0
    %v918 = vadd.f32 %v916, %v917
    %v919 = vsel %vm416, %v860, 0.0
    %v920 = vadd.f32 %v918, %v919
    %v921 = vsel %vm416, %v861, 0.0
    %v922 = vadd.f32 %v920, %v921
    %v923 = vsel %vm416, %v862, 0.0
    %v924 = vadd.f32 %v922, %v923
    %v925 = vsel %vm416, %v863, 0.0
    %v926 = vadd.f32 %v924, %v925
    %v927 = vsel %vm416, %v864, 0.0
    %v928 = vadd.f32 %v926, %v927
    %v929 = vsel %vm416, %v865, 0.0
    %v930 = vadd.f32 %v928, %v929
    %v931 = vsel %vm416, %v866, 0.0
    %v932 = vadd.f32 %v930, %v931
    %v933 = vsel %vm416, %v867, 0.0
    %v934 = vadd.f32 %v932, %v933
    %v935 = vsel %vm416, %v868, 0.0
    %v936 = vadd.f32 %v934, %v935
    %v937 = vrot.slane %v936, 4
    %v938 = vadd.f32 %v936, %v937
    %v939 = vrot.slane %v938, 2
    %v940 = vadd.f32 %v938, %v939
    %v941 = vrot.slane %v940, 1
    %v942 = vadd.f32 %v940, %v941
    %v943 = vsel %vm491, %v905, %v942
    %v944 = vmul.f32 %v943, 0.007812461
    %v945 = vsel %vm494, %v944, 0.0
    %946 = vadd.xlane.f32.xlu0 %v945
    %v947 = vpop.xlane.xlu0 %946
    %v948 = vmul.f32 %v947, %v504
    %s949 = scalar_lea.vmem [#allocation2], 32
    %v950 = vld [vmem:[%s949] sm:$0xff]
    %v951 = vld [vmem:[%s949 + $0x8] sm:$0xff]
    %s952 = scalar_lea.vmem %s2, 16
    %v953 = vld [vmem:[%s952] sm:$0x1f]
    %v955 = vrot.slane %v953, 1
    %v956 = vrot.slane %v953, 2
    %v957 = vrot.slane %v953, 3
    %v958 = vrot.slane %v953, 4
    %v959 = vperm.slane %v953, 0
    %v960 = vperm.slane %v955, 0
    %v961 = vperm.slane %v956, 0
    %v962 = vperm.slane %v957, 0
    %v963 = vperm.slane %v958, 0
    %v969 = vmul.f32 %v950, %v959
    %v970 = vmul.f32 %v951, %v959
    %v971 = vmul.f32 %v950, %v960
    %v972 = vmul.f32 %v951, %v960
    %v973 = vmul.f32 %v950, %v961
    %v974 = vmul.f32 %v951, %v961
    %v975 = vmul.f32 %v950, %v962
    %v976 = vmul.f32 %v951, %v962
    %v977 = vmul.f32 %v950, %v963
    %v978 = vmul.f32 %v951, %v963
    %v980 = vsel %vm83, %v950, 0
    %v983 = vsel %vm83, %v951, 0
    %v986 = vsel %vm83, %v969, 0
    %v989 = vsel %vm83, %v970, 0
    %v992 = vsel %vm83, %v971, 0
    %v995 = vsel %vm83, %v972, 0
    %v998 = vsel %vm83, %v973, 0
    %v1001 = vsel %vm83, %v974, 0
    %v1004 = vsel %vm83, %v975, 0
    %v1007 = vsel %vm83, %v976, 0
    %v1010 = vsel %vm83, %v977, 0
    %v1013 = vsel %vm83, %v978, 0
    %1015 = vmatpush.xpose.msra.mxu0 0.0
    %1016 = vmatpush.xpose.msra.mxu0 0.0
    %1017 = vmatpush.xpose.msra.mxu0 0.0
    %1018 = vmatpush.xpose.msra.mxu0 0.0
    %1019 = vmatpush.xpose.msra.mxu0 0.0
    %1020 = vmatpush.xpose.msra.mxu0 0.0
    %1021 = vmatpush.xpose.msra.mxu0 %v1013
    %1022 = vmatpush.xpose.msra.mxu0 %v1010
    %1023 = vmatpush.xpose.msra.mxu0 %v1007
    %1024 = vmatpush.xpose.msra.mxu0 %v1004
    %1025 = vmatpush.xpose.msra.mxu0 %v1001
    %1026 = vmatpush.xpose.msra.mxu0 %v998
    %1027 = vmatpush.xpose.msra.mxu0 %v995
    %1028 = vmatpush.xpose.msra.mxu0 %v992
    %1029 = vmatpush.xpose.msra.mxu0 %v989
    %1030 = vmatpush.xpose.msra.mxu0 %v986
    %1031 = vmatmul.f32.gmra.mxu0 %v980
    %v1032 = vpop.f32.mrf.mxu0
    %v1033 = vadd.f32 0.0, %v1032
    %1034 = vmatmul.f32.gmra.mxu0 %v983
    %v1035 = vpop.f32.mrf.mxu0
    %v1036 = vadd.f32 0.0, %v1035
    %1037 = vdwg.mxu0
    %s1038 = scalar_lea.vmem %s0, 512
    %v1039 = vld [vmem:[%s1038] sm:$0xff]
    %v1040 = vld [vmem:[%s1038 + $0x8] sm:$0xff]
    %v1041 = vld [vmem:[%s1038 + $0x10] sm:$0xff]
    %v1042 = vld [vmem:[%s1038 + $0x18] sm:$0xff]
    %v1043 = vld [vmem:[%s1038 + $0x20] sm:$0xff]
    %v1044 = vld [vmem:[%s1038 + $0x28] sm:$0xff]
    %v1045 = vld [vmem:[%s1038 + $0x30] sm:$0xff]
    %v1046 = vld [vmem:[%s1038 + $0x38] sm:$0xff]
    %v1047 = vld [vmem:[%s1038 + $0x40] sm:$0xff]
    %v1048 = vld [vmem:[%s1038 + $0x48] sm:$0xff]
    %v1049 = vld [vmem:[%s1038 + $0x50] sm:$0xff]
    %v1050 = vld [vmem:[%s1038 + $0x58] sm:$0xff]
    %v1051 = vld [vmem:[%s1038 + $0x60] sm:$0xff]
    %v1052 = vld [vmem:[%s1038 + $0x68] sm:$0xff]
    %v1053 = vld [vmem:[%s1038 + $0x70] sm:$0xff]
    %v1054 = vld [vmem:[%s1038 + $0x78] sm:$0xff]
    %v1055 = vld [vmem:[%s1038 + $0x80] sm:$0xff]
    %v1056 = vld [vmem:[%s1038 + $0x88] sm:$0xff]
    %v1057 = vld [vmem:[%s1038 + $0x90] sm:$0xff]
    %v1058 = vld [vmem:[%s1038 + $0x98] sm:$0xff]
    %v1059 = vld [vmem:[%s1038 + $0xa0] sm:$0xff]
    %v1060 = vld [vmem:[%s1038 + $0xa8] sm:$0xff]
    %v1061 = vld [vmem:[%s1038 + $0xb0] sm:$0xff]
    %v1062 = vld [vmem:[%s1038 + $0xb8] sm:$0xff]
    %v1063 = vld [vmem:[%s1038 + $0xc0] sm:$0xff]
    %v1064 = vld [vmem:[%s1038 + $0xc8] sm:$0xff]
    %v1065 = vld [vmem:[%s1038 + $0xd0] sm:$0xff]
    %v1066 = vld [vmem:[%s1038 + $0xd8] sm:$0xff]
    %v1067 = vld [vmem:[%s1038 + $0xe0] sm:$0xff]
    %v1068 = vld [vmem:[%s1038 + $0xe8] sm:$0xff]
    %v1069 = vld [vmem:[%s1038 + $0xf0] sm:$0xff]
    %v1070 = vld [vmem:[%s1038 + $0xf8] sm:$0xff]
    %v1072 = vsel %vm83, %v1039, 0
    %v1075 = vsel %vm83, %v1040, 0
    %v1078 = vsel %vm83, %v1041, 0
    %v1081 = vsel %vm83, %v1042, 0
    %v1084 = vsel %vm83, %v1043, 0
    %v1087 = vsel %vm83, %v1044, 0
    %v1090 = vsel %vm83, %v1045, 0
    %v1093 = vsel %vm83, %v1046, 0
    %v1096 = vsel %vm83, %v1047, 0
    %v1099 = vsel %vm83, %v1048, 0
    %v1102 = vsel %vm83, %v1049, 0
    %v1105 = vsel %vm83, %v1050, 0
    %v1108 = vsel %vm83, %v1051, 0
    %v1111 = vsel %vm83, %v1052, 0
    %v1114 = vsel %vm83, %v1053, 0
    %v1117 = vsel %vm83, %v1054, 0
    %v1120 = vsel %vm83, %v1055, 0
    %v1123 = vsel %vm83, %v1056, 0
    %v1126 = vsel %vm83, %v1057, 0
    %v1129 = vsel %vm83, %v1058, 0
    %v1132 = vsel %vm83, %v1059, 0
    %v1135 = vsel %vm83, %v1060, 0
    %v1138 = vsel %vm83, %v1061, 0
    %v1141 = vsel %vm83, %v1062, 0
    %v1144 = vsel %vm83, %v1063, 0
    %v1147 = vsel %vm83, %v1064, 0
    %v1150 = vsel %vm83, %v1065, 0
    %v1153 = vsel %vm83, %v1066, 0
    %v1156 = vsel %vm83, %v1067, 0
    %v1159 = vsel %vm83, %v1068, 0
    %v1162 = vsel %vm83, %v1069, 0
    %v1165 = vsel %vm83, %v1070, 0
    %1167 = vmatpush.msra.mxu0 0.0
    %1168 = vmatpush.msra.mxu0 0.0
    %1169 = vmatpush.msra.mxu0 0.0
    %1170 = vmatpush.msra.mxu0 0.0
    %1171 = vmatpush.msra.mxu0 0.0
    %1172 = vmatpush.msra.mxu0 0.0
    %1173 = vmatpush.msra.mxu0 0.0
    %1174 = vmatpush.msra.mxu0 0.0
    %1175 = vmatpush.msra.mxu0 0.0
    %1176 = vmatpush.msra.mxu0 0.0
    %1177 = vmatpush.msra.mxu0 0.0
    %1178 = vmatpush.msra.mxu0 0.0
    %1179 = vmatpush.msra.mxu0 0.0
    %1180 = vmatpush.msra.mxu0 0.0
    %1181 = vmatpush.msra.mxu0 %v1036
    %1182 = vmatpush.msra.mxu0 %v1033
    %1183 = vmatmul.f32.gmra.mxu0 %v1072
    %v1184 = vpop.f32.mrf.mxu0
    %v1185 = vadd.f32 0.0, %v1184
    %1186 = vmatmul.f32.gmra.mxu0 %v1075
    %v1187 = vpop.f32.mrf.mxu0
    %v1188 = vadd.f32 0.0, %v1187
    %1189 = vmatmul.f32.gmra.mxu0 %v1078
    %v1190 = vpop.f32.mrf.mxu0
    %v1191 = vadd.f32 0.0, %v1190
    %1192 = vmatmul.f32.gmra.mxu0 %v1081
    %v1193 = vpop.f32.mrf.mxu0
    %v1194 = vadd.f32 0.0, %v1193
    %1195 = vmatmul.f32.gmra.mxu0 %v1084
    %v1196 = vpop.f32.mrf.mxu0
    %v1197 = vadd.f32 0.0, %v1196
    %1198 = vmatmul.f32.gmra.mxu0 %v1087
    %v1199 = vpop.f32.mrf.mxu0
    %v1200 = vadd.f32 0.0, %v1199
    %1201 = vmatmul.f32.gmra.mxu0 %v1090
    %v1202 = vpop.f32.mrf.mxu0
    %v1203 = vadd.f32 0.0, %v1202
    %1204 = vmatmul.f32.gmra.mxu0 %v1093
    %v1205 = vpop.f32.mrf.mxu0
    %v1206 = vadd.f32 0.0, %v1205
    %1207 = vmatmul.f32.gmra.mxu0 %v1096
    %v1208 = vpop.f32.mrf.mxu0
    %v1209 = vadd.f32 0.0, %v1208
    %1210 = vmatmul.f32.gmra.mxu0 %v1099
    %v1211 = vpop.f32.mrf.mxu0
    %v1212 = vadd.f32 0.0, %v1211
    %1213 = vmatmul.f32.gmra.mxu0 %v1102
    %v1214 = vpop.f32.mrf.mxu0
    %v1215 = vadd.f32 0.0, %v1214
    %1216 = vmatmul.f32.gmra.mxu0 %v1105
    %v1217 = vpop.f32.mrf.mxu0
    %v1218 = vadd.f32 0.0, %v1217
    %1219 = vmatmul.f32.gmra.mxu0 %v1108
    %v1220 = vpop.f32.mrf.mxu0
    %v1221 = vadd.f32 0.0, %v1220
    %1222 = vmatmul.f32.gmra.mxu0 %v1111
    %v1223 = vpop.f32.mrf.mxu0
    %v1224 = vadd.f32 0.0, %v1223
    %1225 = vmatmul.f32.gmra.mxu0 %v1114
    %v1226 = vpop.f32.mrf.mxu0
    %v1227 = vadd.f32 0.0, %v1226
    %1228 = vmatmul.f32.gmra.mxu0 %v1117
    %v1229 = vpop.f32.mrf.mxu0
    %v1230 = vadd.f32 0.0, %v1229
    %1231 = vmatmul.f32.gmra.mxu0 %v1120
    %v1232 = vpop.f32.mrf.mxu0
    %v1233 = vadd.f32 0.0, %v1232
    %1234 = vmatmul.f32.gmra.mxu0 %v1123
    %v1235 = vpop.f32.mrf.mxu0
    %v1236 = vadd.f32 0.0, %v1235
    %1237 = vmatmul.f32.gmra.mxu0 %v1126
    %v1238 = vpop.f32.mrf.mxu0
    %v1239 = vadd.f32 0.0, %v1238
    %1240 = vmatmul.f32.gmra.mxu0 %v1129
    %v1241 = vpop.f32.mrf.mxu0
    %v1242 = vadd.f32 0.0, %v1241
    %1243 = vmatmul.f32.gmra.mxu0 %v1132
    %v1244 = vpop.f32.mrf.mxu0
    %v1245 = vadd.f32 0.0, %v1244
    %1246 = vmatmul.f32.gmra.mxu0 %v1135
    %v1247 = vpop.f32.mrf.mxu0
    %v1248 = vadd.f32 0.0, %v1247
    %1249 = vmatmul.f32.gmra.mxu0 %v1138
    %v1250 = vpop.f32.mrf.mxu0
    %v1251 = vadd.f32 0.0, %v1250
    %1252 = vmatmul.f32.gmra.mxu0 %v1141
    %v1253 = vpop.f32.mrf.mxu0
    %v1254 = vadd.f32 0.0, %v1253
    %1255 = vmatmul.f32.gmra.mxu0 %v1144
    %v1256 = vpop.f32.mrf.mxu0
    %v1257 = vadd.f32 0.0, %v1256
    %1258 = vmatmul.f32.gmra.mxu0 %v1147
    %v1259 = vpop.f32.mrf.mxu0
    %v1260 = vadd.f32 0.0, %v1259
    %1261 = vmatmul.f32.gmra.mxu0 %v1150
    %v1262 = vpop.f32.mrf.mxu0
    %v1263 = vadd.f32 0.0, %v1262
    %1264 = vmatmul.f32.gmra.mxu0 %v1153
    %v1265 = vpop.f32.mrf.mxu0
    %v1266 = vadd.f32 0.0, %v1265
    %1267 = vmatmul.f32.gmra.mxu0 %v1156
    %v1268 = vpop.f32.mrf.mxu0
    %v1269 = vadd.f32 0.0, %v1268
    %1270 = vmatmul.f32.gmra.mxu0 %v1159
    %v1271 = vpop.f32.mrf.mxu0
    %v1272 = vadd.f32 0.0, %v1271
    %1273 = vmatmul.f32.gmra.mxu0 %v1162
    %v1274 = vpop.f32.mrf.mxu0
    %v1275 = vadd.f32 0.0, %v1274
    %1276 = vmatmul.f32.gmra.mxu0 %v1165
    %v1277 = vpop.f32.mrf.mxu0
    %v1278 = vadd.f32 0.0, %v1277
    %1279 = vdwg.mxu0
    %v1280 = vmax.f32 %v1185, 0.0
    %v1281 = vmax.f32 %v1188, 0.0
    %v1282 = vmax.f32 %v1191, 0.0
    %v1283 = vmax.f32 %v1194, 0.0
    %v1284 = vmax.f32 %v1197, 0.0
    %v1285 = vmax.f32 %v1200, 0.0
    %v1286 = vmax.f32 %v1203, 0.0
    %v1287 = vmax.f32 %v1206, 0.0
    %v1288 = vmax.f32 %v1209, 0.0
    %v1289 = vmax.f32 %v1212, 0.0
    %v1290 = vmax.f32 %v1215, 0.0
    %v1291 = vmax.f32 %v1218, 0.0
    %v1292 = vmax.f32 %v1221, 0.0
    %v1293 = vmax.f32 %v1224, 0.0
    %v1294 = vmax.f32 %v1227, 0.0
    %v1295 = vmax.f32 %v1230, 0.0
    %v1296 = vmax.f32 %v1233, 0.0
    %v1297 = vmax.f32 %v1236, 0.0
    %v1298 = vmax.f32 %v1239, 0.0
    %v1299 = vmax.f32 %v1242, 0.0
    %v1300 = vmax.f32 %v1245, 0.0
    %v1301 = vmax.f32 %v1248, 0.0
    %v1302 = vmax.f32 %v1251, 0.0
    %v1303 = vmax.f32 %v1254, 0.0
    %v1304 = vmax.f32 %v1257, 0.0
    %v1305 = vmax.f32 %v1260, 0.0
    %v1306 = vmax.f32 %v1263, 0.0
    %v1307 = vmax.f32 %v1266, 0.0
    %v1308 = vmax.f32 %v1269, 0.0
    %v1309 = vmax.f32 %v1272, 0.0
    %v1310 = vmax.f32 %v1275, 0.0
    %v1311 = vmax.f32 %v1278, 0.0
    %v1312 = vsel %vm416, %v1280, 0.0
    %v1313 = vsel %vm416, %v1281, 0.0
    %v1314 = vadd.f32 %v1312, %v1313
    %v1315 = vsel %vm416, %v1282, 0.0
    %v1316 = vadd.f32 %v1314, %v1315
    %v1317 = vsel %vm416, %v1283, 0.0
    %v1318 = vadd.f32 %v1316, %v1317
    %v1319 = vsel %vm416, %v1284, 0.0
    %v1320 = vadd.f32 %v1318, %v1319
    %v1321 = vsel %vm416, %v1285, 0.0
    %v1322 = vadd.f32 %v1320, %v1321
    %v1323 = vsel %vm416, %v1286, 0.0
    %v1324 = vadd.f32 %v1322, %v1323
    %v1325 = vsel %vm416, %v1287, 0.0
    %v1326 = vadd.f32 %v1324, %v1325
    %v1327 = vsel %vm416, %v1288, 0.0
    %v1328 = vadd.f32 %v1326, %v1327
    %v1329 = vsel %vm416, %v1289, 0.0
    %v1330 = vadd.f32 %v1328, %v1329
    %v1331 = vsel %vm416, %v1290, 0.0
    %v1332 = vadd.f32 %v1330, %v1331
    %v1333 = vsel %vm416, %v1291, 0.0
    %v1334 = vadd.f32 %v1332, %v1333
    %v1335 = vsel %vm416, %v1292, 0.0
    %v1336 = vadd.f32 %v1334, %v1335
    %v1337 = vsel %vm416, %v1293, 0.0
    %v1338 = vadd.f32 %v1336, %v1337
    %v1339 = vsel %vm416, %v1294, 0.0
    %v1340 = vadd.f32 %v1338, %v1339
    %v1341 = vsel %vm416, %v1295, 0.0
    %v1342 = vadd.f32 %v1340, %v1341
    %v1343 = vrot.slane %v1342, 4
    %v1344 = vadd.f32 %v1342, %v1343
    %v1345 = vrot.slane %v1344, 2
    %v1346 = vadd.f32 %v1344, %v1345
    %v1347 = vrot.slane %v1346, 1
    %v1348 = vadd.f32 %v1346, %v1347
    %v1349 = vsel %vm416, %v1296, 0.0
    %v1350 = vsel %vm416, %v1297, 0.0
    %v1351 = vadd.f32 %v1349, %v1350
    %v1352 = vsel %vm416, %v1298, 0.0
    %v1353 = vadd.f32 %v1351, %v1352
    %v1354 = vsel %vm416, %v1299, 0.0
    %v1355 = vadd.f32 %v1353, %v1354
    %v1356 = vsel %vm416, %v1300, 0.0
    %v1357 = vadd.f32 %v1355, %v1356
    %v1358 = vsel %vm416, %v1301, 0.0
    %v1359 = vadd.f32 %v1357, %v1358
    %v1360 = vsel %vm416, %v1302, 0.0
    %v1361 = vadd.f32 %v1359, %v1360
    %v1362 = vsel %vm416, %v1303, 0.0
    %v1363 = vadd.f32 %v1361, %v1362
    %v1364 = vsel %vm416, %v1304, 0.0
    %v1365 = vadd.f32 %v1363, %v1364
    %v1366 = vsel %vm416, %v1305, 0.0
    %v1367 = vadd.f32 %v1365, %v1366
    %v1368 = vsel %vm416, %v1306, 0.0
    %v1369 = vadd.f32 %v1367, %v1368
    %v1370 = vsel %vm416, %v1307, 0.0
    %v1371 = vadd.f32 %v1369, %v1370
    %v1372 = vsel %vm416, %v1308, 0.0
    %v1373 = vadd.f32 %v1371, %v1372
    %v1374 = vsel %vm416, %v1309, 0.0
    %v1375 = vadd.f32 %v1373, %v1374
    %v1376 = vsel %vm416, %v1310, 0.0
    %v1377 = vadd.f32 %v1375, %v1376
    %v1378 = vsel %vm416, %v1311, 0.0
    %v1379 = vadd.f32 %v1377, %v1378
    %v1380 = vrot.slane %v1379, 4
    %v1381 = vadd.f32 %v1379, %v1380
    %v1382 = vrot.slane %v1381, 2
    %v1383 = vadd.f32 %v1381, %v1382
    %v1384 = vrot.slane %v1383, 1
    %v1385 = vadd.f32 %v1383, %v1384
    %v1386 = vsel %vm491, %v1348, %v1385
    %v1387 = vmul.f32 %v1386, 0.007812461
    %v1388 = vsel %vm494, %v1387, 0.0
    %1389 = vadd.xlane.f32.xlu0 %v1388
    %v1390 = vpop.xlane.xlu0 %1389
    %v1391 = vmul.f32 %v1390, %v504
    %s1392 = scalar_lea.vmem [#allocation2], 48
    %v1393 = vld [vmem:[%s1392] sm:$0xff]
    %v1394 = vld [vmem:[%s1392 + $0x8] sm:$0xff]
    %s1395 = scalar_lea.vmem %s2, 24
    %v1396 = vld [vmem:[%s1395] sm:$0x1f]
    %v1398 = vrot.slane %v1396, 1
    %v1399 = vrot.slane %v1396, 2
    %v1400 = vrot.slane %v1396, 3
    %v1401 = vrot.slane %v1396, 4
    %v1402 = vperm.slane %v1396, 0
    %v1403 = vperm.slane %v1398, 0
    %v1404 = vperm.slane %v1399, 0
    %v1405 = vperm.slane %v1400, 0
    %v1406 = vperm.slane %v1401, 0
    %v1412 = vmul.f32 %v1393, %v1402
    %v1413 = vmul.f32 %v1394, %v1402
    %v1414 = vmul.f32 %v1393, %v1403
    %v1415 = vmul.f32 %v1394, %v1403
    %v1416 = vmul.f32 %v1393, %v1404
    %v1417 = vmul.f32 %v1394, %v1404
    %v1418 = vmul.f32 %v1393, %v1405
    %v1419 = vmul.f32 %v1394, %v1405
    %v1420 = vmul.f32 %v1393, %v1406
    %v1421 = vmul.f32 %v1394, %v1406
    %v1423 = vsel %vm83, %v1393, 0
    %v1426 = vsel %vm83, %v1394, 0
    %v1429 = vsel %vm83, %v1412, 0
    %v1432 = vsel %vm83, %v1413, 0
    %v1435 = vsel %vm83, %v1414, 0
    %v1438 = vsel %vm83, %v1415, 0
    %v1441 = vsel %vm83, %v1416, 0
    %v1444 = vsel %vm83, %v1417, 0
    %v1447 = vsel %vm83, %v1418, 0
    %v1450 = vsel %vm83, %v1419, 0
    %v1453 = vsel %vm83, %v1420, 0
    %v1456 = vsel %vm83, %v1421, 0
    %1458 = vmatpush.xpose.msra.mxu0 0.0
    %1459 = vmatpush.xpose.msra.mxu0 0.0
    %1460 = vmatpush.xpose.msra.mxu0 0.0
    %1461 = vmatpush.xpose.msra.mxu0 0.0
    %1462 = vmatpush.xpose.msra.mxu0 0.0
    %1463 = vmatpush.xpose.msra.mxu0 0.0
    %1464 = vmatpush.xpose.msra.mxu0 %v1456
    %1465 = vmatpush.xpose.msra.mxu0 %v1453
    %1466 = vmatpush.xpose.msra.mxu0 %v1450
    %1467 = vmatpush.xpose.msra.mxu0 %v1447
    %1468 = vmatpush.xpose.msra.mxu0 %v1444
    %1469 = vmatpush.xpose.msra.mxu0 %v1441
    %1470 = vmatpush.xpose.msra.mxu0 %v1438
    %1471 = vmatpush.xpose.msra.mxu0 %v1435
    %1472 = vmatpush.xpose.msra.mxu0 %v1432
    %1473 = vmatpush.xpose.msra.mxu0 %v1429
    %1474 = vmatmul.f32.gmra.mxu0 %v1423
    %v1475 = vpop.f32.mrf.mxu0
    %v1476 = vadd.f32 0.0, %v1475
    %1477 = vmatmul.f32.gmra.mxu0 %v1426
    %v1478 = vpop.f32.mrf.mxu0
    %v1479 = vadd.f32 0.0, %v1478
    %1480 = vdwg.mxu0
    %s1481 = scalar_lea.vmem %s0, 768
    %v1482 = vld [vmem:[%s1481] sm:$0xff]
    %v1483 = vld [vmem:[%s1481 + $0x8] sm:$0xff]
    %v1484 = vld [vmem:[%s1481 + $0x10] sm:$0xff]
    %v1485 = vld [vmem:[%s1481 + $0x18] sm:$0xff]
    %v1486 = vld [vmem:[%s1481 + $0x20] sm:$0xff]
    %v1487 = vld [vmem:[%s1481 + $0x28] sm:$0xff]
    %v1488 = vld [vmem:[%s1481 + $0x30] sm:$0xff]
    %v1489 = vld [vmem:[%s1481 + $0x38] sm:$0xff]
    %v1490 = vld [vmem:[%s1481 + $0x40] sm:$0xff]
    %v1491 = vld [vmem:[%s1481 + $0x48] sm:$0xff]
    %v1492 = vld [vmem:[%s1481 + $0x50] sm:$0xff]
    %v1493 = vld [vmem:[%s1481 + $0x58] sm:$0xff]
    %v1494 = vld [vmem:[%s1481 + $0x60] sm:$0xff]
    %v1495 = vld [vmem:[%s1481 + $0x68] sm:$0xff]
    %v1496 = vld [vmem:[%s1481 + $0x70] sm:$0xff]
    %v1497 = vld [vmem:[%s1481 + $0x78] sm:$0xff]
    %v1498 = vld [vmem:[%s1481 + $0x80] sm:$0xff]
    %v1499 = vld [vmem:[%s1481 + $0x88] sm:$0xff]
    %v1500 = vld [vmem:[%s1481 + $0x90] sm:$0xff]
    %v1501 = vld [vmem:[%s1481 + $0x98] sm:$0xff]
    %v1502 = vld [vmem:[%s1481 + $0xa0] sm:$0xff]
    %v1503 = vld [vmem:[%s1481 + $0xa8] sm:$0xff]
    %v1504 = vld [vmem:[%s1481 + $0xb0] sm:$0xff]
    %v1505 = vld [vmem:[%s1481 + $0xb8] sm:$0xff]
    %v1506 = vld [vmem:[%s1481 + $0xc0] sm:$0xff]
    %v1507 = vld [vmem:[%s1481 + $0xc8] sm:$0xff]
    %v1508 = vld [vmem:[%s1481 + $0xd0] sm:$0xff]
    %v1509 = vld [vmem:[%s1481 + $0xd8] sm:$0xff]
    %v1510 = vld [vmem:[%s1481 + $0xe0] sm:$0xff]
    %v1511 = vld [vmem:[%s1481 + $0xe8] sm:$0xff]
    %v1512 = vld [vmem:[%s1481 + $0xf0] sm:$0xff]
    %v1513 = vld [vmem:[%s1481 + $0xf8] sm:$0xff]
    %v1515 = vsel %vm83, %v1482, 0
    %v1518 = vsel %vm83, %v1483, 0
    %v1521 = vsel %vm83, %v1484, 0
    %v1524 = vsel %vm83, %v1485, 0
    %v1527 = vsel %vm83, %v1486, 0
    %v1530 = vsel %vm83, %v1487, 0
    %v1533 = vsel %vm83, %v1488, 0
    %v1536 = vsel %vm83, %v1489, 0
    %v1539 = vsel %vm83, %v1490, 0
    %v1542 = vsel %vm83, %v1491, 0
    %v1545 = vsel %vm83, %v1492, 0
    %v1548 = vsel %vm83, %v1493, 0
    %v1551 = vsel %vm83, %v1494, 0
    %v1554 = vsel %vm83, %v1495, 0
    %v1557 = vsel %vm83, %v1496, 0
    %v1560 = vsel %vm83, %v1497, 0
    %v1563 = vsel %vm83, %v1498, 0
    %v1566 = vsel %vm83, %v1499, 0
    %v1569 = vsel %vm83, %v1500, 0
    %v1572 = vsel %vm83, %v1501, 0
    %v1575 = vsel %vm83, %v1502, 0
    %v1578 = vsel %vm83, %v1503, 0
    %v1581 = vsel %vm83, %v1504, 0
    %v1584 = vsel %vm83, %v1505, 0
    %v1587 = vsel %vm83, %v1506, 0
    %v1590 = vsel %vm83, %v1507, 0
    %v1593 = vsel %vm83, %v1508, 0
    %v1596 = vsel %vm83, %v1509, 0
    %v1599 = vsel %vm83, %v1510, 0
    %v1602 = vsel %vm83, %v1511, 0
    %v1605 = vsel %vm83, %v1512, 0
    %v1608 = vsel %vm83, %v1513, 0
    %1610 = vmatpush.msra.mxu0 0.0
    %1611 = vmatpush.msra.mxu0 0.0
    %1612 = vmatpush.msra.mxu0 0.0
    %1613 = vmatpush.msra.mxu0 0.0
    %1614 = vmatpush.msra.mxu0 0.0
    %1615 = vmatpush.msra.mxu0 0.0
    %1616 = vmatpush.msra.mxu0 0.0
    %1617 = vmatpush.msra.mxu0 0.0
    %1618 = vmatpush.msra.mxu0 0.0
    %1619 = vmatpush.msra.mxu0 0.0
    %1620 = vmatpush.msra.mxu0 0.0
    %1621 = vmatpush.msra.mxu0 0.0
    %1622 = vmatpush.msra.mxu0 0.0
    %1623 = vmatpush.msra.mxu0 0.0
    %1624 = vmatpush.msra.mxu0 %v1479
    %1625 = vmatpush.msra.mxu0 %v1476
    %1626 = vmatmul.f32.gmra.mxu0 %v1515
    %v1627 = vpop.f32.mrf.mxu0
    %v1628 = vadd.f32 0.0, %v1627
    %1629 = vmatmul.f32.gmra.mxu0 %v1518
    %v1630 = vpop.f32.mrf.mxu0
    %v1631 = vadd.f32 0.0, %v1630
    %1632 = vmatmul.f32.gmra.mxu0 %v1521
    %v1633 = vpop.f32.mrf.mxu0
    %v1634 = vadd.f32 0.0, %v1633
    %1635 = vmatmul.f32.gmra.mxu0 %v1524
    %v1636 = vpop.f32.mrf.mxu0
    %v1637 = vadd.f32 0.0, %v1636
    %1638 = vmatmul.f32.gmra.mxu0 %v1527
    %v1639 = vpop.f32.mrf.mxu0
    %v1640 = vadd.f32 0.0, %v1639
    %1641 = vmatmul.f32.gmra.mxu0 %v1530
    %v1642 = vpop.f32.mrf.mxu0
    %v1643 = vadd.f32 0.0, %v1642
    %1644 = vmatmul.f32.gmra.mxu0 %v1533
    %v1645 = vpop.f32.mrf.mxu0
    %v1646 = vadd.f32 0.0, %v1645
    %1647 = vmatmul.f32.gmra.mxu0 %v1536
    %v1648 = vpop.f32.mrf.mxu0
    %v1649 = vadd.f32 0.0, %v1648
    %1650 = vmatmul.f32.gmra.mxu0 %v1539
    %v1651 = vpop.f32.mrf.mxu0
    %v1652 = vadd.f32 0.0, %v1651
    %1653 = vmatmul.f32.gmra.mxu0 %v1542
    %v1654 = vpop.f32.mrf.mxu0
    %v1655 = vadd.f32 0.0, %v1654
    %1656 = vmatmul.f32.gmra.mxu0 %v1545
    %v1657 = vpop.f32.mrf.mxu0
    %v1658 = vadd.f32 0.0, %v1657
    %1659 = vmatmul.f32.gmra.mxu0 %v1548
    %v1660 = vpop.f32.mrf.mxu0
    %v1661 = vadd.f32 0.0, %v1660
    %1662 = vmatmul.f32.gmra.mxu0 %v1551
    %v1663 = vpop.f32.mrf.mxu0
    %v1664 = vadd.f32 0.0, %v1663
    %1665 = vmatmul.f32.gmra.mxu0 %v1554
    %v1666 = vpop.f32.mrf.mxu0
    %v1667 = vadd.f32 0.0, %v1666
    %1668 = vmatmul.f32.gmra.mxu0 %v1557
    %v1669 = vpop.f32.mrf.mxu0
    %v1670 = vadd.f32 0.0, %v1669
    %1671 = vmatmul.f32.gmra.mxu0 %v1560
    %v1672 = vpop.f32.mrf.mxu0
    %v1673 = vadd.f32 0.0, %v1672
    %1674 = vmatmul.f32.gmra.mxu0 %v1563
    %v1675 = vpop.f32.mrf.mxu0
    %v1676 = vadd.f32 0.0, %v1675
    %1677 = vmatmul.f32.gmra.mxu0 %v1566
    %v1678 = vpop.f32.mrf.mxu0
    %v1679 = vadd.f32 0.0, %v1678
    %1680 = vmatmul.f32.gmra.mxu0 %v1569
    %v1681 = vpop.f32.mrf.mxu0
    %v1682 = vadd.f32 0.0, %v1681
    %1683 = vmatmul.f32.gmra.mxu0 %v1572
    %v1684 = vpop.f32.mrf.mxu0
    %v1685 = vadd.f32 0.0, %v1684
    %1686 = vmatmul.f32.gmra.mxu0 %v1575
    %v1687 = vpop.f32.mrf.mxu0
    %v1688 = vadd.f32 0.0, %v1687
    %1689 = vmatmul.f32.gmra.mxu0 %v1578
    %v1690 = vpop.f32.mrf.mxu0
    %v1691 = vadd.f32 0.0, %v1690
    %1692 = vmatmul.f32.gmra.mxu0 %v1581
    %v1693 = vpop.f32.mrf.mxu0
    %v1694 = vadd.f32 0.0, %v1693
    %1695 = vmatmul.f32.gmra.mxu0 %v1584
    %v1696 = vpop.f32.mrf.mxu0
    %v1697 = vadd.f32 0.0, %v1696
    %1698 = vmatmul.f32.gmra.mxu0 %v1587
    %v1699 = vpop.f32.mrf.mxu0
    %v1700 = vadd.f32 0.0, %v1699
    %1701 = vmatmul.f32.gmra.mxu0 %v1590
    %v1702 = vpop.f32.mrf.mxu0
    %v1703 = vadd.f32 0.0, %v1702
    %1704 = vmatmul.f32.gmra.mxu0 %v1593
    %v1705 = vpop.f32.mrf.mxu0
    %v1706 = vadd.f32 0.0, %v1705
    %1707 = vmatmul.f32.gmra.mxu0 %v1596
    %v1708 = vpop.f32.mrf.mxu0
    %v1709 = vadd.f32 0.0, %v1708
    %1710 = vmatmul.f32.gmra.mxu0 %v1599
    %v1711 = vpop.f32.mrf.mxu0
    %v1712 = vadd.f32 0.0, %v1711
    %1713 = vmatmul.f32.gmra.mxu0 %v1602
    %v1714 = vpop.f32.mrf.mxu0
    %v1715 = vadd.f32 0.0, %v1714
    %1716 = vmatmul.f32.gmra.mxu0 %v1605
    %v1717 = vpop.f32.mrf.mxu0
    %v1718 = vadd.f32 0.0, %v1717
    %1719 = vmatmul.f32.gmra.mxu0 %v1608
    %v1720 = vpop.f32.mrf.mxu0
    %v1721 = vadd.f32 0.0, %v1720
    %1722 = vdwg.mxu0
    %v1723 = vmax.f32 %v1628, 0.0
    %v1724 = vmax.f32 %v1631, 0.0
    %v1725 = vmax.f32 %v1634, 0.0
    %v1726 = vmax.f32 %v1637, 0.0
    %v1727 = vmax.f32 %v1640, 0.0
    %v1728 = vmax.f32 %v1643, 0.0
    %v1729 = vmax.f32 %v1646, 0.0
    %v1730 = vmax.f32 %v1649, 0.0
    %v1731 = vmax.f32 %v1652, 0.0
    %v1732 = vmax.f32 %v1655, 0.0
    %v1733 = vmax.f32 %v1658, 0.0
    %v1734 = vmax.f32 %v1661, 0.0
    %v1735 = vmax.f32 %v1664, 0.0
    %v1736 = vmax.f32 %v1667, 0.0
    %v1737 = vmax.f32 %v1670, 0.0
    %v1738 = vmax.f32 %v1673, 0.0
    %v1739 = vmax.f32 %v1676, 0.0
    %v1740 = vmax.f32 %v1679, 0.0
    %v1741 = vmax.f32 %v1682, 0.0
    %v1742 = vmax.f32 %v1685, 0.0
    %v1743 = vmax.f32 %v1688, 0.0
    %v1744 = vmax.f32 %v1691, 0.0
    %v1745 = vmax.f32 %v1694, 0.0
    %v1746 = vmax.f32 %v1697, 0.0
    %v1747 = vmax.f32 %v1700, 0.0
    %v1748 = vmax.f32 %v1703, 0.0
    %v1749 = vmax.f32 %v1706, 0.0
    %v1750 = vmax.f32 %v1709, 0.0
    %v1751 = vmax.f32 %v1712, 0.0
    %v1752 = vmax.f32 %v1715, 0.0
    %v1753 = vmax.f32 %v1718, 0.0
    %v1754 = vmax.f32 %v1721, 0.0
    %v1755 = vsel %vm416, %v1723, 0.0
    %v1756 = vsel %vm416, %v1724, 0.0
    %v1757 = vadd.f32 %v1755, %v1756
    %v1758 = vsel %vm416, %v1725, 0.0
    %v1759 = vadd.f32 %v1757, %v1758
    %v1760 = vsel %vm416, %v1726, 0.0
    %v1761 = vadd.f32 %v1759, %v1760
    %v1762 = vsel %vm416, %v1727, 0.0
    %v1763 = vadd.f32 %v1761, %v1762
    %v1764 = vsel %vm416, %v1728, 0.0
    %v1765 = vadd.f32 %v1763, %v1764
    %v1766 = vsel %vm416, %v1729, 0.0
    %v1767 = vadd.f32 %v1765, %v1766
    %v1768 = vsel %vm416, %v1730, 0.0
    %v1769 = vadd.f32 %v1767, %v1768
    %v1770 = vsel %vm416, %v1731, 0.0
    %v1771 = vadd.f32 %v1769, %v1770
    %v1772 = vsel %vm416, %v1732, 0.0
    %v1773 = vadd.f32 %v1771, %v1772
    %v1774 = vsel %vm416, %v1733, 0.0
    %v1775 = vadd.f32 %v1773, %v1774
    %v1776 = vsel %vm416, %v1734, 0.0
    %v1777 = vadd.f32 %v1775, %v1776
    %v1778 = vsel %vm416, %v1735, 0.0
    %v1779 = vadd.f32 %v1777, %v1778
    %v1780 = vsel %vm416, %v1736, 0.0
    %v1781 = vadd.f32 %v1779, %v1780
    %v1782 = vsel %vm416, %v1737, 0.0
    %v1783 = vadd.f32 %v1781, %v1782
    %v1784 = vsel %vm416, %v1738, 0.0
    %v1785 = vadd.f32 %v1783, %v1784
    %v1786 = vrot.slane %v1785, 4
    %v1787 = vadd.f32 %v1785, %v1786
    %v1788 = vrot.slane %v1787, 2
    %v1789 = vadd.f32 %v1787, %v1788
    %v1790 = vrot.slane %v1789, 1
    %v1791 = vadd.f32 %v1789, %v1790
    %v1792 = vsel %vm416, %v1739, 0.0
    %v1793 = vsel %vm416, %v1740, 0.0
    %v1794 = vadd.f32 %v1792, %v1793
    %v1795 = vsel %vm416, %v1741, 0.0
    %v1796 = vadd.f32 %v1794, %v1795
    %v1797 = vsel %vm416, %v1742, 0.0
    %v1798 = vadd.f32 %v1796, %v1797
    %v1799 = vsel %vm416, %v1743, 0.0
    %v1800 = vadd.f32 %v1798, %v1799
    %v1801 = vsel %vm416, %v1744, 0.0
    %v1802 = vadd.f32 %v1800, %v1801
    %v1803 = vsel %vm416, %v1745, 0.0
    %v1804 = vadd.f32 %v1802, %v1803
    %v1805 = vsel %vm416, %v1746, 0.0
    %v1806 = vadd.f32 %v1804, %v1805
    %v1807 = vsel %vm416, %v1747, 0.0
    %v1808 = vadd.f32 %v1806, %v1807
    %v1809 = vsel %vm416, %v1748, 0.0
    %v1810 = vadd.f32 %v1808, %v1809
    %v1811 = vsel %vm416, %v1749, 0.0
    %v1812 = vadd.f32 %v1810, %v1811
    %v1813 = vsel %vm416, %v1750, 0.0
    %v1814 = vadd.f32 %v1812, %v1813
    %v1815 = vsel %vm416, %v1751, 0.0
    %v1816 = vadd.f32 %v1814, %v1815
    %v1817 = vsel %vm416, %v1752, 0.0
    %v1818 = vadd.f32 %v1816, %v1817
    %v1819 = vsel %vm416, %v1753, 0.0
    %v1820 = vadd.f32 %v1818, %v1819
    %v1821 = vsel %vm416, %v1754, 0.0
    %v1822 = vadd.f32 %v1820, %v1821
    %v1823 = vrot.slane %v1822, 4
    %v1824 = vadd.f32 %v1822, %v1823
    %v1825 = vrot.slane %v1824, 2
    %v1826 = vadd.f32 %v1824, %v1825
    %v1827 = vrot.slane %v1826, 1
    %v1828 = vadd.f32 %v1826, %v1827
    %v1829 = vsel %vm491, %v1791, %v1828
    %v1830 = vmul.f32 %v1829, 0.007812461
    %v1831 = vsel %vm494, %v1830, 0.0
    %1832 = vadd.xlane.f32.xlu0 %v1831
    %v1833 = vpop.xlane.xlu0 %1832
    %v1834 = vmul.f32 %v1833, %v504
    %s1835 = scalar_lea.vmem [#allocation2], 64
    %v1836 = vld [vmem:[%s1835] sm:$0xff]
    %v1837 = vld [vmem:[%s1835 + $0x8] sm:$0xff]
    %s1838 = scalar_lea.vmem %s2, 32
    %v1839 = vld [vmem:[%s1838] sm:$0x1f]
    %v1841 = vrot.slane %v1839, 1
    %v1842 = vrot.slane %v1839, 2
    %v1843 = vrot.slane %v1839, 3
    %v1844 = vrot.slane %v1839, 4
    %v1845 = vperm.slane %v1839, 0
    %v1846 = vperm.slane %v1841, 0
    %v1847 = vperm.slane %v1842, 0
    %v1848 = vperm.slane %v1843, 0
    %v1849 = vperm.slane %v1844, 0
    %v1855 = vmul.f32 %v1836, %v1845
    %v1856 = vmul.f32 %v1837, %v1845
    %v1857 = vmul.f32 %v1836, %v1846
    %v1858 = vmul.f32 %v1837, %v1846
    %v1859 = vmul.f32 %v1836, %v1847
    %v1860 = vmul.f32 %v1837, %v1847
    %v1861 = vmul.f32 %v1836, %v1848
    %v1862 = vmul.f32 %v1837, %v1848
    %v1863 = vmul.f32 %v1836, %v1849
    %v1864 = vmul.f32 %v1837, %v1849
    %v1866 = vsel %vm83, %v1836, 0
    %v1869 = vsel %vm83, %v1837, 0
    %v1872 = vsel %vm83, %v1855, 0
    %v1875 = vsel %vm83, %v1856, 0
    %v1878 = vsel %vm83, %v1857, 0
    %v1881 = vsel %vm83, %v1858, 0
    %v1884 = vsel %vm83, %v1859, 0
    %v1887 = vsel %vm83, %v1860, 0
    %v1890 = vsel %vm83, %v1861, 0
    %v1893 = vsel %vm83, %v1862, 0
    %v1896 = vsel %vm83, %v1863, 0
    %v1899 = vsel %vm83, %v1864, 0
    %1901 = vmatpush.xpose.msra.mxu0 0.0
    %1902 = vmatpush.xpose.msra.mxu0 0.0
    %1903 = vmatpush.xpose.msra.mxu0 0.0
    %1904 = vmatpush.xpose.msra.mxu0 0.0
    %1905 = vmatpush.xpose.msra.mxu0 0.0
    %1906 = vmatpush.xpose.msra.mxu0 0.0
    %1907 = vmatpush.xpose.msra.mxu0 %v1899
    %1908 = vmatpush.xpose.msra.mxu0 %v1896
    %1909 = vmatpush.xpose.msra.mxu0 %v1893
    %1910 = vmatpush.xpose.msra.mxu0 %v1890
    %1911 = vmatpush.xpose.msra.mxu0 %v1887
    %1912 = vmatpush.xpose.msra.mxu0 %v1884
    %1913 = vmatpush.xpose.msra.mxu0 %v1881
    %1914 = vmatpush.xpose.msra.mxu0 %v1878
    %1915 = vmatpush.xpose.msra.mxu0 %v1875
    %1916 = vmatpush.xpose.msra.mxu0 %v1872
    %1917 = vmatmul.f32.gmra.mxu0 %v1866
    %v1918 = vpop.f32.mrf.mxu0
    %v1919 = vadd.f32 0.0, %v1918
    %1920 = vmatmul.f32.gmra.mxu0 %v1869
    %v1921 = vpop.f32.mrf.mxu0
    %v1922 = vadd.f32 0.0, %v1921
    %1923 = vdwg.mxu0
    %s1924 = scalar_lea.vmem %s0, 1024
    %v1925 = vld [vmem:[%s1924] sm:$0xff]
    %v1926 = vld [vmem:[%s1924 + $0x8] sm:$0xff]
    %v1927 = vld [vmem:[%s1924 + $0x10] sm:$0xff]
    %v1928 = vld [vmem:[%s1924 + $0x18] sm:$0xff]
    %v1929 = vld [vmem:[%s1924 + $0x20] sm:$0xff]
    %v1930 = vld [vmem:[%s1924 + $0x28] sm:$0xff]
    %v1931 = vld [vmem:[%s1924 + $0x30] sm:$0xff]
    %v1932 = vld [vmem:[%s1924 + $0x38] sm:$0xff]
    %v1933 = vld [vmem:[%s1924 + $0x40] sm:$0xff]
    %v1934 = vld [vmem:[%s1924 + $0x48] sm:$0xff]
    %v1935 = vld [vmem:[%s1924 + $0x50] sm:$0xff]
    %v1936 = vld [vmem:[%s1924 + $0x58] sm:$0xff]
    %v1937 = vld [vmem:[%s1924 + $0x60] sm:$0xff]
    %v1938 = vld [vmem:[%s1924 + $0x68] sm:$0xff]
    %v1939 = vld [vmem:[%s1924 + $0x70] sm:$0xff]
    %v1940 = vld [vmem:[%s1924 + $0x78] sm:$0xff]
    %v1941 = vld [vmem:[%s1924 + $0x80] sm:$0xff]
    %v1942 = vld [vmem:[%s1924 + $0x88] sm:$0xff]
    %v1943 = vld [vmem:[%s1924 + $0x90] sm:$0xff]
    %v1944 = vld [vmem:[%s1924 + $0x98] sm:$0xff]
    %v1945 = vld [vmem:[%s1924 + $0xa0] sm:$0xff]
    %v1946 = vld [vmem:[%s1924 + $0xa8] sm:$0xff]
    %v1947 = vld [vmem:[%s1924 + $0xb0] sm:$0xff]
    %v1948 = vld [vmem:[%s1924 + $0xb8] sm:$0xff]
    %v1949 = vld [vmem:[%s1924 + $0xc0] sm:$0xff]
    %v1950 = vld [vmem:[%s1924 + $0xc8] sm:$0xff]
    %v1951 = vld [vmem:[%s1924 + $0xd0] sm:$0xff]
    %v1952 = vld [vmem:[%s1924 + $0xd8] sm:$0xff]
    %v1953 = vld [vmem:[%s1924 + $0xe0] sm:$0xff]
    %v1954 = vld [vmem:[%s1924 + $0xe8] sm:$0xff]
    %v1955 = vld [vmem:[%s1924 + $0xf0] sm:$0xff]
    %v1956 = vld [vmem:[%s1924 + $0xf8] sm:$0xff]
    %v1958 = vsel %vm83, %v1925, 0
    %v1961 = vsel %vm83, %v1926, 0
    %v1964 = vsel %vm83, %v1927, 0
    %v1967 = vsel %vm83, %v1928, 0
    %v1970 = vsel %vm83, %v1929, 0
    %v1973 = vsel %vm83, %v1930, 0
    %v1976 = vsel %vm83, %v1931, 0
    %v1979 = vsel %vm83, %v1932, 0
    %v1982 = vsel %vm83, %v1933, 0
    %v1985 = vsel %vm83, %v1934, 0
    %v1988 = vsel %vm83, %v1935, 0
    %v1991 = vsel %vm83, %v1936, 0
    %v1994 = vsel %vm83, %v1937, 0
    %v1997 = vsel %vm83, %v1938, 0
    %v2000 = vsel %vm83, %v1939, 0
    %v2003 = vsel %vm83, %v1940, 0
    %v2006 = vsel %vm83, %v1941, 0
    %v2009 = vsel %vm83, %v1942, 0
    %v2012 = vsel %vm83, %v1943, 0
    %v2015 = vsel %vm83, %v1944, 0
    %v2018 = vsel %vm83, %v1945, 0
    %v2021 = vsel %vm83, %v1946, 0
    %v2024 = vsel %vm83, %v1947, 0
    %v2027 = vsel %vm83, %v1948, 0
    %v2030 = vsel %vm83, %v1949, 0
    %v2033 = vsel %vm83, %v1950, 0
    %v2036 = vsel %vm83, %v1951, 0
    %v2039 = vsel %vm83, %v1952, 0
    %v2042 = vsel %vm83, %v1953, 0
    %v2045 = vsel %vm83, %v1954, 0
    %v2048 = vsel %vm83, %v1955, 0
    %v2051 = vsel %vm83, %v1956, 0
    %2053 = vmatpush.msra.mxu0 0.0
    %2054 = vmatpush.msra.mxu0 0.0
    %2055 = vmatpush.msra.mxu0 0.0
    %2056 = vmatpush.msra.mxu0 0.0
    %2057 = vmatpush.msra.mxu0 0.0
    %2058 = vmatpush.msra.mxu0 0.0
    %2059 = vmatpush.msra.mxu0 0.0
    %2060 = vmatpush.msra.mxu0 0.0
    %2061 = vmatpush.msra.mxu0 0.0
    %2062 = vmatpush.msra.mxu0 0.0
    %2063 = vmatpush.msra.mxu0 0.0
    %2064 = vmatpush.msra.mxu0 0.0
    %2065 = vmatpush.msra.mxu0 0.0
    %2066 = vmatpush.msra.mxu0 0.0
    %2067 = vmatpush.msra.mxu0 %v1922
    %2068 = vmatpush.msra.mxu0 %v1919
    %2069 = vmatmul.f32.gmra.mxu0 %v1958
    %v2070 = vpop.f32.mrf.mxu0
    %v2071 = vadd.f32 0.0, %v2070
    %2072 = vmatmul.f32.gmra.mxu0 %v1961
    %v2073 = vpop.f32.mrf.mxu0
    %v2074 = vadd.f32 0.0, %v2073
    %2075 = vmatmul.f32.gmra.mxu0 %v1964
    %v2076 = vpop.f32.mrf.mxu0
    %v2077 = vadd.f32 0.0, %v2076
    %2078 = vmatmul.f32.gmra.mxu0 %v1967
    %v2079 = vpop.f32.mrf.mxu0
    %v2080 = vadd.f32 0.0, %v2079
    %2081 = vmatmul.f32.gmra.mxu0 %v1970
    %v2082 = vpop.f32.mrf.mxu0
    %v2083 = vadd.f32 0.0, %v2082
    %2084 = vmatmul.f32.gmra.mxu0 %v1973
    %v2085 = vpop.f32.mrf.mxu0
    %v2086 = vadd.f32 0.0, %v2085
    %2087 = vmatmul.f32.gmra.mxu0 %v1976
    %v2088 = vpop.f32.mrf.mxu0
    %v2089 = vadd.f32 0.0, %v2088
    %2090 = vmatmul.f32.gmra.mxu0 %v1979
    %v2091 = vpop.f32.mrf.mxu0
    %v2092 = vadd.f32 0.0, %v2091
    %2093 = vmatmul.f32.gmra.mxu0 %v1982
    %v2094 = vpop.f32.mrf.mxu0
    %v2095 = vadd.f32 0.0, %v2094
    %2096 = vmatmul.f32.gmra.mxu0 %v1985
    %v2097 = vpop.f32.mrf.mxu0
    %v2098 = vadd.f32 0.0, %v2097
    %2099 = vmatmul.f32.gmra.mxu0 %v1988
    %v2100 = vpop.f32.mrf.mxu0
    %v2101 = vadd.f32 0.0, %v2100
    %2102 = vmatmul.f32.gmra.mxu0 %v1991
    %v2103 = vpop.f32.mrf.mxu0
    %v2104 = vadd.f32 0.0, %v2103
    %2105 = vmatmul.f32.gmra.mxu0 %v1994
    %v2106 = vpop.f32.mrf.mxu0
    %v2107 = vadd.f32 0.0, %v2106
    %2108 = vmatmul.f32.gmra.mxu0 %v1997
    %v2109 = vpop.f32.mrf.mxu0
    %v2110 = vadd.f32 0.0, %v2109
    %2111 = vmatmul.f32.gmra.mxu0 %v2000
    %v2112 = vpop.f32.mrf.mxu0
    %v2113 = vadd.f32 0.0, %v2112
    %2114 = vmatmul.f32.gmra.mxu0 %v2003
    %v2115 = vpop.f32.mrf.mxu0
    %v2116 = vadd.f32 0.0, %v2115
    %2117 = vmatmul.f32.gmra.mxu0 %v2006
    %v2118 = vpop.f32.mrf.mxu0
    %v2119 = vadd.f32 0.0, %v2118
    %2120 = vmatmul.f32.gmra.mxu0 %v2009
    %v2121 = vpop.f32.mrf.mxu0
    %v2122 = vadd.f32 0.0, %v2121
    %2123 = vmatmul.f32.gmra.mxu0 %v2012
    %v2124 = vpop.f32.mrf.mxu0
    %v2125 = vadd.f32 0.0, %v2124
    %2126 = vmatmul.f32.gmra.mxu0 %v2015
    %v2127 = vpop.f32.mrf.mxu0
    %v2128 = vadd.f32 0.0, %v2127
    %2129 = vmatmul.f32.gmra.mxu0 %v2018
    %v2130 = vpop.f32.mrf.mxu0
    %v2131 = vadd.f32 0.0, %v2130
    %2132 = vmatmul.f32.gmra.mxu0 %v2021
    %v2133 = vpop.f32.mrf.mxu0
    %v2134 = vadd.f32 0.0, %v2133
    %2135 = vmatmul.f32.gmra.mxu0 %v2024
    %v2136 = vpop.f32.mrf.mxu0
    %v2137 = vadd.f32 0.0, %v2136
    %2138 = vmatmul.f32.gmra.mxu0 %v2027
    %v2139 = vpop.f32.mrf.mxu0
    %v2140 = vadd.f32 0.0, %v2139
    %2141 = vmatmul.f32.gmra.mxu0 %v2030
    %v2142 = vpop.f32.mrf.mxu0
    %v2143 = vadd.f32 0.0, %v2142
    %2144 = vmatmul.f32.gmra.mxu0 %v2033
    %v2145 = vpop.f32.mrf.mxu0
    %v2146 = vadd.f32 0.0, %v2145
    %2147 = vmatmul.f32.gmra.mxu0 %v2036
    %v2148 = vpop.f32.mrf.mxu0
    %v2149 = vadd.f32 0.0, %v2148
    %2150 = vmatmul.f32.gmra.mxu0 %v2039
    %v2151 = vpop.f32.mrf.mxu0
    %v2152 = vadd.f32 0.0, %v2151
    %2153 = vmatmul.f32.gmra.mxu0 %v2042
    %v2154 = vpop.f32.mrf.mxu0
    %v2155 = vadd.f32 0.0, %v2154
    %2156 = vmatmul.f32.gmra.mxu0 %v2045
    %v2157 = vpop.f32.mrf.mxu0
    %v2158 = vadd.f32 0.0, %v2157
    %2159 = vmatmul.f32.gmra.mxu0 %v2048
    %v2160 = vpop.f32.mrf.mxu0
    %v2161 = vadd.f32 0.0, %v2160
    %2162 = vmatmul.f32.gmra.mxu0 %v2051
    %v2163 = vpop.f32.mrf.mxu0
    %v2164 = vadd.f32 0.0, %v2163
    %2165 = vdwg.mxu0
    %v2166 = vmax.f32 %v2071, 0.0
    %v2167 = vmax.f32 %v2074, 0.0
    %v2168 = vmax.f32 %v2077, 0.0
    %v2169 = vmax.f32 %v2080, 0.0
    %v2170 = vmax.f32 %v2083, 0.0
    %v2171 = vmax.f32 %v2086, 0.0
    %v2172 = vmax.f32 %v2089, 0.0
    %v2173 = vmax.f32 %v2092, 0.0
    %v2174 = vmax.f32 %v2095, 0.0
    %v2175 = vmax.f32 %v2098, 0.0
    %v2176 = vmax.f32 %v2101, 0.0
    %v2177 = vmax.f32 %v2104, 0.0
    %v2178 = vmax.f32 %v2107, 0.0
    %v2179 = vmax.f32 %v2110, 0.0
    %v2180 = vmax.f32 %v2113, 0.0
    %v2181 = vmax.f32 %v2116, 0.0
    %v2182 = vmax.f32 %v2119, 0.0
    %v2183 = vmax.f32 %v2122, 0.0
    %v2184 = vmax.f32 %v2125, 0.0
    %v2185 = vmax.f32 %v2128, 0.0
    %v2186 = vmax.f32 %v2131, 0.0
    %v2187 = vmax.f32 %v2134, 0.0
    %v2188 = vmax.f32 %v2137, 0.0
    %v2189 = vmax.f32 %v2140, 0.0
    %v2190 = vmax.f32 %v2143, 0.0
    %v2191 = vmax.f32 %v2146, 0.0
    %v2192 = vmax.f32 %v2149, 0.0
    %v2193 = vmax.f32 %v2152, 0.0
    %v2194 = vmax.f32 %v2155, 0.0
    %v2195 = vmax.f32 %v2158, 0.0
    %v2196 = vmax.f32 %v2161, 0.0
    %v2197 = vmax.f32 %v2164, 0.0
    %v2198 = vsel %vm416, %v2166, 0.0
    %v2199 = vsel %vm416, %v2167, 0.0
    %v2200 = vadd.f32 %v2198, %v2199
    %v2201 = vsel %vm416, %v2168, 0.0
    %v2202 = vadd.f32 %v2200, %v2201
    %v2203 = vsel %vm416, %v2169, 0.0
    %v2204 = vadd.f32 %v2202, %v2203
    %v2205 = vsel %vm416, %v2170, 0.0
    %v2206 = vadd.f32 %v2204, %v2205
    %v2207 = vsel %vm416, %v2171, 0.0
    %v2208 = vadd.f32 %v2206, %v2207
    %v2209 = vsel %vm416, %v2172, 0.0
    %v2210 = vadd.f32 %v2208, %v2209
    %v2211 = vsel %vm416, %v2173, 0.0
    %v2212 = vadd.f32 %v2210, %v2211
    %v2213 = vsel %vm416, %v2174, 0.0
    %v2214 = vadd.f32 %v2212, %v2213
    %v2215 = vsel %vm416, %v2175, 0.0
    %v2216 = vadd.f32 %v2214, %v2215
    %v2217 = vsel %vm416, %v2176, 0.0
    %v2218 = vadd.f32 %v2216, %v2217
    %v2219 = vsel %vm416, %v2177, 0.0
    %v2220 = vadd.f32 %v2218, %v2219
    %v2221 = vsel %vm416, %v2178, 0.0
    %v2222 = vadd.f32 %v2220, %v2221
    %v2223 = vsel %vm416, %v2179, 0.0
    %v2224 = vadd.f32 %v2222, %v2223
    %v2225 = vsel %vm416, %v2180, 0.0
    %v2226 = vadd.f32 %v2224, %v2225
    %v2227 = vsel %vm416, %v2181, 0.0
    %v2228 = vadd.f32 %v2226, %v2227
    %v2229 = vrot.slane %v2228, 4
    %v2230 = vadd.f32 %v2228, %v2229
    %v2231 = vrot.slane %v2230, 2
    %v2232 = vadd.f32 %v2230, %v2231
    %v2233 = vrot.slane %v2232, 1
    %v2234 = vadd.f32 %v2232, %v2233
    %v2235 = vsel %vm416, %v2182, 0.0
    %v2236 = vsel %vm416, %v2183, 0.0
    %v2237 = vadd.f32 %v2235, %v2236
    %v2238 = vsel %vm416, %v2184, 0.0
    %v2239 = vadd.f32 %v2237, %v2238
    %v2240 = vsel %vm416, %v2185, 0.0
    %v2241 = vadd.f32 %v2239, %v2240
    %v2242 = vsel %vm416, %v2186, 0.0
    %v2243 = vadd.f32 %v2241, %v2242
    %v2244 = vsel %vm416, %v2187, 0.0
    %v2245 = vadd.f32 %v2243, %v2244
    %v2246 = vsel %vm416, %v2188, 0.0
    %v2247 = vadd.f32 %v2245, %v2246
    %v2248 = vsel %vm416, %v2189, 0.0
    %v2249 = vadd.f32 %v2247, %v2248
    %v2250 = vsel %vm416, %v2190, 0.0
    %v2251 = vadd.f32 %v2249, %v2250
    %v2252 = vsel %vm416, %v2191, 0.0
    %v2253 = vadd.f32 %v2251, %v2252
    %v2254 = vsel %vm416, %v2192, 0.0
    %v2255 = vadd.f32 %v2253, %v2254
    %v2256 = vsel %vm416, %v2193, 0.0
    %v2257 = vadd.f32 %v2255, %v2256
    %v2258 = vsel %vm416, %v2194, 0.0
    %v2259 = vadd.f32 %v2257, %v2258
    %v2260 = vsel %vm416, %v2195, 0.0
    %v2261 = vadd.f32 %v2259, %v2260
    %v2262 = vsel %vm416, %v2196, 0.0
    %v2263 = vadd.f32 %v2261, %v2262
    %v2264 = vsel %vm416, %v2197, 0.0
    %v2265 = vadd.f32 %v2263, %v2264
    %v2266 = vrot.slane %v2265, 4
    %v2267 = vadd.f32 %v2265, %v2266
    %v2268 = vrot.slane %v2267, 2
    %v2269 = vadd.f32 %v2267, %v2268
    %v2270 = vrot.slane %v2269, 1
    %v2271 = vadd.f32 %v2269, %v2270
    %v2272 = vsel %vm491, %v2234, %v2271
    %v2273 = vmul.f32 %v2272, 0.007812461
    %v2274 = vsel %vm494, %v2273, 0.0
    %2275 = vadd.xlane.f32.xlu0 %v2274
    %v2276 = vpop.xlane.xlu0 %2275
    %v2277 = vmul.f32 %v2276, %v504
    %vm2278 = vcmask 7168
    %v2279 = vsel %vm2278, %v505, %v948
    %vm2280 = vcmask 15360
    %v2281 = vsel %vm2280, %v2279, %v1391
    %vm2282 = vcmask 23552
    %v2283 = vsel %vm2282, %v2281, %v1834
    %vm2284 = vcmask 31744
    %v2285 = vsel %vm2284, %v2283, %v2277
    %v2286 = vld [vmem:[%s3] sm:$0x1f]
    %v2287 = vld [vmem:[%s4] sm:$0x1]
    %v2289 = vperm.slane %v2287, 0
    %vm2291 = vcmask 39936
    %v2293 = vsel %vm2291, %v2285, 0
    %vm2295 = vcmask 1044480
    %v2297 = vsel %vm2295, %v2286, 0
    %2299 = vmatpush.msra.mxu0 0.0
    %2300 = vmatpush.msra.mxu0 0.0
    %2301 = vmatpush.msra.mxu0 0.0
    %2302 = vmatpush.msra.mxu0 0.0
    %2303 = vmatpush.msra.mxu0 0.0
    %2304 = vmatpush.msra.mxu0 0.0
    %2305 = vmatpush.msra.mxu0 0.0
    %2306 = vmatpush.msra.mxu0 0.0
    %2307 = vmatpush.msra.mxu0 0.0
    %2308 = vmatpush.msra.mxu0 0.0
    %2309 = vmatpush.msra.mxu0 0.0
    %2310 = vmatpush.msra.mxu0 0.0
    %2311 = vmatpush.msra.mxu0 0.0
    %2312 = vmatpush.msra.mxu0 0.0
    %2313 = vmatpush.msra.mxu0 0.0
    %2314 = vmatpush.msra.mxu0 %v2297
    %2315 = vmatmul.f32.gmra.mxu0 %v2293
    %v2316 = vpop.f32.mrf.mxu0
    %v2317 = vadd.f32 %v2289, %v2316
    %2318 = vdwg.mxu0
    %v2319 = vtanh.pop %v2317
    %v2320 = vmax.f32 %v2319, 0.0
    %v2321 = vld [vmem:[%s5] sm:$0xf]
    %v2322 = vld [vmem:[%s6] sm:$0x1]
    %v2324 = vperm.slane %v2322, 0
    %v2327 = vsel %vm2284, %v2320, 0
    %vm2329 = vcmask 1043456
    %v2331 = vsel %vm2329, %v2321, 0
    %2333 = vmatpush.msra.mxu0 0.0
    %2334 = vmatpush.msra.mxu0 0.0
    %2335 = vmatpush.msra.mxu0 0.0
    %2336 = vmatpush.msra.mxu0 0.0
    %2337 = vmatpush.msra.mxu0 0.0
    %2338 = vmatpush.msra.mxu0 0.0
    %2339 = vmatpush.msra.mxu0 0.0
    %2340 = vmatpush.msra.mxu0 0.0
    %2341 = vmatpush.msra.mxu0 0.0
    %2342 = vmatpush.msra.mxu0 0.0
    %2343 = vmatpush.msra.mxu0 0.0
    %2344 = vmatpush.msra.mxu0 0.0
    %2345 = vmatpush.msra.mxu0 0.0
    %2346 = vmatpush.msra.mxu0 0.0
    %2347 = vmatpush.msra.mxu0 0.0
    %2348 = vmatpush.msra.mxu0 %v2331
    %2349 = vmatmul.f32.gmra.mxu0 %v2327
    %v2350 = vpop.f32.mrf.mxu0
    %v2351 = vadd.f32 %v2324, %v2350
    %2352 = vdwg.mxu0
    %vm2353 = vcmask 33792
    %v2354 = vsel %vm2353, %v2351, 0.0
    %v2355 = vrot.slane %v2354, 4
    %v2356 = vadd.f32 %v2354, %v2355
    %v2357 = vrot.slane %v2356, 2
    %v2358 = vadd.f32 %v2356, %v2357
    %v2359 = vrot.slane %v2358, 1
    %v2360 = vadd.f32 %v2358, %v2359
    %v2361 = vrcp.pop 2.0
    %v2362 = vmul.f32 2.0, %v2361
    %v2363 = vsub.f32 1.0, %v2362
    %v2364 = vmul.f32 %v2361, %v2363
    %v2365 = vadd.f32 %v2361, %v2364
    %vm2366 = vweird.f32 %v2361
    %v2367 = vsel %vm2366, %v2361, %v2365
    %v2368 = vmul.f32 %v2360, %v2367
    %2370 = vset.pattern.permute.xlu0 0
    %2371 = vperm.xlu0 %2370, %v2368
    %v2372 = vpop.permute.xlu0 %2371
    %v2374 = vmul.f32 %v493, %v2372
    %2375 = vset.pattern.permute.xlu0 1
    %2376 = vperm.xlu0 %2375, %v2368
    %v2377 = vpop.permute.xlu0 %2376
    %v2379 = vmul.f32 %v944, %v2377
    %2380 = vset.pattern.permute.xlu0 2
    %2381 = vperm.xlu0 %2380, %v2368
    %v2382 = vpop.permute.xlu0 %2381
    %v2384 = vmul.f32 %v1387, %v2382
    %2385 = vset.pattern.permute.xlu0 3
    %2386 = vperm.xlu0 %2385, %v2368
    %v2387 = vpop.permute.xlu0 %2386
    %v2389 = vmul.f32 %v1830, %v2387
    %2390 = vset.pattern.permute.xlu0 4
    %2391 = vperm.xlu0 %2390, %v2368
    %v2392 = vpop.permute.xlu0 %2391
    %v2394 = vmul.f32 %v2273, %v2392
    %2396 = vrot.lane.b32.xlu0 %v2379, 80
    %v2397 = vpop.permute.xlu0 %2396
    %2400 = vrot.lane.b32.xlu0 %v2384, 32
    %v2401 = vpop.permute.xlu0 %2400
    %2404 = vrot.lane.b32.xlu0 %v2389, 112
    %v2405 = vpop.permute.xlu0 %2404
    %2408 = vrot.lane.b32.xlu0 %v2394, 64
    %v2409 = vpop.permute.xlu0 %2408
    %v2411 = vsel %vm416, %v2374, %v2397
    %vm2412 = vcmask 261120
    %v2413 = vsel %vm2412, %v2397, %v2401
    %vm2414 = vcmask 916480
    %v2415 = vsel %vm2414, %v2413, %v2405
    %vm2416 = vcmask 523264
    %v2417 = vsel %vm2416, %v2405, %v2409
    %v2418 = vld [vmem:[%s7] sm:$0xff]
    %v2419 = vld [vmem:[%s7 + $0x8] sm:$0xff]
    %v2420 = vld [vmem:[%s7 + $0x10] sm:$0xff]
    %v2421 = vld [vmem:[%s7 + $0x18] sm:$0xff]
    %v2422 = vld [vmem:[%s7 + $0x20] sm:$0xff]
    %v2423 = vld [vmem:[%s7 + $0x28] sm:$0xff]
    %v2424 = vld [vmem:[%s7 + $0x30] sm:$0xff]
    %v2425 = vld [vmem:[%s7 + $0x38] sm:$0xff]
    %v2426 = vld [vmem:[%s7 + $0x40] sm:$0xff]
    %v2427 = vld [vmem:[%s7 + $0x48] sm:$0xff]
    %v2428 = vld [vmem:[%s7 + $0x50] sm:$0xff]
    %v2429 = vld [vmem:[%s7 + $0x58] sm:$0xff]
    %v2430 = vld [vmem:[%s7 + $0x60] sm:$0xff]
    %v2431 = vld [vmem:[%s7 + $0x68] sm:$0xff]
    %v2432 = vld [vmem:[%s7 + $0x70] sm:$0xff]
    %v2433 = vld [vmem:[%s7 + $0x78] sm:$0xff]
    %v2434 = vld [vmem:[%s7 + $0x80] sm:$0xff]
    %v2435 = vld [vmem:[%s7 + $0x88] sm:$0xff]
    %v2436 = vld [vmem:[%s7 + $0x90] sm:$0xff]
    %v2437 = vld [vmem:[%s7 + $0x98] sm:$0xff]
    %v2438 = vld [vmem:[%s7 + $0xa0] sm:$0xff]
    %v2439 = vld [vmem:[%s7 + $0xa8] sm:$0xff]
    %v2440 = vld [vmem:[%s7 + $0xb0] sm:$0xff]
    %v2441 = vld [vmem:[%s7 + $0xb8] sm:$0xff]
    %v2442 = vld [vmem:[%s7 + $0xc0] sm:$0xff]
    %v2443 = vld [vmem:[%s7 + $0xc8] sm:$0xff]
    %v2444 = vld [vmem:[%s7 + $0xd0] sm:$0xff]
    %v2445 = vld [vmem:[%s7 + $0xd8] sm:$0xff]
    %v2446 = vld [vmem:[%s7 + $0xe0] sm:$0xff]
    %v2447 = vld [vmem:[%s7 + $0xe8] sm:$0xff]
    %v2448 = vld [vmem:[%s7 + $0xf0] sm:$0xff]
    %v2449 = vld [vmem:[%s7 + $0xf8] sm:$0xff]
    %v2450 = vld [vmem:[%s7 + $0x100] sm:$0xff]
    %v2451 = vld [vmem:[%s7 + $0x108] sm:$0xff]
    %v2452 = vld [vmem:[%s7 + $0x110] sm:$0xff]
    %v2453 = vld [vmem:[%s7 + $0x118] sm:$0xff]
    %v2454 = vld [vmem:[%s7 + $0x120] sm:$0xff]
    %v2455 = vld [vmem:[%s7 + $0x128] sm:$0xff]
    %v2456 = vld [vmem:[%s7 + $0x130] sm:$0xff]
    %v2457 = vld [vmem:[%s7 + $0x138] sm:$0xff]
    %v2458 = vld [vmem:[%s7 + $0x140] sm:$0xff]
    %v2459 = vld [vmem:[%s7 + $0x148] sm:$0xff]
    %v2460 = vld [vmem:[%s7 + $0x150] sm:$0xff]
    %v2461 = vld [vmem:[%s7 + $0x158] sm:$0xff]
    %v2462 = vld [vmem:[%s7 + $0x160] sm:$0xff]
    %v2463 = vld [vmem:[%s7 + $0x168] sm:$0xff]
    %v2464 = vld [vmem:[%s7 + $0x170] sm:$0xff]
    %v2465 = vld [vmem:[%s7 + $0x178] sm:$0xff]
    %v2466 = vld [vmem:[%s7 + $0x180] sm:$0xff]
    %v2467 = vld [vmem:[%s7 + $0x188] sm:$0xff]
    %v2468 = vld [vmem:[%s8] sm:$0x1]
    %v2470 = vperm.slane %v2468, 0
    %v2472 = vsel %vm83, %v2409, 0
    %2474 = vmatpush.msra.mxu0 %v2433
    %2475 = vmatpush.msra.mxu0 %v2432
    %2476 = vmatpush.msra.mxu0 %v2431
    %2477 = vmatpush.msra.mxu0 %v2430
    %2478 = vmatpush.msra.mxu0 %v2429
    %2479 = vmatpush.msra.mxu0 %v2428
    %2480 = vmatpush.msra.mxu0 %v2427
    %2481 = vmatpush.msra.mxu0 %v2426
    %2482 = vmatpush.msra.mxu0 %v2425
    %2483 = vmatpush.msra.mxu0 %v2424
    %2484 = vmatpush.msra.mxu0 %v2423
    %2485 = vmatpush.msra.mxu0 %v2422
    %2486 = vmatpush.msra.mxu0 %v2421
    %2487 = vmatpush.msra.mxu0 %v2420
    %2488 = vmatpush.msra.mxu0 %v2419
    %2489 = vmatpush.msra.mxu0 %v2418
    %2490 = vmatmul.f32.gmra.mxu0 %v2411
    %v2491 = vpop.f32.mrf.mxu0
    %v2492 = vadd.f32 %v2470, %v2491
    %2493 = vdwg.mxu0
    %2494 = vmatpush.msra.mxu0 %v2449
    %2495 = vmatpush.msra.mxu0 %v2448
    %2496 = vmatpush.msra.mxu0 %v2447
    %2497 = vmatpush.msra.mxu0 %v2446
    %2498 = vmatpush.msra.mxu0 %v2445
    %2499 = vmatpush.msra.mxu0 %v2444
    %2500 = vmatpush.msra.mxu0 %v2443
    %2501 = vmatpush.msra.mxu0 %v2442
    %2502 = vmatpush.msra.mxu0 %v2441
    %2503 = vmatpush.msra.mxu0 %v2440
    %2504 = vmatpush.msra.mxu0 %v2439
    %2505 = vmatpush.msra.mxu0 %v2438
    %2506 = vmatpush.msra.mxu0 %v2437
    %2507 = vmatpush.msra.mxu0 %v2436
    %2508 = vmatpush.msra.mxu0 %v2435
    %2509 = vmatpush.msra.mxu0 %v2434
    %2510 = vmatmul.f32.gmra.mxu0 %v2415
    %v2511 = vpop.f32.mrf.mxu0
    %v2512 = vadd.f32 %v2492, %v2511
    %2513 = vdwg.mxu0
    %2514 = vmatpush.msra.mxu0 %v2465
    %2515 = vmatpush.msra.mxu0 %v2464
    %2516 = vmatpush.msra.mxu0 %v2463
    %2517 = vmatpush.msra.mxu0 %v2462
    %2518 = vmatpush.msra.mxu0 %v2461
    %2519 = vmatpush.msra.mxu0 %v2460
    %2520 = vmatpush.msra.mxu0 %v2459
    %2521 = vmatpush.msra.mxu0 %v2458
    %2522 = vmatpush.msra.mxu0 %v2457
    %2523 = vmatpush.msra.mxu0 %v2456
    %2524 = vmatpush.msra.mxu0 %v2455
    %2525 = vmatpush.msra.mxu0 %v2454
    %2526 = vmatpush.msra.mxu0 %v2453
    %2527 = vmatpush.msra.mxu0 %v2452
    %2528 = vmatpush.msra.mxu0 %v2451
    %2529 = vmatpush.msra.mxu0 %v2450
    %2530 = vmatmul.f32.gmra.mxu0 %v2417
    %v2531 = vpop.f32.mrf.mxu0
    %v2532 = vadd.f32 %v2512, %v2531
    %2533 = vdwg.mxu0
    %2534 = vmatpush.msra.mxu0 0.0
    %2535 = vmatpush.msra.mxu0 0.0
    %2536 = vmatpush.msra.mxu0 0.0
    %2537 = vmatpush.msra.mxu0 0.0
    %2538 = vmatpush.msra.mxu0 0.0
    %2539 = vmatpush.msra.mxu0 0.0
    %2540 = vmatpush.msra.mxu0 0.0
    %2541 = vmatpush.msra.mxu0 0.0
    %2542 = vmatpush.msra.mxu0 0.0
    %2543 = vmatpush.msra.mxu0 0.0
    %2544 = vmatpush.msra.mxu0 0.0
    %2545 = vmatpush.msra.mxu0 0.0
    %2546 = vmatpush.msra.mxu0 0.0
    %2547 = vmatpush.msra.mxu0 0.0
    %2548 = vmatpush.msra.mxu0 %v2467
    %2549 = vmatpush.msra.mxu0 %v2466
    %2550 = vmatmul.f32.gmra.mxu0 %v2472
    %v2551 = vpop.f32.mrf.mxu0
    %v2552 = vadd.f32 %v2532, %v2551
    %2553 = vdwg.mxu0
    %v2554 = vtanh.pop %v2552
    %v2555 = vld [vmem:[%s9] sm:$0xff]
    %v2556 = vld [vmem:[%s10] sm:$0x1]
    %v2558 = vperm.slane %v2556, 0
    %vm2560 = vcmask 64512
    %v2562 = vsel %vm2560, %v2554, 0
    %2564 = vmatpush.msra.mxu0 0.0
    %2565 = vmatpush.msra.mxu0 0.0
    %2566 = vmatpush.msra.mxu0 0.0
    %2567 = vmatpush.msra.mxu0 0.0
    %2568 = vmatpush.msra.mxu0 0.0
    %2569 = vmatpush.msra.mxu0 0.0
    %2570 = vmatpush.msra.mxu0 0.0
    %2571 = vmatpush.msra.mxu0 0.0
    %2572 = vmatpush.msra.mxu0 0.0
    %2573 = vmatpush.msra.mxu0 0.0
    %2574 = vmatpush.msra.mxu0 0.0
    %2575 = vmatpush.msra.mxu0 0.0
    %2576 = vmatpush.msra.mxu0 0.0
    %2577 = vmatpush.msra.mxu0 0.0
    %2578 = vmatpush.msra.mxu0 0.0
    %2579 = vmatpush.msra.mxu0 %v2555
    %2580 = vmatmul.f32.gmra.mxu0 %v2562
    %v2581 = vpop.f32.mrf.mxu0
    %v2582 = vadd.f32 %v2558, %v2581
    %2583 = vdwg.mxu0
    %vm2584 = vcmask 9216
    %v2585 = vsel %vm2584, %v2582, -inf
    %2586 = vmax.xlane.f32.xlu0 %v2585
    %v2587 = vpop.xlane.xlu0 %2586
    %v2588 = vsub.f32 %v2582, %v2587
    %v2589 = vmul.f32 %v2588, 1.442695
    %v2590 = vpow.pop %v2589
    %v2591 = vsel %vm2584, %v2590, 0.0
    %2592 = vadd.xlane.f32.xlu0 %v2591
    %v2593 = vpop.xlane.xlu0 %2592
    %v2594 = vrcp.pop %v2593
    %v2595 = vmul.f32 %v2593, %v2594
    %v2596 = vsub.f32 1.0, %v2595
    %v2597 = vmul.f32 %v2594, %v2596
    %v2598 = vadd.f32 %v2594, %v2597
    %vm2599 = vweird.f32 %v2593
    %vm2600 = vweird.f32 %v2594
    %vm2601 = vmor %vm2599, %vm2600
    %v2602 = vsel %vm2601, %v2594, %v2598
    %v2603 = vand.u32 2147483647, %v2593
    %vm2604 = vcmp.eq.f32.partialorder %v2603, 8.507059e+37
    %v2605 = vand.u32 %v2593, 2147483648
    %v2606 = vor.u32 1.1754944e-38, %v2605
    %v2607 = vsel %vm2604, %v2606, %v2602
    %v2608 = vmul.f32 %v2590, %v2607
    %2609 = vst.msk [vmem:[#allocation5] sm:$0x3] %vm2584, %v2608
    // Predicated region
    $region50: #{multi_graph_forward.3} parent=1 // pred_check
      _
    $region51: #{multi_graph_forward.3} parent=1 // pred_check_branch
      %2611 = sbr.rel (0) target = $region53
    $region52: #{multi_graph_forward.3} parent=1 // pred_region
      %2613 = vsyncadd [#allocation4], 0
      %s2615 = sshll.u32 [#allocation5], 4
      %s2616 = int_to_ptr.vmem [resolvable:$true] %s2615
      %s2617 = sshll.u32 %s11, 4
      %s2618 = int_to_ptr.hbm [resolvable:$true] %s2617
      %2620 = dma.vmem_to_hbm [thread:$0]  %s2616, 32, %s2618, [#allocation4]
    $region53: #{multi_graph_forward.3} parent=1 // pred_fallthru
      _
    // Predicated region
    $region54: #{multi_graph_forward.3} parent=1 // pred_check
      _
    $region55: #{multi_graph_forward.3} parent=1 // pred_check_branch
      %2622 = sbr.rel (0) target = $region57
    $region56: #{multi_graph_forward.3} parent=1 // pred_region
      %2624 = dma.done [#allocation4], 32
    $region57: #{multi_graph_forward.3} parent=1 // pred_fallthru
      _
    %2625 = vsyncpa [#allocation3], 1
    %2626 = vsyncpa [#allocation4], 1

</llo_original>
